<compile_context>
chip_gen: v7x
topology: tpu7x:2x2x1
jax: 0.10.0
libtpu: 0.0.40
codegen_flags: <defaults>
</compile_context>

<pallas_src>
import functools

import jax
import jax.numpy as jnp
import numpy as np
from jax.experimental import pallas as pl
from jax.experimental.pallas import tpu as pltpu

NEG_BIG = -1e30
BLK = 128          # lane-dense block width for every projected column block
SRC_BLK = 8        # source block size for the 'dep' max aggregation reduce

# edge type name -> (src node type, dst node type), matching the PyTorch module
EDGE_TYPES = {
    "dep":   ("task",   "task"),   # ('task','depends_on','task')      aggr='max'
    "rdep":  ("task",   "task"),   # ('task','rev_depends_on','task')  aggr='add'
    "rm2t":  ("pe",     "task"),   # ('pe','rev_mapped_to','task')     aggr='add'
    "m2p":   ("task",   "pe"),     # ('task','mapped_to','pe')         aggr='add'
    "iface": ("router", "pe"),     # ('router','interface','pe')       aggr='add'
    "link":  ("router", "router"), # ('router','link','router')        aggr='add'
    "rif":   ("pe",     "router"), # ('pe','rev_interface','router')   aggr='add'
}


def _round_up8(n):
    return ((n + 7) // 8) * 8


# ---------------------------------------------------------------------------
# Pallas kernel: the WHOLE HeteroGNN forward (all layers) in one invocation
# ---------------------------------------------------------------------------
def _fused_gnn_kernel(*refs, num_layers, n_task, n_pe, n_router, offs):
    n_in = 5 + 7 * num_layers
    (x_t_ref, x_p_ref, x_r_ref, a_dep_ref, a_agg_ref) = refs[:5]
    layer_refs = refs[5:n_in]
    o_t_ref, o_p_ref, o_r_ref = refs[n_in:n_in + 3]
    s_ref = refs[n_in + 3]                     # (k_agg, BLK) stacking scratch

    off_p, off_r, s0, s1, s2, s3, s4, s5 = offs

    dot = lambda a, b: jnp.dot(a, b, preferred_element_type=jnp.float32)

    # --- prologue (runs once) -------------------------------------------------
    # Zero the scratch once; gap rows are never written but their adjacency
    # columns are also zero, so this is defensive only.
    s_ref[...] = jnp.zeros(s_ref.shape, jnp.float32)

    # Layer-invariant 'dep' max-aggregation mask + degree gate (hoisted).
    a_dep = a_dep_ref[...]                                        # (Nt, Nt) f32
    negmask = jnp.where(a_dep > 0.0, 0.0, NEG_BIG)                # (Nt, Nt)
    has_nbr = jnp.sum(a_dep, axis=1, keepdims=True) > 0.0         # (Nt, 1)
    src_blocks = [(s, min(s + SRC_BLK, n_task))
                  for s in range(0, n_task, SRC_BLK)]
    neg_cols = [negmask[:, s:e][:, :, None] for (s, e) in src_blocks]

    # Layer-invariant fused block-diagonal adjacency; shipped bf16, widened once.
    a_agg = a_agg_ref[...].astype(jnp.float32)                    # (m_agg, k_agg)

    x_t = x_t_ref[...]
    x_p = x_p_ref[...]
    x_r = x_r_ref[...]

    for li in range(num_layers):
        (wt_ref, wp_ref, wr_ref, wdep_ref,
         bt_ref, bp_ref, br_ref) = layer_refs[7 * li:7 * li + 7]

        # -- fused per-source projections (project-then-aggregate); every
        #    column block is 128 lanes wide -> all slices are whole vregs. ----
        y_t = dot(x_t, wt_ref[...])    # columns: [rdep | m2p  | root_task]
        y_p = dot(x_p, wp_ref[...])    # columns: [rm2t | rif  | root_pe]
        y_r = dot(x_r, wr_ref[...])    # columns: [iface| link | root_router]

        # -- 'max' aggregation for ('task','depends_on','task'): blocked
        #    (Nt, 8, F) broadcast + sublane max reduce; mask hoisted above. ---
        acc = jnp.full((n_task, x_t.shape[1]), NEG_BIG, jnp.float32)
        for (s, e), nb in zip(src_blocks, neg_cols):
            cand = x_t[s:e, :][None, :, :] + nb           # (Nt, blk, F)
            acc = jnp.maximum(acc, jnp.max(cand, axis=1))
        agg_max = jnp.where(has_nbr, acc, 0.0)            # deg-0 nodes get 0
        z_dep = dot(agg_max, wdep_ref[...])               # (Nt, BLK)

        # -- stack projected sources (sublane-aligned rows, full 128 lanes) ---
        s_ref[s0:s0 + n_task, :]   = y_t[:, 0:BLK]          # rdep  (src=task)
        s_ref[s1:s1 + n_pe, :]     = y_p[:, 0:BLK]          # rm2t  (src=pe)
        s_ref[s2:s2 + n_task, :]   = y_t[:, BLK:2 * BLK]    # m2p   (src=task)
        s_ref[s3:s3 + n_router, :] = y_r[:, 0:BLK]          # iface (src=router)
        s_ref[s4:s4 + n_router, :] = y_r[:, BLK:2 * BLK]    # link  (src=router)
        s_ref[s5:s5 + n_pe, :]     = y_p[:, BLK:2 * BLK]    # rif   (src=pe)

        # -- ONE fused aggregation matmul for all three destination types -----
        z = dot(a_agg, s_ref[...])                          # (m_agg, BLK)

        out_t = (z[0:n_task, :] + z_dep
                 + y_t[:, 2 * BLK:3 * BLK] + bt_ref[...])
        out_p = (z[off_p:off_p + n_pe, :]
                 + y_p[:, 2 * BLK:3 * BLK] + bp_ref[...])
        out_r = (z[off_r:off_r + n_router, :]
                 + y_r[:, 2 * BLK:3 * BLK] + br_ref[...])

        if li < num_layers - 1:
            out_t = jnp.maximum(out_t, 0.0)
            out_p = jnp.maximum(out_p, 0.0)
            out_r = jnp.maximum(out_r, 0.0)

        x_t, x_p, x_r = out_t, out_p, out_r

    # lane-dense (N, 128) stores; the 2 real channels are sliced in the wrapper
    o_t_ref[...] = x_t
    o_p_ref[...] = x_p
    o_r_ref[...] = x_r


# ---------------------------------------------------------------------------
# JAX glue
# ---------------------------------------------------------------------------
def _prep_layer_weights(p, out_dim, k_pad):
    """Fold + concat one layer's GraphConv weights into 7 lane-dense arrays.

    Each column block is zero-padded to BLK=128 lanes; K rows are zero-padded
    to k_pad[src] (0 = keep the raw input-feature width, used for layer 0).
    """
    def padw(w, kp):
        kextra = max(kp - w.shape[0], 0)
        return jnp.pad(w, ((0, kextra), (0, BLK - out_dim)))

    def padb(b):
        return jnp.pad(b, (0, BLK - out_dim))[None, :]

    # HeteroConv(aggr='sum'): lin_root weights / lin_rel biases that land on the
    # same destination node type can be folded.
    wroot_t = p["dep"]["w_root"] + p["rdep"]["w_root"] + p["rm2t"]["w_root"]
    wroot_p = p["m2p"]["w_root"] + p["iface"]["w_root"]
    wroot_r = p["link"]["w_root"] + p["rif"]["w_root"]

    w_t = jnp.concatenate([padw(p["rdep"]["w_rel"], k_pad["task"]),
                           padw(p["m2p"]["w_rel"], k_pad["task"]),
                           padw(wroot_t, k_pad["task"])], axis=1)
    w_p = jnp.concatenate([padw(p["rm2t"]["w_rel"], k_pad["pe"]),
                           padw(p["rif"]["w_rel"], k_pad["pe"]),
                           padw(wroot_p, k_pad["pe"])], axis=1)
    w_r = jnp.concatenate([padw(p["iface"]["w_rel"], k_pad["router"]),
                           padw(p["link"]["w_rel"], k_pad["router"]),
                           padw(wroot_r, k_pad["router"])], axis=1)
    w_dep = padw(p["dep"]["w_rel"], k_pad["task"])

    b_t = padb(p["dep"]["b_rel"] + p["rdep"]["b_rel"] + p["rm2t"]["b_rel"])
    b_p = padb(p["m2p"]["b_rel"] + p["iface"]["b_rel"])
    b_r = padb(p["link"]["b_rel"] + p["rif"]["b_rel"])
    return [w_t, w_p, w_r, w_dep, b_t, b_p, b_r]


def hetero_gnn_forward(x_dict, adjs, all_params, router_embed_weight,
                       hidden_channels, num_mpn_layers, final_out=2):
    """Full HeteroGNN forward; all layer compute inside one pallas_call."""
    assert hidden_channels <= BLK and final_out <= BLK, \
        "channel widths must fit the 128-lane block (scratch width)"
    x_t = x_dict["task"]
    x_p = x_dict["pe"]
    n_task, n_pe = x_t.shape[0], x_p.shape[0]
    assert n_pe % 9 == 0, "num_pe must be 9 * batch_size"
    batch_size = n_pe // 9
    # TODO(synk): the router-embedding tiling could be replicated inside the
    # kernel from the raw (9, proj) table; kept as one tiny wrapper-side tile
    # to avoid an unaligned in-kernel sublane concatenation.
    x_r = jnp.tile(router_embed_weight, (batch_size, 1))
    n_router = x_r.shape[0]
    assert adjs["iface"].shape == (n_pe, n_router)
    assert adjs["rif"].shape == (n_router, n_pe)

    f32 = jnp.float32

    # Destination-row offsets of the fused aggregation output (sublane-aligned).
    off_p = _round_up8(n_task)
    off_r = _round_up8(off_p + n_pe)
    m_agg = _round_up8(off_r + n_router)
    # Source-row offsets of the stacked projected-feature scratch.
    s0 = 0
    s1 = _round_up8(s0 + n_task)        # rm2t  (pe src,     task dst)
    s2 = _round_up8(s1 + n_pe)          # m2p   (task src,   pe dst)
    s3 = _round_up8(s2 + n_task)        # iface (router src, pe dst)
    s4 = _round_up8(s3 + n_router)      # link  (router src, router dst)
    s5 = _round_up8(s4 + n_router)      # rif   (pe src,     router dst)
    k_agg = _round_up8(s5 + n_pe)

    # One layer-invariant block-diagonal adjacency for ALL 'add' edge types.
    # Gap rows/cols stay zero.  Entries are small integer edge counts -> exact
    # in bf16 (halves the resident footprint; widened to f32 in the prologue).
    a_agg = jnp.zeros((m_agg, k_agg), f32)
    a_agg = a_agg.at[0:n_task, s0:s0 + n_task].set(adjs["rdep"])
    a_agg = a_agg.at[0:n_task, s1:s1 + n_pe].set(adjs["rm2t"])
    a_agg = a_agg.at[off_p:off_p + n_pe, s2:s2 + n_task].set(adjs["m2p"])
    a_agg = a_agg.at[off_p:off_p + n_pe, s3:s3 + n_router].set(adjs["iface"])
    a_agg = a_agg.at[off_r:off_r + n_router, s4:s4 + n_router].set(adjs["link"])
    a_agg = a_agg.at[off_r:off_r + n_router, s5:s5 + n_pe].set(adjs["rif"])
    a_agg = a_agg.astype(jnp.bfloat16)

    layer_ws = []
    for li in range(num_mpn_layers):
        last = li == num_mpn_layers - 1
        out_dim = final_out if last else hidden_channels
        k_pad = ({"task": 0, "pe": 0, "router": 0} if li == 0
                 else {"task": BLK, "pe": BLK, "router": BLK})
        layer_ws += _prep_layer_weights(all_params[li], out_dim, k_pad)

    # a_dep stays f32: only used for the >0 mask and the degree gate.
    inputs = [x_t, x_p, x_r, adjs["dep"], a_agg] + layer_ws

    out_shape = (
        jax.ShapeDtypeStruct((n_task, BLK), f32),
        jax.ShapeDtypeStruct((n_pe, BLK), f32),
        jax.ShapeDtypeStruct((n_router, BLK), f32),
    )
    vmem = pl.BlockSpec(memory_space=pltpu.MemorySpace.VMEM)
    kernel = functools.partial(
        _fused_gnn_kernel, num_layers=num_mpn_layers,
        n_task=n_task, n_pe=n_pe, n_router=n_router,
        offs=(off_p, off_r, s0, s1, s2, s3, s4, s5))

    o_t, o_p, o_r = pl.pallas_call(
        kernel,
        out_shape=out_shape,
        in_specs=[vmem] * len(inputs),
        out_specs=(vmem, vmem, vmem),
        scratch_shapes=[pltpu.VMEM((k_agg, BLK), f32)],  # stacked projected src
    )(*inputs)

    # slice the lane-dense (N, 128) slabs back to the real 2 output channels
    return {"task": o_t[:, :final_out],
            "pe": o_p[:, :final_out],
            "router": o_r[:, :final_out]}


def init_layer_params(key, in_dims, out_dim):
    params = {}
    for i, (name, (src, dst)) in enumerate(EDGE_TYPES.items()):
        k1, k2, k3 = jax.random.split(jax.random.fold_in(key, i), 3)
        params[name] = {
            "w_rel":  0.1 * jax.random.normal(k1, (in_dims[src], out_dim), jnp.float32),
            "b_rel":  0.1 * jax.random.normal(k2, (out_dim,), jnp.float32),
            "w_root": 0.1 * jax.random.normal(k3, (in_dims[dst], out_dim), jnp.float32),
        }
    return params


def dense_adj(edge_index, num_dst, num_src):
    src, dst = edge_index[0], edge_index[1]
    return jnp.zeros((num_dst, num_src), jnp.float32).at[dst, src].add(1.0)


# ---------------------------------------------------------------------------
# Pure numpy (float64) reference for verification
# ---------------------------------------------------------------------------
def numpy_ref_forward(x_dict, adjs, all_params, router_w, hidden, num_layers):
    X = {k: np.asarray(v, np.float64) for k, v in x_dict.items()}
    A = {k: np.asarray(v, np.float64) for k, v in adjs.items()}
    X["router"] = np.tile(np.asarray(router_w, np.float64),
                          (X["pe"].shape[0] // 9, 1))

    def gc(x_src, x_dst, a, p, aggr):
        w_rel = np.asarray(p["w_rel"], np.float64)
        b_rel = np.asarray(p["b_rel"], np.float64)
        w_root = np.asarray(p["w_root"], np.float64)
        if aggr == "max":
            masked = np.where(a[:, :, None] > 0, x_src[None, :, :], NEG_BIG)
            agg = masked.max(axis=1)
            agg = np.where(a.sum(axis=1, keepdims=True) > 0, agg, 0.0)
        else:
            agg = a @ x_src
        return agg @ w_rel + b_rel + x_dst @ w_root

    for li in range(num_layers):
        p = all_params[li]
        out_t = (gc(X["task"], X["task"], A["dep"],  p["dep"],  "max")
                 + gc(X["task"], X["task"], A["rdep"], p["rdep"], "add")
                 + gc(X["pe"],   X["task"], A["rm2t"], p["rm2t"], "add"))
        out_p = (gc(X["task"],   X["pe"], A["m2p"],   p["m2p"],   "add")
                 + gc(X["router"], X["pe"], A["iface"], p["iface"], "add"))
        out_r = (gc(X["router"], X["router"], A["link"], p["link"], "add")
                 + gc(X["pe"],   X["router"], A["rif"],  p["rif"],  "add"))
        X = {"task": out_t, "pe": out_p, "router": out_r}
        if li < num_layers - 1:
            X = {k: np.maximum(v, 0.0) for k, v in X.items()}
    return X


# ---------------------------------------------------------------------------
if __name__ == "__main__":
    hidden_channels = 32
    num_mpn_layers = 3
    projection_size = 32          # router_embedding dim
    batch_size = 2
    num_task, num_pe, num_router = 16, 9 * batch_size, 9 * batch_size
    f_task, f_pe = 7, 5

    key = jax.random.PRNGKey(0)
    ks = jax.random.split(key, 16)

    x_task = jax.random.normal(ks[0], (num_task, f_task), jnp.float32)
    x_pe = jax.random.normal(ks[1], (num_pe, f_pe), jnp.float32)
    router_embed_weight = 0.5 * jax.random.normal(
        ks[2], (9, projection_size), jnp.float32)

    # edges (deterministic, random small graph) -> dense adjacency per edge type
    e_dep = 24
    dep_src = jax.random.randint(ks[3], (e_dep,), 0, num_task)
    dep_dst = jax.random.randint(ks[4], (e_dep,), 0, num_task)
    m2p_src = jnp.arange(num_task)
    m2p_dst = jax.random.randint(ks[5], (num_task,), 0, num_pe)
    e_link = 30
    link_src = jax.random.randint(ks[6], (e_link,), 0, num_router)
    link_dst = jax.random.randint(ks[7], (e_link,), 0, num_router)
    ridx = jnp.arange(num_router)

    adjs = {
        "dep":   dense_adj(jnp.stack([dep_src, dep_dst]), num_task, num_task),
        "rdep":  dense_adj(jnp.stack([dep_dst, dep_src]), num_task, num_task),
        "m2p":   dense_adj(jnp.stack([m2p_src, m2p_dst]), num_pe, num_task),
        "rm2t":  dense_adj(jnp.stack([m2p_dst, m2p_src]), num_task, num_pe),
        "link":  dense_adj(jnp.stack([link_src, link_dst]), num_router, num_router),
        "iface": dense_adj(jnp.stack([ridx, ridx]), num_pe, num_router),
        "rif":   dense_adj(jnp.stack([ridx, ridx]), num_router, num_pe),
    }

    # per-layer GraphConv parameters (first layer is "lazy": per-node-type dims)
    all_params = []
    in_dims = {"task": f_task, "pe": f_pe, "router": projection_size}
    for li in range(num_mpn_layers):
        out_dim = hidden_channels if li < num_mpn_layers - 1 else 2
        all_params.append(init_layer_params(jax.random.fold_in(ks[8], li),
                                            in_dims, out_dim))
        in_dims = {"task": out_dim, "pe": out_dim, "router": out_dim}

    x_dict_in = {"task": x_task, "pe": x_pe}

    fwd = jax.jit(lambda xd, aj, pr, rw: hetero_gnn_forward(
        xd, aj, pr, rw, hidden_channels, num_mpn_layers))
    out = fwd(x_dict_in, adjs, all_params, router_embed_weight)
    out = jax.block_until_ready(out)

    ref = numpy_ref_forward(x_dict_in, adjs, all_params, router_embed_weight,
                            hidden_channels, num_mpn_layers)
    for k in ("task", "pe", "router"):
        np.testing.assert_allclose(np.asarray(out[k]), ref[k],
                                   rtol=2e-2, atol=2e-2)

    print("KERNEL_OK")
</pallas_src>

<mosaic_0001>
module attributes {stable_mosaic.version = 11 : i64} {
  func.func @_fused_gnn_kernel(%arg0: memref<16x7xf32, #tpu.memory_space<vmem>>, %arg1: memref<18x5xf32, #tpu.memory_space<vmem>>, %arg2: memref<18x32xf32, #tpu.memory_space<vmem>>, %arg3: memref<16x16xf32, #tpu.memory_space<vmem>>, %arg4: memref<64x128xbf16, #tpu.memory_space<vmem>>, %arg5: memref<7x384xf32, #tpu.memory_space<vmem>>, %arg6: memref<5x384xf32, #tpu.memory_space<vmem>>, %arg7: memref<32x384xf32, #tpu.memory_space<vmem>>, %arg8: memref<7x128xf32, #tpu.memory_space<vmem>>, %arg9: memref<1x128xf32, #tpu.memory_space<vmem>>, %arg10: memref<1x128xf32, #tpu.memory_space<vmem>>, %arg11: memref<1x128xf32, #tpu.memory_space<vmem>>, %arg12: memref<128x384xf32, #tpu.memory_space<vmem>>, %arg13: memref<128x384xf32, #tpu.memory_space<vmem>>, %arg14: memref<128x384xf32, #tpu.memory_space<vmem>>, %arg15: memref<128x128xf32, #tpu.memory_space<vmem>>, %arg16: memref<1x128xf32, #tpu.memory_space<vmem>>, %arg17: memref<1x128xf32, #tpu.memory_space<vmem>>, %arg18: memref<1x128xf32, #tpu.memory_space<vmem>>, %arg19: memref<128x384xf32, #tpu.memory_space<vmem>>, %arg20: memref<128x384xf32, #tpu.memory_space<vmem>>, %arg21: memref<128x384xf32, #tpu.memory_space<vmem>>, %arg22: memref<128x128xf32, #tpu.memory_space<vmem>>, %arg23: memref<1x128xf32, #tpu.memory_space<vmem>>, %arg24: memref<1x128xf32, #tpu.memory_space<vmem>>, %arg25: memref<1x128xf32, #tpu.memory_space<vmem>>, %arg26: memref<16x128xf32, #tpu.memory_space<vmem>>, %arg27: memref<18x128xf32, #tpu.memory_space<vmem>>, %arg28: memref<18x128xf32, #tpu.memory_space<vmem>>, %arg29: memref<128x128xf32, #tpu.memory_space<vmem>>) attributes {dimension_semantics = [], scalar_prefetch = 0 : i64, scratch_operands = 1 : i64, tpu.core_type = #tpu.core_type<tc>} {
    %cst = arith.constant 0.000000e+00 : f32
    %0 = vector.broadcast %cst : f32 to vector<128x128xf32>
    %c0 = arith.constant 0 : index
    %c0_0 = arith.constant 0 : index
    %1 = vector.load %arg29[%c0, %c0_0] : memref<128x128xf32, #tpu.memory_space<vmem>>, vector<128x128xf32>
    tpu.vector_store %arg29[%c0, %c0_0], %0 {strides = array<i32>} : memref<128x128xf32, #tpu.memory_space<vmem>>, vector<128x128xf32>,
    %c0_1 = arith.constant 0 : index
    %c0_2 = arith.constant 0 : index
    %2 = vector.load %arg3[%c0_1, %c0_2] : memref<16x16xf32, #tpu.memory_space<vmem>>, vector<16x16xf32>
    %cst_3 = arith.constant 0.000000e+00 : f32
    %3 = vector.broadcast %cst_3 : f32 to vector<16x16xf32>
    %4 = arith.cmpf ogt, %2, %3 : vector<16x16xf32>
    %cst_4 = arith.constant 0.000000e+00 : f32
    %cst_5 = arith.constant -1.000000e+30 : f32
    %5 = vector.broadcast %cst_4 : f32 to vector<16x16xf32>
    %6 = vector.broadcast %cst_5 : f32 to vector<16x16xf32>
    %7 = arith.select %4, %5, %6 : vector<16x16xi1>, vector<16x16xf32>
    %cst_6 = arith.constant dense<0.000000e+00> : vector<16xf32>
    %8 = vector.multi_reduction <add>, %2, %cst_6 [1] : vector<16x16xf32> to vector<16xf32>
    %9 = vector.shape_cast %8 : vector<16xf32> to vector<16x1xf32>
    %cst_7 = arith.constant 0.000000e+00 : f32
    %10 = vector.broadcast %cst_7 : f32 to vector<16x1xf32>
    %11 = arith.cmpf ogt, %9, %10 : vector<16x1xf32>
    %12 = vector.extract_strided_slice %7 {offsets = [0, 0], sizes = [16, 8], strides = [1, 1]} : vector<16x16xf32> to vector<16x8xf32>
    %13 = vector.shape_cast %12 : vector<16x8xf32> to vector<16x8x1xf32>
    %14 = vector.extract_strided_slice %7 {offsets = [0, 8], sizes = [16, 8], strides = [1, 1]} : vector<16x16xf32> to vector<16x8xf32>
    %15 = vector.shape_cast %14 : vector<16x8xf32> to vector<16x8x1xf32>
    %c0_8 = arith.constant 0 : index
    %c0_9 = arith.constant 0 : index
    %16 = vector.load %arg4[%c0_8, %c0_9] : memref<64x128xbf16, #tpu.memory_space<vmem>>, vector<64x128xbf16>
    %17 = arith.extf %16 : vector<64x128xbf16> to vector<64x128xf32>
    %c0_10 = arith.constant 0 : index
    %c0_11 = arith.constant 0 : index
    %18 = vector.load %arg0[%c0_10, %c0_11] : memref<16x7xf32, #tpu.memory_space<vmem>>, vector<16x7xf32>
    %c0_12 = arith.constant 0 : index
    %c0_13 = arith.constant 0 : index
    %19 = vector.load %arg1[%c0_12, %c0_13] : memref<18x5xf32, #tpu.memory_space<vmem>>, vector<18x5xf32>
    %c0_14 = arith.constant 0 : index
    %c0_15 = arith.constant 0 : index
    %20 = vector.load %arg2[%c0_14, %c0_15] : memref<18x32xf32, #tpu.memory_space<vmem>>, vector<18x32xf32>
    %c0_16 = arith.constant 0 : index
    %c0_17 = arith.constant 0 : index
    %21 = vector.load %arg5[%c0_16, %c0_17] : memref<7x384xf32, #tpu.memory_space<vmem>>, vector<7x384xf32>
    %cst_18 = arith.constant dense<0.000000e+00> : vector<16x384xf32>
    %22 = tpu.matmul %18, %21, %cst_18 {dimension_numbers = #tpu.dot_dimension_numbers<[1], [0], [0], [1], [0, 0, 1, 1], [], []>} : vector<16x7xf32>, vector<7x384xf32>, vector<16x384xf32> -> vector<16x384xf32>
    %c0_19 = arith.constant 0 : index
    %c0_20 = arith.constant 0 : index
    %23 = vector.load %arg6[%c0_19, %c0_20] : memref<5x384xf32, #tpu.memory_space<vmem>>, vector<5x384xf32>
    %cst_21 = arith.constant dense<0.000000e+00> : vector<18x384xf32>
    %24 = tpu.matmul %19, %23, %cst_21 {dimension_numbers = #tpu.dot_dimension_numbers<[1], [0], [0], [1], [0, 0, 1, 1], [], []>} : vector<18x5xf32>, vector<5x384xf32>, vector<18x384xf32> -> vector<18x384xf32>
    %c0_22 = arith.constant 0 : index
    %c0_23 = arith.constant 0 : index
    %25 = vector.load %arg7[%c0_22, %c0_23] : memref<32x384xf32, #tpu.memory_space<vmem>>, vector<32x384xf32>
    %cst_24 = arith.constant dense<0.000000e+00> : vector<18x384xf32>
    %26 = tpu.matmul %20, %25, %cst_24 {dimension_numbers = #tpu.dot_dimension_numbers<[1], [0], [0], [1], [0, 0, 1, 1], [], []>} : vector<18x32xf32>, vector<32x384xf32>, vector<18x384xf32> -> vector<18x384xf32>
    %cst_25 = arith.constant -1.000000e+30 : f32
    %27 = vector.broadcast %cst_25 : f32 to vector<16x7xf32>
    %28 = vector.extract_strided_slice %18 {offsets = [0, 0], sizes = [8, 7], strides = [1, 1]} : vector<16x7xf32> to vector<8x7xf32>
    %29 = vector.shape_cast %28 : vector<8x7xf32> to vector<1x8x7xf32>
    %30 = vector.broadcast %29 : vector<1x8x7xf32> to vector<16x8x7xf32>
    %31 = vector.broadcast %13 : vector<16x8x1xf32> to vector<16x8x7xf32>
    %32 = arith.addf %30, %31 : vector<16x8x7xf32>
    %cst_26 = arith.constant dense<0xFF800000> : vector<16x7xf32>
    %33 = vector.multi_reduction <maximumf>, %32, %cst_26 [1] : vector<16x8x7xf32> to vector<16x7xf32>
    %34 = arith.maximumf %27, %33 : vector<16x7xf32>
    %35 = vector.extract_strided_slice %18 {offsets = [8, 0], sizes = [8, 7], strides = [1, 1]} : vector<16x7xf32> to vector<8x7xf32>
    %36 = vector.shape_cast %35 : vector<8x7xf32> to vector<1x8x7xf32>
    %37 = vector.broadcast %36 : vector<1x8x7xf32> to vector<16x8x7xf32>
    %38 = vector.broadcast %15 : vector<16x8x1xf32> to vector<16x8x7xf32>
    %39 = arith.addf %37, %38 : vector<16x8x7xf32>
    %cst_27 = arith.constant dense<0xFF800000> : vector<16x7xf32>
    %40 = vector.multi_reduction <maximumf>, %39, %cst_27 [1] : vector<16x8x7xf32> to vector<16x7xf32>
    %41 = arith.maximumf %34, %40 : vector<16x7xf32>
    %cst_28 = arith.constant 0.000000e+00 : f32
    %42 = vector.shape_cast %11 : vector<16x1xi1> to vector<16x1xi1>
    %43 = vector.broadcast %42 : vector<16x1xi1> to vector<16x7xi1>
    %44 = vector.broadcast %cst_28 : f32 to vector<16x7xf32>
    %45 = arith.select %43, %41, %44 : vector<16x7xi1>, vector<16x7xf32>
    %c0_29 = arith.constant 0 : index
    %c0_30 = arith.constant 0 : index
    %46 = vector.load %arg8[%c0_29, %c0_30] : memref<7x128xf32, #tpu.memory_space<vmem>>, vector<7x128xf32>
    %cst_31 = arith.constant dense<0.000000e+00> : vector<16x128xf32>
    %47 = tpu.matmul %45, %46, %cst_31 {dimension_numbers = #tpu.dot_dimension_numbers<[1], [0], [0], [1], [0, 0, 1, 1], [], []>} : vector<16x7xf32>, vector<7x128xf32>, vector<16x128xf32> -> vector<16x128xf32>
    %48 = vector.extract_strided_slice %22 {offsets = [0, 0], sizes = [16, 128], strides = [1, 1]} : vector<16x384xf32> to vector<16x128xf32>
    %c0_32 = arith.constant 0 : index
    %c0_33 = arith.constant 0 : index
    %49 = vector.load %arg29[%c0_32, %c0_33] : memref<128x128xf32, #tpu.memory_space<vmem>>, vector<16x128xf32>
    tpu.vector_store %arg29[%c0_32, %c0_33], %48 {strides = array<i32>} : memref<128x128xf32, #tpu.memory_space<vmem>>, vector<16x128xf32>,
    %50 = vector.extract_strided_slice %24 {offsets = [0, 0], sizes = [18, 128], strides = [1, 1]} : vector<18x384xf32> to vector<18x128xf32>
    %c16 = arith.constant 16 : index
    %c0_34 = arith.constant 0 : index
    %51 = vector.load %arg29[%c16, %c0_34] : memref<128x128xf32, #tpu.memory_space<vmem>>, vector<18x128xf32>
    tpu.vector_store %arg29[%c16, %c0_34], %50 {strides = array<i32>} : memref<128x128xf32, #tpu.memory_space<vmem>>, vector<18x128xf32>,
    %52 = vector.extract_strided_slice %22 {offsets = [0, 128], sizes = [16, 128], strides = [1, 1]} : vector<16x384xf32> to vector<16x128xf32>
    %c40 = arith.constant 40 : index
    %c0_35 = arith.constant 0 : index
    %53 = vector.load %arg29[%c40, %c0_35] : memref<128x128xf32, #tpu.memory_space<vmem>>, vector<16x128xf32>
    tpu.vector_store %arg29[%c40, %c0_35], %52 {strides = array<i32>} : memref<128x128xf32, #tpu.memory_space<vmem>>, vector<16x128xf32>,
    %54 = vector.extract_strided_slice %26 {offsets = [0, 0], sizes = [18, 128], strides = [1, 1]} : vector<18x384xf32> to vector<18x128xf32>
    %c56 = arith.constant 56 : index
    %c0_36 = arith.constant 0 : index
    %55 = vector.load %arg29[%c56, %c0_36] : memref<128x128xf32, #tpu.memory_space<vmem>>, vector<18x128xf32>
    tpu.vector_store %arg29[%c56, %c0_36], %54 {strides = array<i32>} : memref<128x128xf32, #tpu.memory_space<vmem>>, vector<18x128xf32>,
    %56 = vector.extract_strided_slice %26 {offsets = [0, 128], sizes = [18, 128], strides = [1, 1]} : vector<18x384xf32> to vector<18x128xf32>
    %c80 = arith.constant 80 : index
    %c0_37 = arith.constant 0 : index
    %57 = vector.load %arg29[%c80, %c0_37] : memref<128x128xf32, #tpu.memory_space<vmem>>, vector<18x128xf32>
    tpu.vector_store %arg29[%c80, %c0_37], %56 {strides = array<i32>} : memref<128x128xf32, #tpu.memory_space<vmem>>, vector<18x128xf32>,
    %58 = vector.extract_strided_slice %24 {offsets = [0, 128], sizes = [18, 128], strides = [1, 1]} : vector<18x384xf32> to vector<18x128xf32>
    %c104 = arith.constant 104 : index
    %c0_38 = arith.constant 0 : index
    %59 = vector.load %arg29[%c104, %c0_38] : memref<128x128xf32, #tpu.memory_space<vmem>>, vector<18x128xf32>
    tpu.vector_store %arg29[%c104, %c0_38], %58 {strides = array<i32>} : memref<128x128xf32, #tpu.memory_space<vmem>>, vector<18x128xf32>,
    %c0_39 = arith.constant 0 : index
    %c0_40 = arith.constant 0 : index
    %60 = vector.load %arg29[%c0_39, %c0_40] : memref<128x128xf32, #tpu.memory_space<vmem>>, vector<128x128xf32>
    %cst_41 = arith.constant dense<0.000000e+00> : vector<64x128xf32>
    %61 = tpu.matmul %17, %60, %cst_41 {dimension_numbers = #tpu.dot_dimension_numbers<[1], [0], [0], [1], [0, 0, 1, 1], [], []>} : vector<64x128xf32>, vector<128x128xf32>, vector<64x128xf32> -> vector<64x128xf32>
    %62 = vector.extract_strided_slice %61 {offsets = [0, 0], sizes = [16, 128], strides = [1, 1]} : vector<64x128xf32> to vector<16x128xf32>
    %63 = arith.addf %62, %47 : vector<16x128xf32>
    %64 = vector.extract_strided_slice %22 {offsets = [0, 256], sizes = [16, 128], strides = [1, 1]} : vector<16x384xf32> to vector<16x128xf32>
    %65 = arith.addf %63, %64 : vector<16x128xf32>
    %c0_42 = arith.constant 0 : index
    %c0_43 = arith.constant 0 : index
    %66 = vector.load %arg9[%c0_42, %c0_43] : memref<1x128xf32, #tpu.memory_space<vmem>>, vector<1x128xf32>
    %67 = vector.broadcast %66 : vector<1x128xf32> to vector<16x128xf32>
    %68 = arith.addf %65, %67 : vector<16x128xf32>
    %69 = vector.extract_strided_slice %61 {offsets = [16, 0], sizes = [18, 128], strides = [1, 1]} : vector<64x128xf32> to vector<18x128xf32>
    %70 = vector.extract_strided_slice %24 {offsets = [0, 256], sizes = [18, 128], strides = [1, 1]} : vector<18x384xf32> to vector<18x128xf32>
    %71 = arith.addf %69, %70 : vector<18x128xf32>
    %c0_44 = arith.constant 0 : index
    %c0_45 = arith.constant 0 : index
    %72 = vector.load %arg10[%c0_44, %c0_45] : memref<1x128xf32, #tpu.memory_space<vmem>>, vector<1x128xf32>
    %73 = vector.broadcast %72 : vector<1x128xf32> to vector<18x128xf32>
    %74 = arith.addf %71, %73 : vector<18x128xf32>
    %75 = vector.extract_strided_slice %61 {offsets = [40, 0], sizes = [18, 128], strides = [1, 1]} : vector<64x128xf32> to vector<18x128xf32>
    %76 = vector.extract_strided_slice %26 {offsets = [0, 256], sizes = [18, 128], strides = [1, 1]} : vector<18x384xf32> to vector<18x128xf32>
    %77 = arith.addf %75, %76 : vector<18x128xf32>
    %c0_46 = arith.constant 0 : index
    %c0_47 = arith.constant 0 : index
    %78 = vector.load %arg11[%c0_46, %c0_47] : memref<1x128xf32, #tpu.memory_space<vmem>>, vector<1x128xf32>
    %79 = vector.broadcast %78 : vector<1x128xf32> to vector<18x128xf32>
    %80 = arith.addf %77, %79 : vector<18x128xf32>
    %cst_48 = arith.constant 0.000000e+00 : f32
    %81 = vector.broadcast %cst_48 : f32 to vector<16x128xf32>
    %82 = arith.maximumf %68, %81 : vector<16x128xf32>
    %cst_49 = arith.constant 0.000000e+00 : f32
    %83 = vector.broadcast %cst_49 : f32 to vector<18x128xf32>
    %84 = arith.maximumf %74, %83 : vector<18x128xf32>
    %cst_50 = arith.constant 0.000000e+00 : f32
    %85 = vector.broadcast %cst_50 : f32 to vector<18x128xf32>
    %86 = arith.maximumf %80, %85 : vector<18x128xf32>
    %c0_51 = arith.constant 0 : index
    %c0_52 = arith.constant 0 : index
    %87 = vector.load %arg12[%c0_51, %c0_52] : memref<128x384xf32, #tpu.memory_space<vmem>>, vector<128x384xf32>
    %cst_53 = arith.constant dense<0.000000e+00> : vector<16x384xf32>
    %88 = tpu.matmul %82, %87, %cst_53 {dimension_numbers = #tpu.dot_dimension_numbers<[1], [0], [0], [1], [0, 0, 1, 1], [], []>} : vector<16x128xf32>, vector<128x384xf32>, vector<16x384xf32> -> vector<16x384xf32>
    %c0_54 = arith.constant 0 : index
    %c0_55 = arith.constant 0 : index
    %89 = vector.load %arg13[%c0_54, %c0_55] : memref<128x384xf32, #tpu.memory_space<vmem>>, vector<128x384xf32>
    %cst_56 = arith.constant dense<0.000000e+00> : vector<18x384xf32>
    %90 = tpu.matmul %84, %89, %cst_56 {dimension_numbers = #tpu.dot_dimension_numbers<[1], [0], [0], [1], [0, 0, 1, 1], [], []>} : vector<18x128xf32>, vector<128x384xf32>, vector<18x384xf32> -> vector<18x384xf32>
    %c0_57 = arith.constant 0 : index
    %c0_58 = arith.constant 0 : index
    %91 = vector.load %arg14[%c0_57, %c0_58] : memref<128x384xf32, #tpu.memory_space<vmem>>, vector<128x384xf32>
    %cst_59 = arith.constant dense<0.000000e+00> : vector<18x384xf32>
    %92 = tpu.matmul %86, %91, %cst_59 {dimension_numbers = #tpu.dot_dimension_numbers<[1], [0], [0], [1], [0, 0, 1, 1], [], []>} : vector<18x128xf32>, vector<128x384xf32>, vector<18x384xf32> -> vector<18x384xf32>
    %cst_60 = arith.constant -1.000000e+30 : f32
    %93 = vector.broadcast %cst_60 : f32 to vector<16x128xf32>
    %94 = vector.extract_strided_slice %82 {offsets = [0, 0], sizes = [8, 128], strides = [1, 1]} : vector<16x128xf32> to vector<8x128xf32>
    %95 = vector.shape_cast %94 : vector<8x128xf32> to vector<1x8x128xf32>
    %96 = vector.broadcast %95 : vector<1x8x128xf32> to vector<16x8x128xf32>
    %97 = vector.broadcast %13 : vector<16x8x1xf32> to vector<16x8x128xf32>
    %98 = arith.addf %96, %97 : vector<16x8x128xf32>
    %cst_61 = arith.constant dense<0xFF800000> : vector<16x128xf32>
    %99 = vector.multi_reduction <maximumf>, %98, %cst_61 [1] : vector<16x8x128xf32> to vector<16x128xf32>
    %100 = arith.maximumf %93, %99 : vector<16x128xf32>
    %101 = vector.extract_strided_slice %82 {offsets = [8, 0], sizes = [8, 128], strides = [1, 1]} : vector<16x128xf32> to vector<8x128xf32>
    %102 = vector.shape_cast %101 : vector<8x128xf32> to vector<1x8x128xf32>
    %103 = vector.broadcast %102 : vector<1x8x128xf32> to vector<16x8x128xf32>
    %104 = vector.broadcast %15 : vector<16x8x1xf32> to vector<16x8x128xf32>
    %105 = arith.addf %103, %104 : vector<16x8x128xf32>
    %cst_62 = arith.constant dense<0xFF800000> : vector<16x128xf32>
    %106 = vector.multi_reduction <maximumf>, %105, %cst_62 [1] : vector<16x8x128xf32> to vector<16x128xf32>
    %107 = arith.maximumf %100, %106 : vector<16x128xf32>
    %cst_63 = arith.constant 0.000000e+00 : f32
    %108 = vector.shape_cast %11 : vector<16x1xi1> to vector<16x1xi1>
    %109 = vector.broadcast %108 : vector<16x1xi1> to vector<16x128xi1>
    %110 = vector.broadcast %cst_63 : f32 to vector<16x128xf32>
    %111 = arith.select %109, %107, %110 : vector<16x128xi1>, vector<16x128xf32>
    %c0_64 = arith.constant 0 : index
    %c0_65 = arith.constant 0 : index
    %112 = vector.load %arg15[%c0_64, %c0_65] : memref<128x128xf32, #tpu.memory_space<vmem>>, vector<128x128xf32>
    %cst_66 = arith.constant dense<0.000000e+00> : vector<16x128xf32>
    %113 = tpu.matmul %111, %112, %cst_66 {dimension_numbers = #tpu.dot_dimension_numbers<[1], [0], [0], [1], [0, 0, 1, 1], [], []>} : vector<16x128xf32>, vector<128x128xf32>, vector<16x128xf32> -> vector<16x128xf32>
    %114 = vector.extract_strided_slice %88 {offsets = [0, 0], sizes = [16, 128], strides = [1, 1]} : vector<16x384xf32> to vector<16x128xf32>
    %c0_67 = arith.constant 0 : index
    %c0_68 = arith.constant 0 : index
    %115 = vector.load %arg29[%c0_67, %c0_68] : memref<128x128xf32, #tpu.memory_space<vmem>>, vector<16x128xf32>
    tpu.vector_store %arg29[%c0_67, %c0_68], %114 {strides = array<i32>} : memref<128x128xf32, #tpu.memory_space<vmem>>, vector<16x128xf32>,
    %116 = vector.extract_strided_slice %90 {offsets = [0, 0], sizes = [18, 128], strides = [1, 1]} : vector<18x384xf32> to vector<18x128xf32>
    %c16_69 = arith.constant 16 : index
    %c0_70 = arith.constant 0 : index
    %117 = vector.load %arg29[%c16_69, %c0_70] : memref<128x128xf32, #tpu.memory_space<vmem>>, vector<18x128xf32>
    tpu.vector_store %arg29[%c16_69, %c0_70], %116 {strides = array<i32>} : memref<128x128xf32, #tpu.memory_space<vmem>>, vector<18x128xf32>,
    %118 = vector.extract_strided_slice %88 {offsets = [0, 128], sizes = [16, 128], strides = [1, 1]} : vector<16x384xf32> to vector<16x128xf32>
    %c40_71 = arith.constant 40 : index
    %c0_72 = arith.constant 0 : index
    %119 = vector.load %arg29[%c40_71, %c0_72] : memref<128x128xf32, #tpu.memory_space<vmem>>, vector<16x128xf32>
    tpu.vector_store %arg29[%c40_71, %c0_72], %118 {strides = array<i32>} : memref<128x128xf32, #tpu.memory_space<vmem>>, vector<16x128xf32>,
    %120 = vector.extract_strided_slice %92 {offsets = [0, 0], sizes = [18, 128], strides = [1, 1]} : vector<18x384xf32> to vector<18x128xf32>
    %c56_73 = arith.constant 56 : index
    %c0_74 = arith.constant 0 : index
    %121 = vector.load %arg29[%c56_73, %c0_74] : memref<128x128xf32, #tpu.memory_space<vmem>>, vector<18x128xf32>
    tpu.vector_store %arg29[%c56_73, %c0_74], %120 {strides = array<i32>} : memref<128x128xf32, #tpu.memory_space<vmem>>, vector<18x128xf32>,
    %122 = vector.extract_strided_slice %92 {offsets = [0, 128], sizes = [18, 128], strides = [1, 1]} : vector<18x384xf32> to vector<18x128xf32>
    %c80_75 = arith.constant 80 : index
    %c0_76 = arith.constant 0 : index
    %123 = vector.load %arg29[%c80_75, %c0_76] : memref<128x128xf32, #tpu.memory_space<vmem>>, vector<18x128xf32>
    tpu.vector_store %arg29[%c80_75, %c0_76], %122 {strides = array<i32>} : memref<128x128xf32, #tpu.memory_space<vmem>>, vector<18x128xf32>,
    %124 = vector.extract_strided_slice %90 {offsets = [0, 128], sizes = [18, 128], strides = [1, 1]} : vector<18x384xf32> to vector<18x128xf32>
    %c104_77 = arith.constant 104 : index
    %c0_78 = arith.constant 0 : index
    %125 = vector.load %arg29[%c104_77, %c0_78] : memref<128x128xf32, #tpu.memory_space<vmem>>, vector<18x128xf32>
    tpu.vector_store %arg29[%c104_77, %c0_78], %124 {strides = array<i32>} : memref<128x128xf32, #tpu.memory_space<vmem>>, vector<18x128xf32>,
    %c0_79 = arith.constant 0 : index
    %c0_80 = arith.constant 0 : index
    %126 = vector.load %arg29[%c0_79, %c0_80] : memref<128x128xf32, #tpu.memory_space<vmem>>, vector<128x128xf32>
    %cst_81 = arith.constant dense<0.000000e+00> : vector<64x128xf32>
    %127 = tpu.matmul %17, %126, %cst_81 {dimension_numbers = #tpu.dot_dimension_numbers<[1], [0], [0], [1], [0, 0, 1, 1], [], []>} : vector<64x128xf32>, vector<128x128xf32>, vector<64x128xf32> -> vector<64x128xf32>
    %128 = vector.extract_strided_slice %127 {offsets = [0, 0], sizes = [16, 128], strides = [1, 1]} : vector<64x128xf32> to vector<16x128xf32>
    %129 = arith.addf %128, %113 : vector<16x128xf32>
    %130 = vector.extract_strided_slice %88 {offsets = [0, 256], sizes = [16, 128], strides = [1, 1]} : vector<16x384xf32> to vector<16x128xf32>
    %131 = arith.addf %129, %130 : vector<16x128xf32>
    %c0_82 = arith.constant 0 : index
    %c0_83 = arith.constant 0 : index
    %132 = vector.load %arg16[%c0_82, %c0_83] : memref<1x128xf32, #tpu.memory_space<vmem>>, vector<1x128xf32>
    %133 = vector.broadcast %132 : vector<1x128xf32> to vector<16x128xf32>
    %134 = arith.addf %131, %133 : vector<16x128xf32>
    %135 = vector.extract_strided_slice %127 {offsets = [16, 0], sizes = [18, 128], strides = [1, 1]} : vector<64x128xf32> to vector<18x128xf32>
    %136 = vector.extract_strided_slice %90 {offsets = [0, 256], sizes = [18, 128], strides = [1, 1]} : vector<18x384xf32> to vector<18x128xf32>
    %137 = arith.addf %135, %136 : vector<18x128xf32>
    %c0_84 = arith.constant 0 : index
    %c0_85 = arith.constant 0 : index
    %138 = vector.load %arg17[%c0_84, %c0_85] : memref<1x128xf32, #tpu.memory_space<vmem>>, vector<1x128xf32>
    %139 = vector.broadcast %138 : vector<1x128xf32> to vector<18x128xf32>
    %140 = arith.addf %137, %139 : vector<18x128xf32>
    %141 = vector.extract_strided_slice %127 {offsets = [40, 0], sizes = [18, 128], strides = [1, 1]} : vector<64x128xf32> to vector<18x128xf32>
    %142 = vector.extract_strided_slice %92 {offsets = [0, 256], sizes = [18, 128], strides = [1, 1]} : vector<18x384xf32> to vector<18x128xf32>
    %143 = arith.addf %141, %142 : vector<18x128xf32>
    %c0_86 = arith.constant 0 : index
    %c0_87 = arith.constant 0 : index
    %144 = vector.load %arg18[%c0_86, %c0_87] : memref<1x128xf32, #tpu.memory_space<vmem>>, vector<1x128xf32>
    %145 = vector.broadcast %144 : vector<1x128xf32> to vector<18x128xf32>
    %146 = arith.addf %143, %145 : vector<18x128xf32>
    %cst_88 = arith.constant 0.000000e+00 : f32
    %147 = vector.broadcast %cst_88 : f32 to vector<16x128xf32>
    %148 = arith.maximumf %134, %147 : vector<16x128xf32>
    %cst_89 = arith.constant 0.000000e+00 : f32
    %149 = vector.broadcast %cst_89 : f32 to vector<18x128xf32>
    %150 = arith.maximumf %140, %149 : vector<18x128xf32>
    %cst_90 = arith.constant 0.000000e+00 : f32
    %151 = vector.broadcast %cst_90 : f32 to vector<18x128xf32>
    %152 = arith.maximumf %146, %151 : vector<18x128xf32>
    %c0_91 = arith.constant 0 : index
    %c0_92 = arith.constant 0 : index
    %153 = vector.load %arg19[%c0_91, %c0_92] : memref<128x384xf32, #tpu.memory_space<vmem>>, vector<128x384xf32>
    %cst_93 = arith.constant dense<0.000000e+00> : vector<16x384xf32>
    %154 = tpu.matmul %148, %153, %cst_93 {dimension_numbers = #tpu.dot_dimension_numbers<[1], [0], [0], [1], [0, 0, 1, 1], [], []>} : vector<16x128xf32>, vector<128x384xf32>, vector<16x384xf32> -> vector<16x384xf32>
    %c0_94 = arith.constant 0 : index
    %c0_95 = arith.constant 0 : index
    %155 = vector.load %arg20[%c0_94, %c0_95] : memref<128x384xf32, #tpu.memory_space<vmem>>, vector<128x384xf32>
    %cst_96 = arith.constant dense<0.000000e+00> : vector<18x384xf32>
    %156 = tpu.matmul %150, %155, %cst_96 {dimension_numbers = #tpu.dot_dimension_numbers<[1], [0], [0], [1], [0, 0, 1, 1], [], []>} : vector<18x128xf32>, vector<128x384xf32>, vector<18x384xf32> -> vector<18x384xf32>
    %c0_97 = arith.constant 0 : index
    %c0_98 = arith.constant 0 : index
    %157 = vector.load %arg21[%c0_97, %c0_98] : memref<128x384xf32, #tpu.memory_space<vmem>>, vector<128x384xf32>
    %cst_99 = arith.constant dense<0.000000e+00> : vector<18x384xf32>
    %158 = tpu.matmul %152, %157, %cst_99 {dimension_numbers = #tpu.dot_dimension_numbers<[1], [0], [0], [1], [0, 0, 1, 1], [], []>} : vector<18x128xf32>, vector<128x384xf32>, vector<18x384xf32> -> vector<18x384xf32>
    %cst_100 = arith.constant -1.000000e+30 : f32
    %159 = vector.broadcast %cst_100 : f32 to vector<16x128xf32>
    %160 = vector.extract_strided_slice %148 {offsets = [0, 0], sizes = [8, 128], strides = [1, 1]} : vector<16x128xf32> to vector<8x128xf32>
    %161 = vector.shape_cast %160 : vector<8x128xf32> to vector<1x8x128xf32>
    %162 = vector.broadcast %161 : vector<1x8x128xf32> to vector<16x8x128xf32>
    %163 = vector.broadcast %13 : vector<16x8x1xf32> to vector<16x8x128xf32>
    %164 = arith.addf %162, %163 : vector<16x8x128xf32>
    %cst_101 = arith.constant dense<0xFF800000> : vector<16x128xf32>
    %165 = vector.multi_reduction <maximumf>, %164, %cst_101 [1] : vector<16x8x128xf32> to vector<16x128xf32>
    %166 = arith.maximumf %159, %165 : vector<16x128xf32>
    %167 = vector.extract_strided_slice %148 {offsets = [8, 0], sizes = [8, 128], strides = [1, 1]} : vector<16x128xf32> to vector<8x128xf32>
    %168 = vector.shape_cast %167 : vector<8x128xf32> to vector<1x8x128xf32>
    %169 = vector.broadcast %168 : vector<1x8x128xf32> to vector<16x8x128xf32>
    %170 = vector.broadcast %15 : vector<16x8x1xf32> to vector<16x8x128xf32>
    %171 = arith.addf %169, %170 : vector<16x8x128xf32>
    %cst_102 = arith.constant dense<0xFF800000> : vector<16x128xf32>
    %172 = vector.multi_reduction <maximumf>, %171, %cst_102 [1] : vector<16x8x128xf32> to vector<16x128xf32>
    %173 = arith.maximumf %166, %172 : vector<16x128xf32>
    %cst_103 = arith.constant 0.000000e+00 : f32
    %174 = vector.shape_cast %11 : vector<16x1xi1> to vector<16x1xi1>
    %175 = vector.broadcast %174 : vector<16x1xi1> to vector<16x128xi1>
    %176 = vector.broadcast %cst_103 : f32 to vector<16x128xf32>
    %177 = arith.select %175, %173, %176 : vector<16x128xi1>, vector<16x128xf32>
    %c0_104 = arith.constant 0 : index
    %c0_105 = arith.constant 0 : index
    %178 = vector.load %arg22[%c0_104, %c0_105] : memref<128x128xf32, #tpu.memory_space<vmem>>, vector<128x128xf32>
    %cst_106 = arith.constant dense<0.000000e+00> : vector<16x128xf32>
    %179 = tpu.matmul %177, %178, %cst_106 {dimension_numbers = #tpu.dot_dimension_numbers<[1], [0], [0], [1], [0, 0, 1, 1], [], []>} : vector<16x128xf32>, vector<128x128xf32>, vector<16x128xf32> -> vector<16x128xf32>
    %180 = vector.extract_strided_slice %154 {offsets = [0, 0], sizes = [16, 128], strides = [1, 1]} : vector<16x384xf32> to vector<16x128xf32>
    %c0_107 = arith.constant 0 : index
    %c0_108 = arith.constant 0 : index
    %181 = vector.load %arg29[%c0_107, %c0_108] : memref<128x128xf32, #tpu.memory_space<vmem>>, vector<16x128xf32>
    tpu.vector_store %arg29[%c0_107, %c0_108], %180 {strides = array<i32>} : memref<128x128xf32, #tpu.memory_space<vmem>>, vector<16x128xf32>,
    %182 = vector.extract_strided_slice %156 {offsets = [0, 0], sizes = [18, 128], strides = [1, 1]} : vector<18x384xf32> to vector<18x128xf32>
    %c16_109 = arith.constant 16 : index
    %c0_110 = arith.constant 0 : index
    %183 = vector.load %arg29[%c16_109, %c0_110] : memref<128x128xf32, #tpu.memory_space<vmem>>, vector<18x128xf32>
    tpu.vector_store %arg29[%c16_109, %c0_110], %182 {strides = array<i32>} : memref<128x128xf32, #tpu.memory_space<vmem>>, vector<18x128xf32>,
    %184 = vector.extract_strided_slice %154 {offsets = [0, 128], sizes = [16, 128], strides = [1, 1]} : vector<16x384xf32> to vector<16x128xf32>
    %c40_111 = arith.constant 40 : index
    %c0_112 = arith.constant 0 : index
    %185 = vector.load %arg29[%c40_111, %c0_112] : memref<128x128xf32, #tpu.memory_space<vmem>>, vector<16x128xf32>
    tpu.vector_store %arg29[%c40_111, %c0_112], %184 {strides = array<i32>} : memref<128x128xf32, #tpu.memory_space<vmem>>, vector<16x128xf32>,
    %186 = vector.extract_strided_slice %158 {offsets = [0, 0], sizes = [18, 128], strides = [1, 1]} : vector<18x384xf32> to vector<18x128xf32>
    %c56_113 = arith.constant 56 : index
    %c0_114 = arith.constant 0 : index
    %187 = vector.load %arg29[%c56_113, %c0_114] : memref<128x128xf32, #tpu.memory_space<vmem>>, vector<18x128xf32>
    tpu.vector_store %arg29[%c56_113, %c0_114], %186 {strides = array<i32>} : memref<128x128xf32, #tpu.memory_space<vmem>>, vector<18x128xf32>,
    %188 = vector.extract_strided_slice %158 {offsets = [0, 128], sizes = [18, 128], strides = [1, 1]} : vector<18x384xf32> to vector<18x128xf32>
    %c80_115 = arith.constant 80 : index
    %c0_116 = arith.constant 0 : index
    %189 = vector.load %arg29[%c80_115, %c0_116] : memref<128x128xf32, #tpu.memory_space<vmem>>, vector<18x128xf32>
    tpu.vector_store %arg29[%c80_115, %c0_116], %188 {strides = array<i32>} : memref<128x128xf32, #tpu.memory_space<vmem>>, vector<18x128xf32>,
    %190 = vector.extract_strided_slice %156 {offsets = [0, 128], sizes = [18, 128], strides = [1, 1]} : vector<18x384xf32> to vector<18x128xf32>
    %c104_117 = arith.constant 104 : index
    %c0_118 = arith.constant 0 : index
    %191 = vector.load %arg29[%c104_117, %c0_118] : memref<128x128xf32, #tpu.memory_space<vmem>>, vector<18x128xf32>
    tpu.vector_store %arg29[%c104_117, %c0_118], %190 {strides = array<i32>} : memref<128x128xf32, #tpu.memory_space<vmem>>, vector<18x128xf32>,
    %c0_119 = arith.constant 0 : index
    %c0_120 = arith.constant 0 : index
    %192 = vector.load %arg29[%c0_119, %c0_120] : memref<128x128xf32, #tpu.memory_space<vmem>>, vector<128x128xf32>
    %cst_121 = arith.constant dense<0.000000e+00> : vector<64x128xf32>
    %193 = tpu.matmul %17, %192, %cst_121 {dimension_numbers = #tpu.dot_dimension_numbers<[1], [0], [0], [1], [0, 0, 1, 1], [], []>} : vector<64x128xf32>, vector<128x128xf32>, vector<64x128xf32> -> vector<64x128xf32>
    %194 = vector.extract_strided_slice %193 {offsets = [0, 0], sizes = [16, 128], strides = [1, 1]} : vector<64x128xf32> to vector<16x128xf32>
    %195 = arith.addf %194, %179 : vector<16x128xf32>
    %196 = vector.extract_strided_slice %154 {offsets = [0, 256], sizes = [16, 128], strides = [1, 1]} : vector<16x384xf32> to vector<16x128xf32>
    %197 = arith.addf %195, %196 : vector<16x128xf32>
    %c0_122 = arith.constant 0 : index
    %c0_123 = arith.constant 0 : index
    %198 = vector.load %arg23[%c0_122, %c0_123] : memref<1x128xf32, #tpu.memory_space<vmem>>, vector<1x128xf32>
    %199 = vector.broadcast %198 : vector<1x128xf32> to vector<16x128xf32>
    %200 = arith.addf %197, %199 : vector<16x128xf32>
    %201 = vector.extract_strided_slice %193 {offsets = [16, 0], sizes = [18, 128], strides = [1, 1]} : vector<64x128xf32> to vector<18x128xf32>
    %202 = vector.extract_strided_slice %156 {offsets = [0, 256], sizes = [18, 128], strides = [1, 1]} : vector<18x384xf32> to vector<18x128xf32>
    %203 = arith.addf %201, %202 : vector<18x128xf32>
    %c0_124 = arith.constant 0 : index
    %c0_125 = arith.constant 0 : index
    %204 = vector.load %arg24[%c0_124, %c0_125] : memref<1x128xf32, #tpu.memory_space<vmem>>, vector<1x128xf32>
    %205 = vector.broadcast %204 : vector<1x128xf32> to vector<18x128xf32>
    %206 = arith.addf %203, %205 : vector<18x128xf32>
    %207 = vector.extract_strided_slice %193 {offsets = [40, 0], sizes = [18, 128], strides = [1, 1]} : vector<64x128xf32> to vector<18x128xf32>
    %208 = vector.extract_strided_slice %158 {offsets = [0, 256], sizes = [18, 128], strides = [1, 1]} : vector<18x384xf32> to vector<18x128xf32>
    %209 = arith.addf %207, %208 : vector<18x128xf32>
    %c0_126 = arith.constant 0 : index
    %c0_127 = arith.constant 0 : index
    %210 = vector.load %arg25[%c0_126, %c0_127] : memref<1x128xf32, #tpu.memory_space<vmem>>, vector<1x128xf32>
    %211 = vector.broadcast %210 : vector<1x128xf32> to vector<18x128xf32>
    %212 = arith.addf %209, %211 : vector<18x128xf32>
    %c0_128 = arith.constant 0 : index
    %c0_129 = arith.constant 0 : index
    %213 = vector.load %arg26[%c0_128, %c0_129] : memref<16x128xf32, #tpu.memory_space<vmem>>, vector<16x128xf32>
    tpu.vector_store %arg26[%c0_128, %c0_129], %200 {strides = array<i32>} : memref<16x128xf32, #tpu.memory_space<vmem>>, vector<16x128xf32>,
    %c0_130 = arith.constant 0 : index
    %c0_131 = arith.constant 0 : index
    %214 = vector.load %arg27[%c0_130, %c0_131] : memref<18x128xf32, #tpu.memory_space<vmem>>, vector<18x128xf32>
    tpu.vector_store %arg27[%c0_130, %c0_131], %206 {strides = array<i32>} : memref<18x128xf32, #tpu.memory_space<vmem>>, vector<18x128xf32>,
    %c0_132 = arith.constant 0 : index
    %c0_133 = arith.constant 0 : index
    %215 = vector.load %arg28[%c0_132, %c0_133] : memref<18x128xf32, #tpu.memory_space<vmem>>, vector<18x128xf32>
    tpu.vector_store %arg28[%c0_132, %c0_133], %212 {strides = array<i32>} : memref<18x128xf32, #tpu.memory_space<vmem>>, vector<18x128xf32>,
    return
  }
}

</mosaic_0001>

<llo_original>
// kernel: tile.9
$region0: #{tile.9}
  %s0 = inlined_call_operand.vmem [shape: f32[2,9,32], index: 0, kind: input, shape index: {}]
  %s1 = inlined_call_operand.vmem [shape: f32[18,32], index: 1, kind: output, shape index: {}]
  %v2 = vld [vmem:[%s0] sm:$0xff]
  %vm3 = vcmask 261120
  %4 = vst.msk [vmem:[%s1] sm:$0xff] %vm3, %v2
  %s5 = scalar_lea.vmem %s0, 8
  %s6 = smov 3
  %v7 = vld [vmem:[%s5] ss:$8 sm:%s6]
  %vm8 = vcmask 261120
  %s9 = scalar_lea.vmem %s1, 8
  %10 = vst.msk [vmem:[%s9] sm:$0x3] %vm8, %v7
  %s11 = scalar_lea.vmem %s0, 17
  %v12 = vld [vmem:[%s11] sm:$0xff]
  %vm13 = vcmask 261120
  %s14 = scalar_lea.vmem %s1, 10
  %15 = vst.msk [vmem:[%s14] sm:$0xff] %vm13, %v12

// kernel: _lambda_.1
$region0: #{_lambda_.1}
  #allocation0 [shape = 'u32[]', space=smem, size = 0x4, offset = 0x4, fixed_abs, tag = 'smem constant byte address 0x4 - core index']
  #allocation1 [shape = 'u32[144,128]{1,0:T(1,128)}', space=vmem, size = 0x12000, scoped, tag = 'internal scratch']
  #allocation2 [shape = 'f32[128,128]{1,0:T(8,128)}', space=vmem, size = 0x10000, scoped, tag = 'scratch operand']
  %s0 = inlined_call_operand.vmem [shape: f32[16,7], index: 0, kind: input, shape index: {}]
  %s1 = inlined_call_operand.vmem [shape: f32[18,5], index: 1, kind: input, shape index: {}]
  %s2 = inlined_call_operand.vmem [shape: f32[18,32], index: 2, kind: input, shape index: {}]
  %s3 = inlined_call_operand.vmem [shape: f32[16,16], index: 3, kind: input, shape index: {}]
  %s4 = inlined_call_operand.vmem [shape: bf16[64,128], index: 4, kind: input, shape index: {}]
  %s5 = inlined_call_operand.vmem [shape: f32[7,384], index: 5, kind: input, shape index: {}]
  %s6 = inlined_call_operand.vmem [shape: f32[5,384], index: 6, kind: input, shape index: {}]
  %s7 = inlined_call_operand.vmem [shape: f32[32,384], index: 7, kind: input, shape index: {}]
  %s8 = inlined_call_operand.vmem [shape: f32[7,128], index: 8, kind: input, shape index: {}]
  %s9 = inlined_call_operand.vmem [shape: f32[1,128], index: 9, kind: input, shape index: {}]
  %s10 = inlined_call_operand.vmem [shape: f32[1,128], index: 10, kind: input, shape index: {}]
  %s11 = inlined_call_operand.vmem [shape: f32[1,128], index: 11, kind: input, shape index: {}]
  %s12 = inlined_call_operand.vmem [shape: f32[128,384], index: 12, kind: input, shape index: {}]
  %s13 = inlined_call_operand.vmem [shape: f32[128,384], index: 13, kind: input, shape index: {}]
  %s14 = inlined_call_operand.vmem [shape: f32[128,384], index: 14, kind: input, shape index: {}]
  %s15 = inlined_call_operand.vmem [shape: f32[128,128], index: 15, kind: input, shape index: {}]
  %s16 = inlined_call_operand.vmem [shape: f32[1,128], index: 16, kind: input, shape index: {}]
  %s17 = inlined_call_operand.vmem [shape: f32[1,128], index: 17, kind: input, shape index: {}]
  %s18 = inlined_call_operand.vmem [shape: f32[1,128], index: 18, kind: input, shape index: {}]
  %s19 = inlined_call_operand.vmem [shape: f32[128,384], index: 19, kind: input, shape index: {}]
  %s20 = inlined_call_operand.vmem [shape: f32[128,384], index: 20, kind: input, shape index: {}]
  %s21 = inlined_call_operand.vmem [shape: f32[128,384], index: 21, kind: input, shape index: {}]
  %s22 = inlined_call_operand.vmem [shape: f32[128,128], index: 22, kind: input, shape index: {}]
  %s23 = inlined_call_operand.vmem [shape: f32[1,128], index: 23, kind: input, shape index: {}]
  %s24 = inlined_call_operand.vmem [shape: f32[1,128], index: 24, kind: input, shape index: {}]
  %s25 = inlined_call_operand.vmem [shape: f32[1,128], index: 25, kind: input, shape index: {}]
  %s26 = inlined_call_operand.vmem [shape: f32[16,128], index: 26, kind: output, shape index: {0}]
  %s27 = inlined_call_operand.vmem [shape: f32[18,128], index: 27, kind: output, shape index: {1}]
  %s28 = inlined_call_operand.vmem [shape: f32[18,128], index: 28, kind: output, shape index: {2}]
  %29 = xla_tuple %s26, %s27, %s28
  %s30 = sld [smem:[#allocation0]]
  $region130: #{_lambda_.1} parent=0
    _
  %s32 = ssub.s32 1, %s30
  %s33 = scalar_select 0, %s32, %s30
  // Predicated region
  $region2: #{_lambda_.1} parent=0 // pred_check
    _
  $region3: #{_lambda_.1} parent=0 // pred_check_branch
    %35 = sbr.rel (0) target = $region5
  $region4: #{_lambda_.1} parent=0 // pred_region
    _
  $region5: #{_lambda_.1} parent=0 // pred_fallthru
    _
  // Predicated region
  $region6: #{_lambda_.1} parent=0 // pred_check
    _
  $region7: #{_lambda_.1} parent=0 // pred_check_branch
    %37 = sbr.rel (0) target = $region9
  $region8: #{_lambda_.1} parent=0 // pred_region
    _
  $region9: #{_lambda_.1} parent=0 // pred_fallthru
    _
  // Predicated region
  $region10: #{_lambda_.1} parent=0 // pred_check
    _
  $region11: #{_lambda_.1} parent=0 // pred_check_branch
    %39 = sbr.rel (0) target = $region13
  $region12: #{_lambda_.1} parent=0 // pred_region
    _
  $region13: #{_lambda_.1} parent=0 // pred_fallthru
    _
  // Predicated region
  $region14: #{_lambda_.1} parent=0 // pred_check
    _
  $region15: #{_lambda_.1} parent=0 // pred_check_branch
    %41 = sbr.rel (0) target = $region17
  $region16: #{_lambda_.1} parent=0 // pred_region
    _
  $region17: #{_lambda_.1} parent=0 // pred_fallthru
    _
  // Predicated region
  $region18: #{_lambda_.1} parent=0 // pred_check
    _
  $region19: #{_lambda_.1} parent=0 // pred_check_branch
    %43 = sbr.rel (0) target = $region21
  $region20: #{_lambda_.1} parent=0 // pred_region
    _
  $region21: #{_lambda_.1} parent=0 // pred_fallthru
    _
  // Predicated region
  $region22: #{_lambda_.1} parent=0 // pred_check
    _
  $region23: #{_lambda_.1} parent=0 // pred_check_branch
    %45 = sbr.rel (0) target = $region25
  $region24: #{_lambda_.1} parent=0 // pred_region
    _
  $region25: #{_lambda_.1} parent=0 // pred_fallthru
    _
  // Predicated region
  $region26: #{_lambda_.1} parent=0 // pred_check
    _
  $region27: #{_lambda_.1} parent=0 // pred_check_branch
    %47 = sbr.rel (0) target = $region29
  $region28: #{_lambda_.1} parent=0 // pred_region
    _
  $region29: #{_lambda_.1} parent=0 // pred_fallthru
    _
  // Predicated region
  $region30: #{_lambda_.1} parent=0 // pred_check
    _
  $region31: #{_lambda_.1} parent=0 // pred_check_branch
    %49 = sbr.rel (0) target = $region33
  $region32: #{_lambda_.1} parent=0 // pred_region
    _
  $region33: #{_lambda_.1} parent=0 // pred_fallthru
    _
  // Predicated region
  $region34: #{_lambda_.1} parent=0 // pred_check
    _
  $region35: #{_lambda_.1} parent=0 // pred_check_branch
    %51 = sbr.rel (0) target = $region37
  $region36: #{_lambda_.1} parent=0 // pred_region
    _
  $region37: #{_lambda_.1} parent=0 // pred_fallthru
    _
  // Predicated region
  $region38: #{_lambda_.1} parent=0 // pred_check
    _
  $region39: #{_lambda_.1} parent=0 // pred_check_branch
    %53 = sbr.rel (0) target = $region41
  $region40: #{_lambda_.1} parent=0 // pred_region
    _
  $region41: #{_lambda_.1} parent=0 // pred_fallthru
    _
  // Predicated region
  $region42: #{_lambda_.1} parent=0 // pred_check
    _
  $region43: #{_lambda_.1} parent=0 // pred_check_branch
    %55 = sbr.rel (0) target = $region45
  $region44: #{_lambda_.1} parent=0 // pred_region
    _
  $region45: #{_lambda_.1} parent=0 // pred_fallthru
    _
  // Predicated region
  $region46: #{_lambda_.1} parent=0 // pred_check
    _
  $region47: #{_lambda_.1} parent=0 // pred_check_branch
    %57 = sbr.rel (0) target = $region49
  $region48: #{_lambda_.1} parent=0 // pred_region
    _
  $region49: #{_lambda_.1} parent=0 // pred_fallthru
    _
  // Predicated region
  $region50: #{_lambda_.1} parent=0 // pred_check
    _
  $region51: #{_lambda_.1} parent=0 // pred_check_branch
    %59 = sbr.rel (0) target = $region53
  $region52: #{_lambda_.1} parent=0 // pred_region
    _
  $region53: #{_lambda_.1} parent=0 // pred_fallthru
    _
  // Predicated region
  $region54: #{_lambda_.1} parent=0 // pred_check
    _
  $region55: #{_lambda_.1} parent=0 // pred_check_branch
    %61 = sbr.rel (0) target = $region57
  $region56: #{_lambda_.1} parent=0 // pred_region
    _
  $region57: #{_lambda_.1} parent=0 // pred_fallthru
    _
  // Predicated region
  $region58: #{_lambda_.1} parent=0 // pred_check
    _
  $region59: #{_lambda_.1} parent=0 // pred_check_branch
    %63 = sbr.rel (0) target = $region61
  $region60: #{_lambda_.1} parent=0 // pred_region
    _
  $region61: #{_lambda_.1} parent=0 // pred_fallthru
    _
  // Predicated region
  $region62: #{_lambda_.1} parent=0 // pred_check
    _
  $region63: #{_lambda_.1} parent=0 // pred_check_branch
    %65 = sbr.rel (0) target = $region65
  $region64: #{_lambda_.1} parent=0 // pred_region
    _
  $region65: #{_lambda_.1} parent=0 // pred_fallthru
    _
  // Predicated region
  $region66: #{_lambda_.1} parent=0 // pred_check
    _
  $region67: #{_lambda_.1} parent=0 // pred_check_branch
    %67 = sbr.rel (0) target = $region69
  $region68: #{_lambda_.1} parent=0 // pred_region
    _
  $region69: #{_lambda_.1} parent=0 // pred_fallthru
    _
  // Predicated region
  $region70: #{_lambda_.1} parent=0 // pred_check
    _
  $region71: #{_lambda_.1} parent=0 // pred_check_branch
    %69 = sbr.rel (0) target = $region73
  $region72: #{_lambda_.1} parent=0 // pred_region
    _
  $region73: #{_lambda_.1} parent=0 // pred_fallthru
    _
  // Predicated region
  $region74: #{_lambda_.1} parent=0 // pred_check
    _
  $region75: #{_lambda_.1} parent=0 // pred_check_branch
    %71 = sbr.rel (0) target = $region77
  $region76: #{_lambda_.1} parent=0 // pred_region
    _
  $region77: #{_lambda_.1} parent=0 // pred_fallthru
    _
  // Predicated region
  $region78: #{_lambda_.1} parent=0 // pred_check
    _
  $region79: #{_lambda_.1} parent=0 // pred_check_branch
    %73 = sbr.rel (0) target = $region81
  $region80: #{_lambda_.1} parent=0 // pred_region
    _
  $region81: #{_lambda_.1} parent=0 // pred_fallthru
    _
  // Predicated region
  $region82: #{_lambda_.1} parent=0 // pred_check
    _
  $region83: #{_lambda_.1} parent=0 // pred_check_branch
    %75 = sbr.rel (0) target = $region85
  $region84: #{_lambda_.1} parent=0 // pred_region
    _
  $region85: #{_lambda_.1} parent=0 // pred_fallthru
    _
  // Predicated region
  $region86: #{_lambda_.1} parent=0 // pred_check
    _
  $region87: #{_lambda_.1} parent=0 // pred_check_branch
    %77 = sbr.rel (0) target = $region89
  $region88: #{_lambda_.1} parent=0 // pred_region
    _
  $region89: #{_lambda_.1} parent=0 // pred_fallthru
    _
  // Predicated region
  $region90: #{_lambda_.1} parent=0 // pred_check
    _
  $region91: #{_lambda_.1} parent=0 // pred_check_branch
    %79 = sbr.rel (0) target = $region93
  $region92: #{_lambda_.1} parent=0 // pred_region
    _
  $region93: #{_lambda_.1} parent=0 // pred_fallthru
    _
  // Predicated region
  $region94: #{_lambda_.1} parent=0 // pred_check
    _
  $region95: #{_lambda_.1} parent=0 // pred_check_branch
    %81 = sbr.rel (0) target = $region97
  $region96: #{_lambda_.1} parent=0 // pred_region
    _
  $region97: #{_lambda_.1} parent=0 // pred_fallthru
    _
  // Predicated region
  $region98: #{_lambda_.1} parent=0 // pred_check
    _
  $region99: #{_lambda_.1} parent=0 // pred_check_branch
    %83 = sbr.rel (0) target = $region101
  $region100: #{_lambda_.1} parent=0 // pred_region
    _
  $region101: #{_lambda_.1} parent=0 // pred_fallthru
    _
  // Predicated region
  $region102: #{_lambda_.1} parent=0 // pred_check
    _
  $region103: #{_lambda_.1} parent=0 // pred_check_branch
    %85 = sbr.rel (0) target = $region105
  $region104: #{_lambda_.1} parent=0 // pred_region
    _
  $region105: #{_lambda_.1} parent=0 // pred_fallthru
    _
  %86 = vst [vmem:[#allocation2] sm:$0xff] 0.0
  %87 = vst [vmem:[#allocation2 + $0x8] sm:$0xff] 0.0
  %88 = vst [vmem:[#allocation2 + $0x10] sm:$0xff] 0.0
  %89 = vst [vmem:[#allocation2 + $0x18] sm:$0xff] 0.0
  %90 = vst [vmem:[#allocation2 + $0x20] sm:$0xff] 0.0
  %91 = vst [vmem:[#allocation2 + $0x28] sm:$0xff] 0.0
  %92 = vst [vmem:[#allocation2 + $0x30] sm:$0xff] 0.0
  %93 = vst [vmem:[#allocation2 + $0x38] sm:$0xff] 0.0
  %94 = vst [vmem:[#allocation2 + $0x40] sm:$0xff] 0.0
  %95 = vst [vmem:[#allocation2 + $0x48] sm:$0xff] 0.0
  %96 = vst [vmem:[#allocation2 + $0x50] sm:$0xff] 0.0
  %97 = vst [vmem:[#allocation2 + $0x58] sm:$0xff] 0.0
  %98 = vst [vmem:[#allocation2 + $0x60] sm:$0xff] 0.0
  %99 = vst [vmem:[#allocation2 + $0x68] sm:$0xff] 0.0
  %100 = vst [vmem:[#allocation2 + $0x70] sm:$0xff] 0.0
  %101 = vst [vmem:[#allocation2 + $0x78] sm:$0xff] 0.0
  %v102 = vld [vmem:[%s3] sm:$0xff]
  %v103 = vld [vmem:[%s3 + $0x8] sm:$0xff]
  %vm104 = vcmp.gt.f32.partialorder %v102, 0.0
  %vm105 = vcmp.gt.f32.partialorder %v103, 0.0
  %v106 = vsel %vm104, 0.0, -1e+30
  %v107 = vsel %vm105, 0.0, -1e+30
  %vm108 = vcmask 130048
  %v109 = vsel %vm108, %v102, 0.0
  %110 = vadd.xlane.f32.xlu0 %v109
  %v111 = vpop.xlane.xlu0 %110
  %v112 = vsel %vm108, %v103, 0.0
  %113 = vadd.xlane.f32.xlu0 %v112
  %v114 = vpop.xlane.xlu0 %113
  %vm115 = vcmp.gt.f32.partialorder %v111, 0.0
  %vm116 = vcmp.gt.f32.partialorder %v114, 0.0
  %v117 = vlaneseq
  %v118 = vshrl.u32 %v117, 7
  %v119 = vsub.s32 0, %v118
  %v120 = vrot.slane %v106, %v119
  %122 = vbcast.lane.b32.xlu0 %v120, 256
  %v123 = vpop.permute.xlu0 %122
  %v124 = vlaneseq
  %v125 = vshrl.u32 %v124, 7
  %v126 = vsub.s32 1, %v125
  %v127 = vrot.slane %v106, %v126
  %129 = vbcast.lane.b32.xlu0 %v127, 256
  %v130 = vpop.permute.xlu0 %129
  %v131 = vlaneseq
  %v132 = vshrl.u32 %v131, 7
  %v133 = vsub.s32 2, %v132
  %v134 = vrot.slane %v106, %v133
  %136 = vbcast.lane.b32.xlu0 %v134, 256
  %v137 = vpop.permute.xlu0 %136
  %v138 = vlaneseq
  %v139 = vshrl.u32 %v138, 7
  %v140 = vsub.s32 3, %v139
  %v141 = vrot.slane %v106, %v140
  %143 = vbcast.lane.b32.xlu0 %v141, 256
  %v144 = vpop.permute.xlu0 %143
  %v145 = vlaneseq
  %v146 = vshrl.u32 %v145, 7
  %v147 = vsub.s32 4, %v146
  %v148 = vrot.slane %v106, %v147
  %150 = vbcast.lane.b32.xlu0 %v148, 256
  %v151 = vpop.permute.xlu0 %150
  %v152 = vlaneseq
  %v153 = vshrl.u32 %v152, 7
  %v154 = vsub.s32 5, %v153
  %v155 = vrot.slane %v106, %v154
  %157 = vbcast.lane.b32.xlu0 %v155, 256
  %v158 = vpop.permute.xlu0 %157
  %v159 = vlaneseq
  %v160 = vshrl.u32 %v159, 7
  %v161 = vsub.s32 6, %v160
  %v162 = vrot.slane %v106, %v161
  %164 = vbcast.lane.b32.xlu0 %v162, 256
  %v165 = vpop.permute.xlu0 %164
  %v166 = vlaneseq
  %v167 = vshrl.u32 %v166, 7
  %v168 = vsub.s32 7, %v167
  %v169 = vrot.slane %v106, %v168
  %171 = vbcast.lane.b32.xlu0 %v169, 256
  %v172 = vpop.permute.xlu0 %171
  %v173 = vlaneseq
  %v174 = vshrl.u32 %v173, 7
  %v175 = vsub.s32 0, %v174
  %v176 = vrot.slane %v107, %v175
  %178 = vbcast.lane.b32.xlu0 %v176, 256
  %v179 = vpop.permute.xlu0 %178
  %v180 = vlaneseq
  %v181 = vshrl.u32 %v180, 7
  %v182 = vsub.s32 1, %v181
  %v183 = vrot.slane %v107, %v182
  %185 = vbcast.lane.b32.xlu0 %v183, 256
  %v186 = vpop.permute.xlu0 %185
  %v187 = vlaneseq
  %v188 = vshrl.u32 %v187, 7
  %v189 = vsub.s32 2, %v188
  %v190 = vrot.slane %v107, %v189
  %192 = vbcast.lane.b32.xlu0 %v190, 256
  %v193 = vpop.permute.xlu0 %192
  %v194 = vlaneseq
  %v195 = vshrl.u32 %v194, 7
  %v196 = vsub.s32 3, %v195
  %v197 = vrot.slane %v107, %v196
  %199 = vbcast.lane.b32.xlu0 %v197, 256
  %v200 = vpop.permute.xlu0 %199
  %v201 = vlaneseq
  %v202 = vshrl.u32 %v201, 7
  %v203 = vsub.s32 4, %v202
  %v204 = vrot.slane %v107, %v203
  %206 = vbcast.lane.b32.xlu0 %v204, 256
  %v207 = vpop.permute.xlu0 %206
  %v208 = vlaneseq
  %v209 = vshrl.u32 %v208, 7
  %v210 = vsub.s32 5, %v209
  %v211 = vrot.slane %v107, %v210
  %213 = vbcast.lane.b32.xlu0 %v211, 256
  %v214 = vpop.permute.xlu0 %213
  %v215 = vlaneseq
  %v216 = vshrl.u32 %v215, 7
  %v217 = vsub.s32 6, %v216
  %v218 = vrot.slane %v107, %v217
  %220 = vbcast.lane.b32.xlu0 %v218, 256
  %v221 = vpop.permute.xlu0 %220
  %v222 = vlaneseq
  %v223 = vshrl.u32 %v222, 7
  %v224 = vsub.s32 7, %v223
  %v225 = vrot.slane %v107, %v224
  %227 = vbcast.lane.b32.xlu0 %v225, 256
  %v228 = vpop.permute.xlu0 %227
  %s230 = sor.u32 256, 8
  %231 = vbcast.lane.b32.xlu0 %v120, %s230
  %v232 = vpop.permute.xlu0 %231
  %s234 = sor.u32 256, 8
  %235 = vbcast.lane.b32.xlu0 %v127, %s234
  %v236 = vpop.permute.xlu0 %235
  %s238 = sor.u32 256, 8
  %239 = vbcast.lane.b32.xlu0 %v134, %s238
  %v240 = vpop.permute.xlu0 %239
  %s242 = sor.u32 256, 8
  %243 = vbcast.lane.b32.xlu0 %v141, %s242
  %v244 = vpop.permute.xlu0 %243
  %s246 = sor.u32 256, 8
  %247 = vbcast.lane.b32.xlu0 %v148, %s246
  %v248 = vpop.permute.xlu0 %247
  %s250 = sor.u32 256, 8
  %251 = vbcast.lane.b32.xlu0 %v155, %s250
  %v252 = vpop.permute.xlu0 %251
  %s254 = sor.u32 256, 8
  %255 = vbcast.lane.b32.xlu0 %v162, %s254
  %v256 = vpop.permute.xlu0 %255
  %s258 = sor.u32 256, 8
  %259 = vbcast.lane.b32.xlu0 %v169, %s258
  %v260 = vpop.permute.xlu0 %259
  %s262 = sor.u32 256, 8
  %263 = vbcast.lane.b32.xlu0 %v176, %s262
  %v264 = vpop.permute.xlu0 %263
  %s266 = sor.u32 256, 8
  %267 = vbcast.lane.b32.xlu0 %v183, %s266
  %v268 = vpop.permute.xlu0 %267
  %s270 = sor.u32 256, 8
  %271 = vbcast.lane.b32.xlu0 %v190, %s270
  %v272 = vpop.permute.xlu0 %271
  %s274 = sor.u32 256, 8
  %275 = vbcast.lane.b32.xlu0 %v197, %s274
  %v276 = vpop.permute.xlu0 %275
  %s278 = sor.u32 256, 8
  %279 = vbcast.lane.b32.xlu0 %v204, %s278
  %v280 = vpop.permute.xlu0 %279
  %s282 = sor.u32 256, 8
  %283 = vbcast.lane.b32.xlu0 %v211, %s282
  %v284 = vpop.permute.xlu0 %283
  %s286 = sor.u32 256, 8
  %287 = vbcast.lane.b32.xlu0 %v218, %s286
  %v288 = vpop.permute.xlu0 %287
  %s290 = sor.u32 256, 8
  %291 = vbcast.lane.b32.xlu0 %v225, %s290
  %v292 = vpop.permute.xlu0 %291
  %v293 = vld [vmem:[%s4] sm:$0xf]
  %v294 = vld [vmem:[%s4 + $0x4] sm:$0xf]
  %v295 = vld [vmem:[%s4 + $0x8] sm:$0xf]
  %v296 = vld [vmem:[%s4 + $0xc] sm:$0xf]
  %v297 = vld [vmem:[%s4 + $0x10] sm:$0xf]
  %v298 = vld [vmem:[%s4 + $0x14] sm:$0xf]
  %v299 = vld [vmem:[%s4 + $0x18] sm:$0xf]
  %v300 = vld [vmem:[%s4 + $0x1c] sm:$0xf]
  %v301 = vunpack.c.l.bf16 %v293
  %v302 = vunpack.c.l.bf16 %v294
  %v303 = vunpack.c.l.bf16 %v295
  %v304 = vunpack.c.l.bf16 %v296
  %v305 = vunpack.c.l.bf16 %v297
  %v306 = vunpack.c.l.bf16 %v298
  %v307 = vunpack.c.l.bf16 %v299
  %v308 = vunpack.c.l.bf16 %v300
  %v309 = vld [vmem:[%s0] sm:$0xff]
  %v310 = vld [vmem:[%s0 + $0x8] sm:$0xff]
  %v311 = vld [vmem:[%s1] sm:$0xff]
  %v312 = vld [vmem:[%s1 + $0x8] sm:$0xff]
  %v313 = vld [vmem:[%s1 + $0x10] sm:$0x3]
  %v314 = vld [vmem:[%s2] sm:$0xff]
  %v315 = vld [vmem:[%s2 + $0x8] sm:$0xff]
  %v316 = vld [vmem:[%s2 + $0x10] sm:$0x3]
  %v317 = vld [vmem:[%s5] sm:$0x7f]
  %v318 = vld [vmem:[%s5 + $0x8] sm:$0x7f]
  %v319 = vld [vmem:[%s5 + $0x10] sm:$0x7f]
  %vm320 = vcmask 56320
  %v322 = vsel %vm320, %v309, 0
  %v325 = vsel %vm320, %v310, 0
  %vm327 = vcmask 1046528
  %v329 = vsel %vm327, %v317, 0
  %v332 = vsel %vm327, %v318, 0
  %v335 = vsel %vm327, %v319, 0
  %337 = vmatprep.subr.mxu0 %v332
  %338 = vmatpush1.msra.mxu0 %v329
  %339 = vmatprep.subr.mxu0 0.0
  %340 = vmatpush1.msra.mxu0 0.0
  %341 = vmatprep.subr.mxu0 0.0
  %342 = vmatpush1.msra.mxu0 0.0
  %343 = vmatprep.subr.mxu0 0.0
  %344 = vmatpush1.msra.mxu0 0.0
  %345 = vmatprep.subr.mxu0 0.0
  %346 = vmatpush1.msra.mxu0 0.0
  %347 = vmatprep.subr.mxu0 0.0
  %348 = vmatpush1.msra.mxu0 0.0
  %349 = vmatprep.subr.mxu0 0.0
  %350 = vmatpush1.msra.mxu0 0.0
  %351 = vmatprep.subr.mxu0 0.0
  %352 = vmatpush1.msra.mxu0 0.0
  %353 = vmatprep.subr.mxu0 0.0
  %354 = vmatpush1.msra.mxu0 0.0
  %355 = vmatprep.subr.mxu0 0.0
  %356 = vmatpush1.msra.mxu0 0.0
  %357 = vmatprep.subr.mxu0 0.0
  %358 = vmatpush1.msra.mxu0 0.0
  %359 = vmatprep.subr.mxu0 0.0
  %360 = vmatpush1.msra.mxu0 0.0
  %361 = vmatprep.subr.mxu0 0.0
  %362 = vmatpush1.msra.mxu0 0.0
  %363 = vmatprep.subr.mxu0 0.0
  %364 = vmatpush1.msra.mxu0 0.0
  %365 = vmatprep.subr.mxu0 0.0
  %366 = vmatpush1.msra.mxu0 0.0
  %367 = vmatprep.subr.mxu0 0.0
  %368 = vmatpush1.msra.mxu0 0.0
  %369 = vmatprep.subr.mxu0 0.0
  %370 = vmatpush1.msra.mxu0 0.0
  %371 = vmatprep.subr.mxu0 0.0
  %372 = vmatpush1.msra.mxu0 0.0
  %373 = vmatprep.subr.mxu0 0.0
  %374 = vmatpush1.msra.mxu0 0.0
  %375 = vmatprep.subr.mxu0 0.0
  %376 = vmatpush1.msra.mxu0 0.0
  %377 = vmatprep.subr.mxu0 0.0
  %378 = vmatpush1.msra.mxu0 0.0
  %379 = vmatprep.subr.mxu0 0.0
  %380 = vmatpush1.msra.mxu0 0.0
  %381 = vmatprep.subr.mxu0 0.0
  %382 = vmatpush1.msra.mxu0 0.0
  %383 = vmatprep.subr.mxu0 0.0
  %384 = vmatpush1.msra.mxu0 0.0
  %385 = vmatprep.subr.mxu0 0.0
  %386 = vmatpush1.msra.mxu0 0.0
  %387 = vmatprep.subr.mxu0 0.0
  %388 = vmatpush1.msra.mxu0 0.0
  %389 = vmatprep.subr.mxu0 0.0
  %390 = vmatpush1.msra.mxu0 0.0
  %391 = vmatprep.subr.mxu0 0.0
  %392 = vmatpush1.msra.mxu0 0.0
  %393 = vmatprep.subr.mxu0 0.0
  %394 = vmatpush1.msra.mxu0 0.0
  %395 = vmatprep.subr.mxu0 0.0
  %396 = vmatpush1.msra.mxu0 0.0
  %397 = vmatprep.subr.mxu0 0.0
  %398 = vmatpush1.msra.mxu0 0.0
  %399 = vmatprep.subr.mxu0 0.0
  %400 = vmatpush1.msra.mxu0 0.0
  %401 = vmatprep.mubr.f32.mxu0 0.0
  %402 = vmatmul.mubr.f32.gmra.mrb[0].mxu0 %v322
  %v403 = vpop.f32.mrb[0].mxu0
  %v404 = vadd.f32 0.0, %v403
  %v405 = vpop.f32.mrb[0].mxu0
  %v406 = vadd.f32 0.0, %v405
  %407 = vmatprep.mubr.f32.mxu0 0.0
  %408 = vmatmul.mubr.f32.gmra.mrb[0].mxu0 %v325
  %v409 = vpop.f32.mrb[0].mxu0
  %v410 = vadd.f32 0.0, %v409
  %v411 = vpop.f32.mrb[0].mxu0
  %v412 = vadd.f32 0.0, %v411
  %413 = vdwg.mxu0
  %414 = vmatprep.subr.mxu0 0.0
  %415 = vmatpush1.msra.mxu0 %v335
  %416 = vmatprep.subr.mxu0 0.0
  %417 = vmatpush1.msra.mxu0 0.0
  %418 = vmatprep.subr.mxu0 0.0
  %419 = vmatpush1.msra.mxu0 0.0
  %420 = vmatprep.subr.mxu0 0.0
  %421 = vmatpush1.msra.mxu0 0.0
  %422 = vmatprep.subr.mxu0 0.0
  %423 = vmatpush1.msra.mxu0 0.0
  %424 = vmatprep.subr.mxu0 0.0
  %425 = vmatpush1.msra.mxu0 0.0
  %426 = vmatprep.subr.mxu0 0.0
  %427 = vmatpush1.msra.mxu0 0.0
  %428 = vmatprep.subr.mxu0 0.0
  %429 = vmatpush1.msra.mxu0 0.0
  %430 = vmatprep.subr.mxu0 0.0
  %431 = vmatpush1.msra.mxu0 0.0
  %432 = vmatprep.subr.mxu0 0.0
  %433 = vmatpush1.msra.mxu0 0.0
  %434 = vmatprep.subr.mxu0 0.0
  %435 = vmatpush1.msra.mxu0 0.0
  %436 = vmatprep.subr.mxu0 0.0
  %437 = vmatpush1.msra.mxu0 0.0
  %438 = vmatprep.subr.mxu0 0.0
  %439 = vmatpush1.msra.mxu0 0.0
  %440 = vmatprep.subr.mxu0 0.0
  %441 = vmatpush1.msra.mxu0 0.0
  %442 = vmatprep.subr.mxu0 0.0
  %443 = vmatpush1.msra.mxu0 0.0
  %444 = vmatprep.subr.mxu0 0.0
  %445 = vmatpush1.msra.mxu0 0.0
  %446 = vmatprep.subr.mxu0 0.0
  %447 = vmatpush1.msra.mxu0 0.0
  %448 = vmatprep.subr.mxu0 0.0
  %449 = vmatpush1.msra.mxu0 0.0
  %450 = vmatprep.subr.mxu0 0.0
  %451 = vmatpush1.msra.mxu0 0.0
  %452 = vmatprep.subr.mxu0 0.0
  %453 = vmatpush1.msra.mxu0 0.0
  %454 = vmatprep.subr.mxu0 0.0
  %455 = vmatpush1.msra.mxu0 0.0
  %456 = vmatprep.subr.mxu0 0.0
  %457 = vmatpush1.msra.mxu0 0.0
  %458 = vmatprep.subr.mxu0 0.0
  %459 = vmatpush1.msra.mxu0 0.0
  %460 = vmatprep.subr.mxu0 0.0
  %461 = vmatpush1.msra.mxu0 0.0
  %462 = vmatprep.subr.mxu0 0.0
  %463 = vmatpush1.msra.mxu0 0.0
  %464 = vmatprep.subr.mxu0 0.0
  %465 = vmatpush1.msra.mxu0 0.0
  %466 = vmatprep.subr.mxu0 0.0
  %467 = vmatpush1.msra.mxu0 0.0
  %468 = vmatprep.subr.mxu0 0.0
  %469 = vmatpush1.msra.mxu0 0.0
  %470 = vmatprep.subr.mxu0 0.0
  %471 = vmatpush1.msra.mxu0 0.0
  %472 = vmatprep.subr.mxu0 0.0
  %473 = vmatpush1.msra.mxu0 0.0
  %474 = vmatprep.subr.mxu0 0.0
  %475 = vmatpush1.msra.mxu0 0.0
  %476 = vmatprep.subr.mxu0 0.0
  %477 = vmatpush1.msra.mxu0 0.0
  %478 = vmatprep.mubr.f32.mxu0 0.0
  %479 = vmatmul.mubr.f32.gmra.mrb[0].mxu0 %v322
  %v480 = vpop.f32.mrb[0].mxu0
  %v481 = vadd.f32 0.0, %v480
  %v482 = vpop.f32.mrb[0].mxu0
  %483 = vmatprep.mubr.f32.mxu0 0.0
  %484 = vmatmul.mubr.f32.gmra.mrb[0].mxu0 %v325
  %v485 = vpop.f32.mrb[0].mxu0
  %v486 = vadd.f32 0.0, %v485
  %v487 = vpop.f32.mrb[0].mxu0
  %488 = vdwg.mxu0
  %v489 = vld [vmem:[%s6] sm:$0x1f]
  %v490 = vld [vmem:[%s6 + $0x8] sm:$0x1f]
  %v491 = vld [vmem:[%s6 + $0x10] sm:$0x1f]
  %vm492 = vcmask 39936
  %v494 = vsel %vm492, %v311, 0
  %v497 = vsel %vm492, %v312, 0
  %v500 = vsel %vm492, %v313, 0
  %vm502 = vcmask 1044480
  %v504 = vsel %vm502, %v489, 0
  %v507 = vsel %vm502, %v490, 0
  %v510 = vsel %vm502, %v491, 0
  %512 = vmatprep.subr.mxu0 %v507
  %513 = vmatpush1.msra.mxu0 %v504
  %514 = vmatprep.subr.mxu0 0.0
  %515 = vmatpush1.msra.mxu0 0.0
  %516 = vmatprep.subr.mxu0 0.0
  %517 = vmatpush1.msra.mxu0 0.0
  %518 = vmatprep.subr.mxu0 0.0
  %519 = vmatpush1.msra.mxu0 0.0
  %520 = vmatprep.subr.mxu0 0.0
  %521 = vmatpush1.msra.mxu0 0.0
  %522 = vmatprep.subr.mxu0 0.0
  %523 = vmatpush1.msra.mxu0 0.0
  %524 = vmatprep.subr.mxu0 0.0
  %525 = vmatpush1.msra.mxu0 0.0
  %526 = vmatprep.subr.mxu0 0.0
  %527 = vmatpush1.msra.mxu0 0.0
  %528 = vmatprep.subr.mxu0 0.0
  %529 = vmatpush1.msra.mxu0 0.0
  %530 = vmatprep.subr.mxu0 0.0
  %531 = vmatpush1.msra.mxu0 0.0
  %532 = vmatprep.subr.mxu0 0.0
  %533 = vmatpush1.msra.mxu0 0.0
  %534 = vmatprep.subr.mxu0 0.0
  %535 = vmatpush1.msra.mxu0 0.0
  %536 = vmatprep.subr.mxu0 0.0
  %537 = vmatpush1.msra.mxu0 0.0
  %538 = vmatprep.subr.mxu0 0.0
  %539 = vmatpush1.msra.mxu0 0.0
  %540 = vmatprep.subr.mxu0 0.0
  %541 = vmatpush1.msra.mxu0 0.0
  %542 = vmatprep.subr.mxu0 0.0
  %543 = vmatpush1.msra.mxu0 0.0
  %544 = vmatprep.subr.mxu0 0.0
  %545 = vmatpush1.msra.mxu0 0.0
  %546 = vmatprep.subr.mxu0 0.0
  %547 = vmatpush1.msra.mxu0 0.0
  %548 = vmatprep.subr.mxu0 0.0
  %549 = vmatpush1.msra.mxu0 0.0
  %550 = vmatprep.subr.mxu0 0.0
  %551 = vmatpush1.msra.mxu0 0.0
  %552 = vmatprep.subr.mxu0 0.0
  %553 = vmatpush1.msra.mxu0 0.0
  %554 = vmatprep.subr.mxu0 0.0
  %555 = vmatpush1.msra.mxu0 0.0
  %556 = vmatprep.subr.mxu0 0.0
  %557 = vmatpush1.msra.mxu0 0.0
  %558 = vmatprep.subr.mxu0 0.0
  %559 = vmatpush1.msra.mxu0 0.0
  %560 = vmatprep.subr.mxu0 0.0
  %561 = vmatpush1.msra.mxu0 0.0
  %562 = vmatprep.subr.mxu0 0.0
  %563 = vmatpush1.msra.mxu0 0.0
  %564 = vmatprep.subr.mxu0 0.0
  %565 = vmatpush1.msra.mxu0 0.0
  %566 = vmatprep.subr.mxu0 0.0
  %567 = vmatpush1.msra.mxu0 0.0
  %568 = vmatprep.subr.mxu0 0.0
  %569 = vmatpush1.msra.mxu0 0.0
  %570 = vmatprep.subr.mxu0 0.0
  %571 = vmatpush1.msra.mxu0 0.0
  %572 = vmatprep.subr.mxu0 0.0
  %573 = vmatpush1.msra.mxu0 0.0
  %574 = vmatprep.subr.mxu0 0.0
  %575 = vmatpush1.msra.mxu0 0.0
  %576 = vmatprep.mubr.f32.mxu0 0.0
  %577 = vmatmul.mubr.f32.gmra.mrb[0].mxu0 %v494
  %v578 = vpop.f32.mrb[0].mxu0
  %v579 = vadd.f32 0.0, %v578
  %v580 = vpop.f32.mrb[0].mxu0
  %v581 = vadd.f32 0.0, %v580
  %582 = vmatprep.mubr.f32.mxu0 0.0
  %583 = vmatmul.mubr.f32.gmra.mrb[0].mxu0 %v497
  %v584 = vpop.f32.mrb[0].mxu0
  %v585 = vadd.f32 0.0, %v584
  %v586 = vpop.f32.mrb[0].mxu0
  %v587 = vadd.f32 0.0, %v586
  %588 = vmatprep.mubr.f32.mxu0 0.0
  %589 = vmatmul.mubr.f32.gmra.mrb[0].mxu0 %v500
  %v590 = vpop.f32.mrb[0].mxu0
  %v591 = vadd.f32 0.0, %v590
  %v592 = vpop.f32.mrb[0].mxu0
  %v593 = vadd.f32 0.0, %v592
  %594 = vdwg.mxu0
  %595 = vmatprep.subr.mxu0 0.0
  %596 = vmatpush1.msra.mxu0 %v510
  %597 = vmatprep.subr.mxu0 0.0
  %598 = vmatpush1.msra.mxu0 0.0
  %599 = vmatprep.subr.mxu0 0.0
  %600 = vmatpush1.msra.mxu0 0.0
  %601 = vmatprep.subr.mxu0 0.0
  %602 = vmatpush1.msra.mxu0 0.0
  %603 = vmatprep.subr.mxu0 0.0
  %604 = vmatpush1.msra.mxu0 0.0
  %605 = vmatprep.subr.mxu0 0.0
  %606 = vmatpush1.msra.mxu0 0.0
  %607 = vmatprep.subr.mxu0 0.0
  %608 = vmatpush1.msra.mxu0 0.0
  %609 = vmatprep.subr.mxu0 0.0
  %610 = vmatpush1.msra.mxu0 0.0
  %611 = vmatprep.subr.mxu0 0.0
  %612 = vmatpush1.msra.mxu0 0.0
  %613 = vmatprep.subr.mxu0 0.0
  %614 = vmatpush1.msra.mxu0 0.0
  %615 = vmatprep.subr.mxu0 0.0
  %616 = vmatpush1.msra.mxu0 0.0
  %617 = vmatprep.subr.mxu0 0.0
  %618 = vmatpush1.msra.mxu0 0.0
  %619 = vmatprep.subr.mxu0 0.0
  %620 = vmatpush1.msra.mxu0 0.0
  %621 = vmatprep.subr.mxu0 0.0
  %622 = vmatpush1.msra.mxu0 0.0
  %623 = vmatprep.subr.mxu0 0.0
  %624 = vmatpush1.msra.mxu0 0.0
  %625 = vmatprep.subr.mxu0 0.0
  %626 = vmatpush1.msra.mxu0 0.0
  %627 = vmatprep.subr.mxu0 0.0
  %628 = vmatpush1.msra.mxu0 0.0
  %629 = vmatprep.subr.mxu0 0.0
  %630 = vmatpush1.msra.mxu0 0.0
  %631 = vmatprep.subr.mxu0 0.0
  %632 = vmatpush1.msra.mxu0 0.0
  %633 = vmatprep.subr.mxu0 0.0
  %634 = vmatpush1.msra.mxu0 0.0
  %635 = vmatprep.subr.mxu0 0.0
  %636 = vmatpush1.msra.mxu0 0.0
  %637 = vmatprep.subr.mxu0 0.0
  %638 = vmatpush1.msra.mxu0 0.0
  %639 = vmatprep.subr.mxu0 0.0
  %640 = vmatpush1.msra.mxu0 0.0
  %641 = vmatprep.subr.mxu0 0.0
  %642 = vmatpush1.msra.mxu0 0.0
  %643 = vmatprep.subr.mxu0 0.0
  %644 = vmatpush1.msra.mxu0 0.0
  %645 = vmatprep.subr.mxu0 0.0
  %646 = vmatpush1.msra.mxu0 0.0
  %647 = vmatprep.subr.mxu0 0.0
  %648 = vmatpush1.msra.mxu0 0.0
  %649 = vmatprep.subr.mxu0 0.0
  %650 = vmatpush1.msra.mxu0 0.0
  %651 = vmatprep.subr.mxu0 0.0
  %652 = vmatpush1.msra.mxu0 0.0
  %653 = vmatprep.subr.mxu0 0.0
  %654 = vmatpush1.msra.mxu0 0.0
  %655 = vmatprep.subr.mxu0 0.0
  %656 = vmatpush1.msra.mxu0 0.0
  %657 = vmatprep.subr.mxu0 0.0
  %658 = vmatpush1.msra.mxu0 0.0
  %659 = vmatprep.mubr.f32.mxu0 0.0
  %660 = vmatmul.mubr.f32.gmra.mrb[0].mxu0 %v494
  %v661 = vpop.f32.mrb[0].mxu0
  %v662 = vadd.f32 0.0, %v661
  %v663 = vpop.f32.mrb[0].mxu0
  %664 = vmatprep.mubr.f32.mxu0 0.0
  %665 = vmatmul.mubr.f32.gmra.mrb[0].mxu0 %v497
  %v666 = vpop.f32.mrb[0].mxu0
  %v667 = vadd.f32 0.0, %v666
  %v668 = vpop.f32.mrb[0].mxu0
  %669 = vmatprep.mubr.f32.mxu0 0.0
  %670 = vmatmul.mubr.f32.gmra.mrb[0].mxu0 %v500
  %v671 = vpop.f32.mrb[0].mxu0
  %v672 = vadd.f32 0.0, %v671
  %v673 = vpop.f32.mrb[0].mxu0
  %674 = vdwg.mxu0
  %v675 = vld [vmem:[%s7] sm:$0xff]
  %v676 = vld [vmem:[%s7 + $0x8] sm:$0xff]
  %v677 = vld [vmem:[%s7 + $0x10] sm:$0xff]
  %v678 = vld [vmem:[%s7 + $0x18] sm:$0xff]
  %v679 = vld [vmem:[%s7 + $0x20] sm:$0xff]
  %v680 = vld [vmem:[%s7 + $0x28] sm:$0xff]
  %v681 = vld [vmem:[%s7 + $0x30] sm:$0xff]
  %v682 = vld [vmem:[%s7 + $0x38] sm:$0xff]
  %v683 = vld [vmem:[%s7 + $0x40] sm:$0xff]
  %v684 = vld [vmem:[%s7 + $0x48] sm:$0xff]
  %v685 = vld [vmem:[%s7 + $0x50] sm:$0xff]
  %v686 = vld [vmem:[%s7 + $0x58] sm:$0xff]
  %vm687 = vcmask 261120
  %v689 = vsel %vm687, %v314, 0
  %v692 = vsel %vm687, %v315, 0
  %v695 = vsel %vm687, %v316, 0
  %697 = vmatprep.subr.mxu0 %v676
  %698 = vmatpush1.msra.mxu0 %v675
  %699 = vmatprep.subr.mxu0 %v679
  %700 = vmatpush1.msra.mxu0 %v678
  %701 = vmatprep.subr.mxu0 %v682
  %702 = vmatpush1.msra.mxu0 %v681
  %703 = vmatprep.subr.mxu0 %v685
  %704 = vmatpush1.msra.mxu0 %v684
  %705 = vmatprep.subr.mxu0 0.0
  %706 = vmatpush1.msra.mxu0 0.0
  %707 = vmatprep.subr.mxu0 0.0
  %708 = vmatpush1.msra.mxu0 0.0
  %709 = vmatprep.subr.mxu0 0.0
  %710 = vmatpush1.msra.mxu0 0.0
  %711 = vmatprep.subr.mxu0 0.0
  %712 = vmatpush1.msra.mxu0 0.0
  %713 = vmatprep.subr.mxu0 0.0
  %714 = vmatpush1.msra.mxu0 0.0
  %715 = vmatprep.subr.mxu0 0.0
  %716 = vmatpush1.msra.mxu0 0.0
  %717 = vmatprep.subr.mxu0 0.0
  %718 = vmatpush1.msra.mxu0 0.0
  %719 = vmatprep.subr.mxu0 0.0
  %720 = vmatpush1.msra.mxu0 0.0
  %721 = vmatprep.subr.mxu0 0.0
  %722 = vmatpush1.msra.mxu0 0.0
  %723 = vmatprep.subr.mxu0 0.0
  %724 = vmatpush1.msra.mxu0 0.0
  %725 = vmatprep.subr.mxu0 0.0
  %726 = vmatpush1.msra.mxu0 0.0
  %727 = vmatprep.subr.mxu0 0.0
  %728 = vmatpush1.msra.mxu0 0.0
  %729 = vmatprep.subr.mxu0 0.0
  %730 = vmatpush1.msra.mxu0 0.0
  %731 = vmatprep.subr.mxu0 0.0
  %732 = vmatpush1.msra.mxu0 0.0
  %733 = vmatprep.subr.mxu0 0.0
  %734 = vmatpush1.msra.mxu0 0.0
  %735 = vmatprep.subr.mxu0 0.0
  %736 = vmatpush1.msra.mxu0 0.0
  %737 = vmatprep.subr.mxu0 0.0
  %738 = vmatpush1.msra.mxu0 0.0
  %739 = vmatprep.subr.mxu0 0.0
  %740 = vmatpush1.msra.mxu0 0.0
  %741 = vmatprep.subr.mxu0 0.0
  %742 = vmatpush1.msra.mxu0 0.0
  %743 = vmatprep.subr.mxu0 0.0
  %744 = vmatpush1.msra.mxu0 0.0
  %745 = vmatprep.subr.mxu0 0.0
  %746 = vmatpush1.msra.mxu0 0.0
  %747 = vmatprep.subr.mxu0 0.0
  %748 = vmatpush1.msra.mxu0 0.0
  %749 = vmatprep.subr.mxu0 0.0
  %750 = vmatpush1.msra.mxu0 0.0
  %751 = vmatprep.subr.mxu0 0.0
  %752 = vmatpush1.msra.mxu0 0.0
  %753 = vmatprep.subr.mxu0 0.0
  %754 = vmatpush1.msra.mxu0 0.0
  %755 = vmatprep.subr.mxu0 0.0
  %756 = vmatpush1.msra.mxu0 0.0
  %757 = vmatprep.subr.mxu0 0.0
  %758 = vmatpush1.msra.mxu0 0.0
  %759 = vmatprep.subr.mxu0 0.0
  %760 = vmatpush1.msra.mxu0 0.0
  %761 = vmatprep.mubr.f32.mxu0 0.0
  %762 = vmatmul.mubr.f32.gmra.mrb[0].mxu0 %v689
  %v763 = vpop.f32.mrb[0].mxu0
  %v764 = vadd.f32 0.0, %v763
  %v765 = vpop.f32.mrb[0].mxu0
  %v766 = vadd.f32 0.0, %v765
  %767 = vmatprep.mubr.f32.mxu0 0.0
  %768 = vmatmul.mubr.f32.gmra.mrb[0].mxu0 %v692
  %v769 = vpop.f32.mrb[0].mxu0
  %v770 = vadd.f32 0.0, %v769
  %v771 = vpop.f32.mrb[0].mxu0
  %v772 = vadd.f32 0.0, %v771
  %773 = vmatprep.mubr.f32.mxu0 0.0
  %774 = vmatmul.mubr.f32.gmra.mrb[0].mxu0 %v695
  %v775 = vpop.f32.mrb[0].mxu0
  %v776 = vadd.f32 0.0, %v775
  %v777 = vpop.f32.mrb[0].mxu0
  %v778 = vadd.f32 0.0, %v777
  %779 = vdwg.mxu0
  %780 = vmatprep.subr.mxu0 0.0
  %781 = vmatpush1.msra.mxu0 %v677
  %782 = vmatprep.subr.mxu0 0.0
  %783 = vmatpush1.msra.mxu0 %v680
  %784 = vmatprep.subr.mxu0 0.0
  %785 = vmatpush1.msra.mxu0 %v683
  %786 = vmatprep.subr.mxu0 0.0
  %787 = vmatpush1.msra.mxu0 %v686
  %788 = vmatprep.subr.mxu0 0.0
  %789 = vmatpush1.msra.mxu0 0.0
  %790 = vmatprep.subr.mxu0 0.0
  %791 = vmatpush1.msra.mxu0 0.0
  %792 = vmatprep.subr.mxu0 0.0
  %793 = vmatpush1.msra.mxu0 0.0
  %794 = vmatprep.subr.mxu0 0.0
  %795 = vmatpush1.msra.mxu0 0.0
  %796 = vmatprep.subr.mxu0 0.0
  %797 = vmatpush1.msra.mxu0 0.0
  %798 = vmatprep.subr.mxu0 0.0
  %799 = vmatpush1.msra.mxu0 0.0
  %800 = vmatprep.subr.mxu0 0.0
  %801 = vmatpush1.msra.mxu0 0.0
  %802 = vmatprep.subr.mxu0 0.0
  %803 = vmatpush1.msra.mxu0 0.0
  %804 = vmatprep.subr.mxu0 0.0
  %805 = vmatpush1.msra.mxu0 0.0
  %806 = vmatprep.subr.mxu0 0.0
  %807 = vmatpush1.msra.mxu0 0.0
  %808 = vmatprep.subr.mxu0 0.0
  %809 = vmatpush1.msra.mxu0 0.0
  %810 = vmatprep.subr.mxu0 0.0
  %811 = vmatpush1.msra.mxu0 0.0
  %812 = vmatprep.subr.mxu0 0.0
  %813 = vmatpush1.msra.mxu0 0.0
  %814 = vmatprep.subr.mxu0 0.0
  %815 = vmatpush1.msra.mxu0 0.0
  %816 = vmatprep.subr.mxu0 0.0
  %817 = vmatpush1.msra.mxu0 0.0
  %818 = vmatprep.subr.mxu0 0.0
  %819 = vmatpush1.msra.mxu0 0.0
  %820 = vmatprep.subr.mxu0 0.0
  %821 = vmatpush1.msra.mxu0 0.0
  %822 = vmatprep.subr.mxu0 0.0
  %823 = vmatpush1.msra.mxu0 0.0
  %824 = vmatprep.subr.mxu0 0.0
  %825 = vmatpush1.msra.mxu0 0.0
  %826 = vmatprep.subr.mxu0 0.0
  %827 = vmatpush1.msra.mxu0 0.0
  %828 = vmatprep.subr.mxu0 0.0
  %829 = vmatpush1.msra.mxu0 0.0
  %830 = vmatprep.subr.mxu0 0.0
  %831 = vmatpush1.msra.mxu0 0.0
  %832 = vmatprep.subr.mxu0 0.0
  %833 = vmatpush1.msra.mxu0 0.0
  %834 = vmatprep.subr.mxu0 0.0
  %835 = vmatpush1.msra.mxu0 0.0
  %836 = vmatprep.subr.mxu0 0.0
  %837 = vmatpush1.msra.mxu0 0.0
  %838 = vmatprep.subr.mxu0 0.0
  %839 = vmatpush1.msra.mxu0 0.0
  %840 = vmatprep.subr.mxu0 0.0
  %841 = vmatpush1.msra.mxu0 0.0
  %842 = vmatprep.subr.mxu0 0.0
  %843 = vmatpush1.msra.mxu0 0.0
  %844 = vmatprep.mubr.f32.mxu0 0.0
  %845 = vmatmul.mubr.f32.gmra.mrb[0].mxu0 %v689
  %v846 = vpop.f32.mrb[0].mxu0
  %v847 = vadd.f32 0.0, %v846
  %v848 = vpop.f32.mrb[0].mxu0
  %849 = vmatprep.mubr.f32.mxu0 0.0
  %850 = vmatmul.mubr.f32.gmra.mrb[0].mxu0 %v692
  %v851 = vpop.f32.mrb[0].mxu0
  %v852 = vadd.f32 0.0, %v851
  %v853 = vpop.f32.mrb[0].mxu0
  %854 = vmatprep.mubr.f32.mxu0 0.0
  %855 = vmatmul.mubr.f32.gmra.mrb[0].mxu0 %v695
  %v856 = vpop.f32.mrb[0].mxu0
  %v857 = vadd.f32 0.0, %v856
  %v858 = vpop.f32.mrb[0].mxu0
  %859 = vdwg.mxu0
  %v860 = vadd.f32 %v309, %v123
  %v861 = vadd.f32 %v309, %v130
  %v862 = vadd.f32 %v309, %v137
  %v863 = vadd.f32 %v309, %v144
  %v864 = vadd.f32 %v309, %v151
  %v865 = vadd.f32 %v309, %v158
  %v866 = vadd.f32 %v309, %v165
  %v867 = vadd.f32 %v309, %v172
  %v868 = vadd.f32 %v309, %v179
  %v869 = vadd.f32 %v309, %v186
  %v870 = vadd.f32 %v309, %v193
  %v871 = vadd.f32 %v309, %v200
  %v872 = vadd.f32 %v309, %v207
  %v873 = vadd.f32 %v309, %v214
  %v874 = vadd.f32 %v309, %v221
  %v875 = vadd.f32 %v309, %v228
  %v876 = vsel %vm320, %v860, -inf
  %v877 = vrot.slane %v876, 4
  %v878 = vmax.f32 %v876, %v877
  %v879 = vrot.slane %v878, 2
  %v880 = vmax.f32 %v878, %v879
  %v881 = vrot.slane %v880, 1
  %v882 = vmax.f32 %v880, %v881
  %v883 = vsel %vm320, %v861, -inf
  %v884 = vrot.slane %v883, 4
  %v885 = vmax.f32 %v883, %v884
  %v886 = vrot.slane %v885, 2
  %v887 = vmax.f32 %v885, %v886
  %v888 = vrot.slane %v887, 1
  %v889 = vmax.f32 %v887, %v888
  %v890 = vsel %vm320, %v862, -inf
  %v891 = vrot.slane %v890, 4
  %v892 = vmax.f32 %v890, %v891
  %v893 = vrot.slane %v892, 2
  %v894 = vmax.f32 %v892, %v893
  %v895 = vrot.slane %v894, 1
  %v896 = vmax.f32 %v894, %v895
  %v897 = vsel %vm320, %v863, -inf
  %v898 = vrot.slane %v897, 4
  %v899 = vmax.f32 %v897, %v898
  %v900 = vrot.slane %v899, 2
  %v901 = vmax.f32 %v899, %v900
  %v902 = vrot.slane %v901, 1
  %v903 = vmax.f32 %v901, %v902
  %v904 = vsel %vm320, %v864, -inf
  %v905 = vrot.slane %v904, 4
  %v906 = vmax.f32 %v904, %v905
  %v907 = vrot.slane %v906, 2
  %v908 = vmax.f32 %v906, %v907
  %v909 = vrot.slane %v908, 1
  %v910 = vmax.f32 %v908, %v909
  %v911 = vsel %vm320, %v865, -inf
  %v912 = vrot.slane %v911, 4
  %v913 = vmax.f32 %v911, %v912
  %v914 = vrot.slane %v913, 2
  %v915 = vmax.f32 %v913, %v914
  %v916 = vrot.slane %v915, 1
  %v917 = vmax.f32 %v915, %v916
  %v918 = vsel %vm320, %v866, -inf
  %v919 = vrot.slane %v918, 4
  %v920 = vmax.f32 %v918, %v919
  %v921 = vrot.slane %v920, 2
  %v922 = vmax.f32 %v920, %v921
  %v923 = vrot.slane %v922, 1
  %v924 = vmax.f32 %v922, %v923
  %v925 = vsel %vm320, %v867, -inf
  %v926 = vrot.slane %v925, 4
  %v927 = vmax.f32 %v925, %v926
  %v928 = vrot.slane %v927, 2
  %v929 = vmax.f32 %v927, %v928
  %v930 = vrot.slane %v929, 1
  %v931 = vmax.f32 %v929, %v930
  %v932 = vsel %vm320, %v868, -inf
  %v933 = vrot.slane %v932, 4
  %v934 = vmax.f32 %v932, %v933
  %v935 = vrot.slane %v934, 2
  %v936 = vmax.f32 %v934, %v935
  %v937 = vrot.slane %v936, 1
  %v938 = vmax.f32 %v936, %v937
  %v939 = vsel %vm320, %v869, -inf
  %v940 = vrot.slane %v939, 4
  %v941 = vmax.f32 %v939, %v940
  %v942 = vrot.slane %v941, 2
  %v943 = vmax.f32 %v941, %v942
  %v944 = vrot.slane %v943, 1
  %v945 = vmax.f32 %v943, %v944
  %v946 = vsel %vm320, %v870, -inf
  %v947 = vrot.slane %v946, 4
  %v948 = vmax.f32 %v946, %v947
  %v949 = vrot.slane %v948, 2
  %v950 = vmax.f32 %v948, %v949
  %v951 = vrot.slane %v950, 1
  %v952 = vmax.f32 %v950, %v951
  %v953 = vsel %vm320, %v871, -inf
  %v954 = vrot.slane %v953, 4
  %v955 = vmax.f32 %v953, %v954
  %v956 = vrot.slane %v955, 2
  %v957 = vmax.f32 %v955, %v956
  %v958 = vrot.slane %v957, 1
  %v959 = vmax.f32 %v957, %v958
  %v960 = vsel %vm320, %v872, -inf
  %v961 = vrot.slane %v960, 4
  %v962 = vmax.f32 %v960, %v961
  %v963 = vrot.slane %v962, 2
  %v964 = vmax.f32 %v962, %v963
  %v965 = vrot.slane %v964, 1
  %v966 = vmax.f32 %v964, %v965
  %v967 = vsel %vm320, %v873, -inf
  %v968 = vrot.slane %v967, 4
  %v969 = vmax.f32 %v967, %v968
  %v970 = vrot.slane %v969, 2
  %v971 = vmax.f32 %v969, %v970
  %v972 = vrot.slane %v971, 1
  %v973 = vmax.f32 %v971, %v972
  %v974 = vsel %vm320, %v874, -inf
  %v975 = vrot.slane %v974, 4
  %v976 = vmax.f32 %v974, %v975
  %v977 = vrot.slane %v976, 2
  %v978 = vmax.f32 %v976, %v977
  %v979 = vrot.slane %v978, 1
  %v980 = vmax.f32 %v978, %v979
  %v981 = vsel %vm320, %v875, -inf
  %v982 = vrot.slane %v981, 4
  %v983 = vmax.f32 %v981, %v982
  %v984 = vrot.slane %v983, 2
  %v985 = vmax.f32 %v983, %v984
  %v986 = vrot.slane %v985, 1
  %v987 = vmax.f32 %v985, %v986
  %v988 = vmax.f32 %v882, -1e+30
  %v989 = vmax.f32 %v889, -1e+30
  %v990 = vmax.f32 %v896, -1e+30
  %v991 = vmax.f32 %v903, -1e+30
  %v992 = vmax.f32 %v910, -1e+30
  %v993 = vmax.f32 %v917, -1e+30
  %v994 = vmax.f32 %v924, -1e+30
  %v995 = vmax.f32 %v931, -1e+30
  %v996 = vmax.f32 %v938, -1e+30
  %v997 = vmax.f32 %v945, -1e+30
  %v998 = vmax.f32 %v952, -1e+30
  %v999 = vmax.f32 %v959, -1e+30
  %v1000 = vmax.f32 %v966, -1e+30
  %v1001 = vmax.f32 %v973, -1e+30
  %v1002 = vmax.f32 %v980, -1e+30
  %v1003 = vmax.f32 %v987, -1e+30
  %v1004 = vadd.f32 %v310, %v232
  %v1005 = vadd.f32 %v310, %v236
  %v1006 = vadd.f32 %v310, %v240
  %v1007 = vadd.f32 %v310, %v244
  %v1008 = vadd.f32 %v310, %v248
  %v1009 = vadd.f32 %v310, %v252
  %v1010 = vadd.f32 %v310, %v256
  %v1011 = vadd.f32 %v310, %v260
  %v1012 = vadd.f32 %v310, %v264
  %v1013 = vadd.f32 %v310, %v268
  %v1014 = vadd.f32 %v310, %v272
  %v1015 = vadd.f32 %v310, %v276
  %v1016 = vadd.f32 %v310, %v280
  %v1017 = vadd.f32 %v310, %v284
  %v1018 = vadd.f32 %v310, %v288
  %v1019 = vadd.f32 %v310, %v292
  %v1020 = vsel %vm320, %v1004, -inf
  %v1021 = vrot.slane %v1020, 4
  %v1022 = vmax.f32 %v1020, %v1021
  %v1023 = vrot.slane %v1022, 2
  %v1024 = vmax.f32 %v1022, %v1023
  %v1025 = vrot.slane %v1024, 1
  %v1026 = vmax.f32 %v1024, %v1025
  %v1027 = vsel %vm320, %v1005, -inf
  %v1028 = vrot.slane %v1027, 4
  %v1029 = vmax.f32 %v1027, %v1028
  %v1030 = vrot.slane %v1029, 2
  %v1031 = vmax.f32 %v1029, %v1030
  %v1032 = vrot.slane %v1031, 1
  %v1033 = vmax.f32 %v1031, %v1032
  %v1034 = vsel %vm320, %v1006, -inf
  %v1035 = vrot.slane %v1034, 4
  %v1036 = vmax.f32 %v1034, %v1035
  %v1037 = vrot.slane %v1036, 2
  %v1038 = vmax.f32 %v1036, %v1037
  %v1039 = vrot.slane %v1038, 1
  %v1040 = vmax.f32 %v1038, %v1039
  %v1041 = vsel %vm320, %v1007, -inf
  %v1042 = vrot.slane %v1041, 4
  %v1043 = vmax.f32 %v1041, %v1042
  %v1044 = vrot.slane %v1043, 2
  %v1045 = vmax.f32 %v1043, %v1044
  %v1046 = vrot.slane %v1045, 1
  %v1047 = vmax.f32 %v1045, %v1046
  %v1048 = vsel %vm320, %v1008, -inf
  %v1049 = vrot.slane %v1048, 4
  %v1050 = vmax.f32 %v1048, %v1049
  %v1051 = vrot.slane %v1050, 2
  %v1052 = vmax.f32 %v1050, %v1051
  %v1053 = vrot.slane %v1052, 1
  %v1054 = vmax.f32 %v1052, %v1053
  %v1055 = vsel %vm320, %v1009, -inf
  %v1056 = vrot.slane %v1055, 4
  %v1057 = vmax.f32 %v1055, %v1056
  %v1058 = vrot.slane %v1057, 2
  %v1059 = vmax.f32 %v1057, %v1058
  %v1060 = vrot.slane %v1059, 1
  %v1061 = vmax.f32 %v1059, %v1060
  %v1062 = vsel %vm320, %v1010, -inf
  %v1063 = vrot.slane %v1062, 4
  %v1064 = vmax.f32 %v1062, %v1063
  %v1065 = vrot.slane %v1064, 2
  %v1066 = vmax.f32 %v1064, %v1065
  %v1067 = vrot.slane %v1066, 1
  %v1068 = vmax.f32 %v1066, %v1067
  %v1069 = vsel %vm320, %v1011, -inf
  %v1070 = vrot.slane %v1069, 4
  %v1071 = vmax.f32 %v1069, %v1070
  %v1072 = vrot.slane %v1071, 2
  %v1073 = vmax.f32 %v1071, %v1072
  %v1074 = vrot.slane %v1073, 1
  %v1075 = vmax.f32 %v1073, %v1074
  %v1076 = vsel %vm320, %v1012, -inf
  %v1077 = vrot.slane %v1076, 4
  %v1078 = vmax.f32 %v1076, %v1077
  %v1079 = vrot.slane %v1078, 2
  %v1080 = vmax.f32 %v1078, %v1079
  %v1081 = vrot.slane %v1080, 1
  %v1082 = vmax.f32 %v1080, %v1081
  %v1083 = vsel %vm320, %v1013, -inf
  %v1084 = vrot.slane %v1083, 4
  %v1085 = vmax.f32 %v1083, %v1084
  %v1086 = vrot.slane %v1085, 2
  %v1087 = vmax.f32 %v1085, %v1086
  %v1088 = vrot.slane %v1087, 1
  %v1089 = vmax.f32 %v1087, %v1088
  %v1090 = vsel %vm320, %v1014, -inf
  %v1091 = vrot.slane %v1090, 4
  %v1092 = vmax.f32 %v1090, %v1091
  %v1093 = vrot.slane %v1092, 2
  %v1094 = vmax.f32 %v1092, %v1093
  %v1095 = vrot.slane %v1094, 1
  %v1096 = vmax.f32 %v1094, %v1095
  %v1097 = vsel %vm320, %v1015, -inf
  %v1098 = vrot.slane %v1097, 4
  %v1099 = vmax.f32 %v1097, %v1098
  %v1100 = vrot.slane %v1099, 2
  %v1101 = vmax.f32 %v1099, %v1100
  %v1102 = vrot.slane %v1101, 1
  %v1103 = vmax.f32 %v1101, %v1102
  %v1104 = vsel %vm320, %v1016, -inf
  %v1105 = vrot.slane %v1104, 4
  %v1106 = vmax.f32 %v1104, %v1105
  %v1107 = vrot.slane %v1106, 2
  %v1108 = vmax.f32 %v1106, %v1107
  %v1109 = vrot.slane %v1108, 1
  %v1110 = vmax.f32 %v1108, %v1109
  %v1111 = vsel %vm320, %v1017, -inf
  %v1112 = vrot.slane %v1111, 4
  %v1113 = vmax.f32 %v1111, %v1112
  %v1114 = vrot.slane %v1113, 2
  %v1115 = vmax.f32 %v1113, %v1114
  %v1116 = vrot.slane %v1115, 1
  %v1117 = vmax.f32 %v1115, %v1116
  %v1118 = vsel %vm320, %v1018, -inf
  %v1119 = vrot.slane %v1118, 4
  %v1120 = vmax.f32 %v1118, %v1119
  %v1121 = vrot.slane %v1120, 2
  %v1122 = vmax.f32 %v1120, %v1121
  %v1123 = vrot.slane %v1122, 1
  %v1124 = vmax.f32 %v1122, %v1123
  %v1125 = vsel %vm320, %v1019, -inf
  %v1126 = vrot.slane %v1125, 4
  %v1127 = vmax.f32 %v1125, %v1126
  %v1128 = vrot.slane %v1127, 2
  %v1129 = vmax.f32 %v1127, %v1128
  %v1130 = vrot.slane %v1129, 1
  %v1131 = vmax.f32 %v1129, %v1130
  %v1132 = vmax.f32 %v988, %v1026
  %v1133 = vmax.f32 %v989, %v1033
  %v1134 = vmax.f32 %v990, %v1040
  %v1135 = vmax.f32 %v991, %v1047
  %v1136 = vmax.f32 %v992, %v1054
  %v1137 = vmax.f32 %v993, %v1061
  %v1138 = vmax.f32 %v994, %v1068
  %v1139 = vmax.f32 %v995, %v1075
  %v1140 = vmax.f32 %v996, %v1082
  %v1141 = vmax.f32 %v997, %v1089
  %v1142 = vmax.f32 %v998, %v1096
  %v1143 = vmax.f32 %v999, %v1103
  %v1144 = vmax.f32 %v1000, %v1110
  %v1145 = vmax.f32 %v1001, %v1117
  %v1146 = vmax.f32 %v1002, %v1124
  %v1147 = vmax.f32 %v1003, %v1131
  %v1148 = vsel %vm115, 1, 0
  %v1149 = vsel %vm116, 1, 0
  %vm1150 = vcmp.eq.s32.totalorder %v1148, 1
  %vm1151 = vcmp.eq.s32.totalorder %v1149, 1
  %vm1168 = vcmask 1041409
  %v1169 = vsel %vm1168, %v1133, %v1132
  %vm1170 = vcmask 1042434
  %v1171 = vsel %vm1170, %v1134, %v1169
  %vm1172 = vcmask 1043459
  %v1173 = vsel %vm1172, %v1135, %v1171
  %vm1174 = vcmask 1044484
  %v1175 = vsel %vm1174, %v1136, %v1173
  %vm1176 = vcmask 1045509
  %v1177 = vsel %vm1176, %v1137, %v1175
  %vm1178 = vcmask 1046534
  %v1179 = vsel %vm1178, %v1138, %v1177
  %vm1180 = vcmask 1047559
  %v1181 = vsel %vm1180, %v1139, %v1179
  %v1182 = vsel %vm1168, %v1141, %v1140
  %v1183 = vsel %vm1170, %v1142, %v1182
  %v1184 = vsel %vm1172, %v1143, %v1183
  %v1185 = vsel %vm1174, %v1144, %v1184
  %v1186 = vsel %vm1176, %v1145, %v1185
  %v1187 = vsel %vm1178, %v1146, %v1186
  %v1188 = vsel %vm1180, %v1147, %v1187
  %v1191 = vsel %vm1150, %v1181, 0.0
  %v1192 = vsel %vm1151, %v1188, 0.0
  %v1193 = vld [vmem:[%s8] sm:$0x7f]
  %v1195 = vsel %vm320, %v1191, 0
  %v1198 = vsel %vm320, %v1192, 0
  %v1201 = vsel %vm327, %v1193, 0
  %1203 = vmatprep.subr.mxu0 0.0
  %1204 = vmatpush1.msra.mxu0 %v1201
  %1205 = vmatprep.subr.mxu0 0.0
  %1206 = vmatpush1.msra.mxu0 0.0
  %1207 = vmatprep.subr.mxu0 0.0
  %1208 = vmatpush1.msra.mxu0 0.0
  %1209 = vmatprep.subr.mxu0 0.0
  %1210 = vmatpush1.msra.mxu0 0.0
  %1211 = vmatprep.subr.mxu0 0.0
  %1212 = vmatpush1.msra.mxu0 0.0
  %1213 = vmatprep.subr.mxu0 0.0
  %1214 = vmatpush1.msra.mxu0 0.0
  %1215 = vmatprep.subr.mxu0 0.0
  %1216 = vmatpush1.msra.mxu0 0.0
  %1217 = vmatprep.subr.mxu0 0.0
  %1218 = vmatpush1.msra.mxu0 0.0
  %1219 = vmatprep.subr.mxu0 0.0
  %1220 = vmatpush1.msra.mxu0 0.0
  %1221 = vmatprep.subr.mxu0 0.0
  %1222 = vmatpush1.msra.mxu0 0.0
  %1223 = vmatprep.subr.mxu0 0.0
  %1224 = vmatpush1.msra.mxu0 0.0
  %1225 = vmatprep.subr.mxu0 0.0
  %1226 = vmatpush1.msra.mxu0 0.0
  %1227 = vmatprep.subr.mxu0 0.0
  %1228 = vmatpush1.msra.mxu0 0.0
  %1229 = vmatprep.subr.mxu0 0.0
  %1230 = vmatpush1.msra.mxu0 0.0
  %1231 = vmatprep.subr.mxu0 0.0
  %1232 = vmatpush1.msra.mxu0 0.0
  %1233 = vmatprep.subr.mxu0 0.0
  %1234 = vmatpush1.msra.mxu0 0.0
  %1235 = vmatprep.subr.mxu0 0.0
  %1236 = vmatpush1.msra.mxu0 0.0
  %1237 = vmatprep.subr.mxu0 0.0
  %1238 = vmatpush1.msra.mxu0 0.0
  %1239 = vmatprep.subr.mxu0 0.0
  %1240 = vmatpush1.msra.mxu0 0.0
  %1241 = vmatprep.subr.mxu0 0.0
  %1242 = vmatpush1.msra.mxu0 0.0
  %1243 = vmatprep.subr.mxu0 0.0
  %1244 = vmatpush1.msra.mxu0 0.0
  %1245 = vmatprep.subr.mxu0 0.0
  %1246 = vmatpush1.msra.mxu0 0.0
  %1247 = vmatprep.subr.mxu0 0.0
  %1248 = vmatpush1.msra.mxu0 0.0
  %1249 = vmatprep.subr.mxu0 0.0
  %1250 = vmatpush1.msra.mxu0 0.0
  %1251 = vmatprep.subr.mxu0 0.0
  %1252 = vmatpush1.msra.mxu0 0.0
  %1253 = vmatprep.subr.mxu0 0.0
  %1254 = vmatpush1.msra.mxu0 0.0
  %1255 = vmatprep.subr.mxu0 0.0
  %1256 = vmatpush1.msra.mxu0 0.0
  %1257 = vmatprep.subr.mxu0 0.0
  %1258 = vmatpush1.msra.mxu0 0.0
  %1259 = vmatprep.subr.mxu0 0.0
  %1260 = vmatpush1.msra.mxu0 0.0
  %1261 = vmatprep.subr.mxu0 0.0
  %1262 = vmatpush1.msra.mxu0 0.0
  %1263 = vmatprep.subr.mxu0 0.0
  %1264 = vmatpush1.msra.mxu0 0.0
  %1265 = vmatprep.subr.mxu0 0.0
  %1266 = vmatpush1.msra.mxu0 0.0
  %1267 = vmatprep.mubr.f32.mxu0 0.0
  %1268 = vmatmul.mubr.f32.gmra.mrb[0].mxu0 %v1195
  %v1269 = vpop.f32.mrb[0].mxu0
  %v1270 = vadd.f32 0.0, %v1269
  %v1271 = vpop.f32.mrb[0].mxu0
  %1272 = vmatprep.mubr.f32.mxu0 0.0
  %1273 = vmatmul.mubr.f32.gmra.mrb[0].mxu0 %v1198
  %v1274 = vpop.f32.mrb[0].mxu0
  %v1275 = vadd.f32 0.0, %v1274
  %v1276 = vpop.f32.mrb[0].mxu0
  %1277 = vdwg.mxu0
  %1278 = vst [vmem:[#allocation2] sm:$0xff] %v404
  %1279 = vst [vmem:[#allocation2 + $0x8] sm:$0xff] %v410
  %1280 = vst [vmem:[#allocation2 + $0x10] sm:$0xff] %v579
  %1281 = vst [vmem:[#allocation2 + $0x18] sm:$0xff] %v585
  %1282 = vst [vmem:[#allocation2 + $0x20] sm:$0x3] %v591
  %1283 = vst [vmem:[#allocation2 + $0x28] sm:$0xff] %v406
  %1284 = vst [vmem:[#allocation2 + $0x30] sm:$0xff] %v412
  %1285 = vst [vmem:[#allocation2 + $0x38] sm:$0xff] %v764
  %1286 = vst [vmem:[#allocation2 + $0x40] sm:$0xff] %v770
  %1287 = vst [vmem:[#allocation2 + $0x48] sm:$0x3] %v776
  %1288 = vst [vmem:[#allocation2 + $0x50] sm:$0xff] %v766
  %1289 = vst [vmem:[#allocation2 + $0x58] sm:$0xff] %v772
  %1290 = vst [vmem:[#allocation2 + $0x60] sm:$0x3] %v778
  %1291 = vst [vmem:[#allocation2 + $0x68] sm:$0xff] %v581
  %1292 = vst [vmem:[#allocation2 + $0x70] sm:$0xff] %v587
  %1293 = vst [vmem:[#allocation2 + $0x78] sm:$0x3] %v593
  %v1294 = vld [vmem:[#allocation2] sm:$0xff]
  %v1295 = vld [vmem:[#allocation2 + $0x8] sm:$0xff]
  %v1296 = vld [vmem:[#allocation2 + $0x10] sm:$0xff]
  %v1297 = vld [vmem:[#allocation2 + $0x18] sm:$0xff]
  %v1298 = vld [vmem:[#allocation2 + $0x20] sm:$0xff]
  %v1299 = vld [vmem:[#allocation2 + $0x28] sm:$0xff]
  %v1300 = vld [vmem:[#allocation2 + $0x30] sm:$0xff]
  %v1301 = vld [vmem:[#allocation2 + $0x38] sm:$0xff]
  %v1302 = vld [vmem:[#allocation2 + $0x40] sm:$0xff]
  %v1303 = vld [vmem:[#allocation2 + $0x48] sm:$0xff]
  %v1304 = vld [vmem:[#allocation2 + $0x50] sm:$0xff]
  %v1305 = vld [vmem:[#allocation2 + $0x58] sm:$0xff]
  %v1306 = vld [vmem:[#allocation2 + $0x60] sm:$0xff]
  %v1307 = vld [vmem:[#allocation2 + $0x68] sm:$0xff]
  %v1308 = vld [vmem:[#allocation2 + $0x70] sm:$0xff]
  %v1309 = vld [vmem:[#allocation2 + $0x78] sm:$0xff]
  %1310 = vmatprep.subr.mxu0 0.0
  %1311 = vmatpush1.msra.mxu0 %v1294
  %1312 = vmatprep.subr.mxu0 0.0
  %1313 = vmatpush1.msra.mxu0 %v1295
  %1314 = vmatprep.subr.mxu0 0.0
  %1315 = vmatpush1.msra.mxu0 %v1296
  %1316 = vmatprep.subr.mxu0 0.0
  %1317 = vmatpush1.msra.mxu0 %v1297
  %1318 = vmatprep.subr.mxu0 0.0
  %1319 = vmatpush1.msra.mxu0 %v1298
  %1320 = vmatprep.subr.mxu0 0.0
  %1321 = vmatpush1.msra.mxu0 %v1299
  %1322 = vmatprep.subr.mxu0 0.0
  %1323 = vmatpush1.msra.mxu0 %v1300
  %1324 = vmatprep.subr.mxu0 0.0
  %1325 = vmatpush1.msra.mxu0 %v1301
  %1326 = vmatprep.subr.mxu0 0.0
  %1327 = vmatpush1.msra.mxu0 %v1302
  %1328 = vmatprep.subr.mxu0 0.0
  %1329 = vmatpush1.msra.mxu0 %v1303
  %1330 = vmatprep.subr.mxu0 0.0
  %1331 = vmatpush1.msra.mxu0 %v1304
  %1332 = vmatprep.subr.mxu0 0.0
  %1333 = vmatpush1.msra.mxu0 %v1305
  %1334 = vmatprep.subr.mxu0 0.0
  %1335 = vmatpush1.msra.mxu0 %v1306
  %1336 = vmatprep.subr.mxu0 0.0
  %1337 = vmatpush1.msra.mxu0 %v1307
  %1338 = vmatprep.subr.mxu0 0.0
  %1339 = vmatpush1.msra.mxu0 %v1308
  %1340 = vmatprep.subr.mxu0 0.0
  %1341 = vmatpush1.msra.mxu0 %v1309
  %1342 = vmatprep.subr.mxu0 0.0
  %1343 = vmatpush1.msra.mxu0 0.0
  %1344 = vmatprep.subr.mxu0 0.0
  %1345 = vmatpush1.msra.mxu0 0.0
  %1346 = vmatprep.subr.mxu0 0.0
  %1347 = vmatpush1.msra.mxu0 0.0
  %1348 = vmatprep.subr.mxu0 0.0
  %1349 = vmatpush1.msra.mxu0 0.0
  %1350 = vmatprep.subr.mxu0 0.0
  %1351 = vmatpush1.msra.mxu0 0.0
  %1352 = vmatprep.subr.mxu0 0.0
  %1353 = vmatpush1.msra.mxu0 0.0
  %1354 = vmatprep.subr.mxu0 0.0
  %1355 = vmatpush1.msra.mxu0 0.0
  %1356 = vmatprep.subr.mxu0 0.0
  %1357 = vmatpush1.msra.mxu0 0.0
  %1358 = vmatprep.subr.mxu0 0.0
  %1359 = vmatpush1.msra.mxu0 0.0
  %1360 = vmatprep.subr.mxu0 0.0
  %1361 = vmatpush1.msra.mxu0 0.0
  %1362 = vmatprep.subr.mxu0 0.0
  %1363 = vmatpush1.msra.mxu0 0.0
  %1364 = vmatprep.subr.mxu0 0.0
  %1365 = vmatpush1.msra.mxu0 0.0
  %1366 = vmatprep.subr.mxu0 0.0
  %1367 = vmatpush1.msra.mxu0 0.0
  %1368 = vmatprep.subr.mxu0 0.0
  %1369 = vmatpush1.msra.mxu0 0.0
  %1370 = vmatprep.subr.mxu0 0.0
  %1371 = vmatpush1.msra.mxu0 0.0
  %1372 = vmatprep.subr.mxu0 0.0
  %1373 = vmatpush1.msra.mxu0 0.0
  %1374 = vmatprep.mubr.f32.mxu0 0.0
  %1375 = vmatmul.mubr.f32.gmra.mrb[0].mxu0 %v301
  %v1376 = vpop.f32.mrb[0].mxu0
  %v1377 = vadd.f32 0.0, %v1376
  %v1378 = vpop.f32.mrb[0].mxu0
  %1379 = vmatprep.mubr.f32.mxu0 0.0
  %1380 = vmatmul.mubr.f32.gmra.mrb[0].mxu0 %v302
  %v1381 = vpop.f32.mrb[0].mxu0
  %v1382 = vadd.f32 0.0, %v1381
  %v1383 = vpop.f32.mrb[0].mxu0
  %1384 = vmatprep.mubr.f32.mxu0 0.0
  %1385 = vmatmul.mubr.f32.gmra.mrb[0].mxu0 %v303
  %v1386 = vpop.f32.mrb[0].mxu0
  %v1387 = vadd.f32 0.0, %v1386
  %v1388 = vpop.f32.mrb[0].mxu0
  %1389 = vmatprep.mubr.f32.mxu0 0.0
  %1390 = vmatmul.mubr.f32.gmra.mrb[0].mxu0 %v304
  %v1391 = vpop.f32.mrb[0].mxu0
  %v1392 = vadd.f32 0.0, %v1391
  %v1393 = vpop.f32.mrb[0].mxu0
  %1394 = vmatprep.mubr.f32.mxu0 0.0
  %1395 = vmatmul.mubr.f32.gmra.mrb[0].mxu0 %v305
  %v1396 = vpop.f32.mrb[0].mxu0
  %v1397 = vadd.f32 0.0, %v1396
  %v1398 = vpop.f32.mrb[0].mxu0
  %1399 = vmatprep.mubr.f32.mxu0 0.0
  %1400 = vmatmul.mubr.f32.gmra.mrb[0].mxu0 %v306
  %v1401 = vpop.f32.mrb[0].mxu0
  %v1402 = vadd.f32 0.0, %v1401
  %v1403 = vpop.f32.mrb[0].mxu0
  %1404 = vmatprep.mubr.f32.mxu0 0.0
  %1405 = vmatmul.mubr.f32.gmra.mrb[0].mxu0 %v307
  %v1406 = vpop.f32.mrb[0].mxu0
  %v1407 = vadd.f32 0.0, %v1406
  %v1408 = vpop.f32.mrb[0].mxu0
  %1409 = vmatprep.mubr.f32.mxu0 0.0
  %1410 = vmatmul.mubr.f32.gmra.mrb[0].mxu0 %v308
  %v1411 = vpop.f32.mrb[0].mxu0
  %v1412 = vadd.f32 0.0, %v1411
  %v1413 = vpop.f32.mrb[0].mxu0
  %1414 = vdwg.mxu0
  %v1415 = vadd.f32 %v1377, %v1270
  %v1416 = vadd.f32 %v1382, %v1275
  %v1417 = vadd.f32 %v1415, %v481
  %v1418 = vadd.f32 %v1416, %v486
  %v1419 = vld [vmem:[%s9] sm:$0x1]
  %v1421 = vlaneseq
  %v1422 = vshrl.u32 %v1421, 7
  %v1423 = vsub.s32 0, %v1422
  %v1424 = vrot.slane %v1419, %v1423
  %v1426 = vadd.f32 %v1417, %v1424
  %v1427 = vadd.f32 %v1418, %v1424
  %v1428 = vadd.f32 %v1387, %v662
  %v1429 = vadd.f32 %v1392, %v667
  %v1430 = vadd.f32 %v1397, %v672
  %v1431 = vld [vmem:[%s10] sm:$0x1]
  %v1433 = vlaneseq
  %v1434 = vshrl.u32 %v1433, 7
  %v1435 = vsub.s32 0, %v1434
  %v1436 = vrot.slane %v1431, %v1435
  %v1438 = vadd.f32 %v1428, %v1436
  %v1439 = vadd.f32 %v1429, %v1436
  %v1440 = vadd.f32 %v1430, %v1436
  %v1441 = vadd.f32 %v1402, %v847
  %v1442 = vadd.f32 %v1407, %v852
  %v1443 = vadd.f32 %v1412, %v857
  %v1444 = vld [vmem:[%s11] sm:$0x1]
  %v1446 = vlaneseq
  %v1447 = vshrl.u32 %v1446, 7
  %v1448 = vsub.s32 0, %v1447
  %v1449 = vrot.slane %v1444, %v1448
  %v1451 = vadd.f32 %v1441, %v1449
  %v1452 = vadd.f32 %v1442, %v1449
  %v1453 = vadd.f32 %v1443, %v1449
  %v1454 = vmax.f32 %v1426, 0.0
  %v1455 = vmax.f32 %v1427, 0.0
  %v1456 = vmax.f32 %v1438, 0.0
  %v1457 = vmax.f32 %v1439, 0.0
  %v1458 = vmax.f32 %v1440, 0.0
  %v1459 = vmax.f32 %v1451, 0.0
  %v1460 = vmax.f32 %v1452, 0.0
  %v1461 = vmax.f32 %v1453, 0.0
  %v1462 = vld [vmem:[%s12] sm:$0xff]
  %v1463 = vld [vmem:[%s12 + $0x8] sm:$0xff]
  %v1464 = vld [vmem:[%s12 + $0x10] sm:$0xff]
  %v1465 = vld [vmem:[%s12 + $0x18] sm:$0xff]
  %v1466 = vld [vmem:[%s12 + $0x20] sm:$0xff]
  %v1467 = vld [vmem:[%s12 + $0x28] sm:$0xff]
  %v1468 = vld [vmem:[%s12 + $0x30] sm:$0xff]
  %v1469 = vld [vmem:[%s12 + $0x38] sm:$0xff]
  %v1470 = vld [vmem:[%s12 + $0x40] sm:$0xff]
  %v1471 = vld [vmem:[%s12 + $0x48] sm:$0xff]
  %v1472 = vld [vmem:[%s12 + $0x50] sm:$0xff]
  %v1473 = vld [vmem:[%s12 + $0x58] sm:$0xff]
  %v1474 = vld [vmem:[%s12 + $0x60] sm:$0xff]
  %v1475 = vld [vmem:[%s12 + $0x68] sm:$0xff]
  %v1476 = vld [vmem:[%s12 + $0x70] sm:$0xff]
  %v1477 = vld [vmem:[%s12 + $0x78] sm:$0xff]
  %v1478 = vld [vmem:[%s12 + $0x80] sm:$0xff]
  %v1479 = vld [vmem:[%s12 + $0x88] sm:$0xff]
  %v1480 = vld [vmem:[%s12 + $0x90] sm:$0xff]
  %v1481 = vld [vmem:[%s12 + $0x98] sm:$0xff]
  %v1482 = vld [vmem:[%s12 + $0xa0] sm:$0xff]
  %v1483 = vld [vmem:[%s12 + $0xa8] sm:$0xff]
  %v1484 = vld [vmem:[%s12 + $0xb0] sm:$0xff]
  %v1485 = vld [vmem:[%s12 + $0xb8] sm:$0xff]
  %v1486 = vld [vmem:[%s12 + $0xc0] sm:$0xff]
  %v1487 = vld [vmem:[%s12 + $0xc8] sm:$0xff]
  %v1488 = vld [vmem:[%s12 + $0xd0] sm:$0xff]
  %v1489 = vld [vmem:[%s12 + $0xd8] sm:$0xff]
  %v1490 = vld [vmem:[%s12 + $0xe0] sm:$0xff]
  %v1491 = vld [vmem:[%s12 + $0xe8] sm:$0xff]
  %v1492 = vld [vmem:[%s12 + $0xf0] sm:$0xff]
  %v1493 = vld [vmem:[%s12 + $0xf8] sm:$0xff]
  %v1494 = vld [vmem:[%s12 + $0x100] sm:$0xff]
  %v1495 = vld [vmem:[%s12 + $0x108] sm:$0xff]
  %v1496 = vld [vmem:[%s12 + $0x110] sm:$0xff]
  %v1497 = vld [vmem:[%s12 + $0x118] sm:$0xff]
  %v1498 = vld [vmem:[%s12 + $0x120] sm:$0xff]
  %v1499 = vld [vmem:[%s12 + $0x128] sm:$0xff]
  %v1500 = vld [vmem:[%s12 + $0x130] sm:$0xff]
  %v1501 = vld [vmem:[%s12 + $0x138] sm:$0xff]
  %v1502 = vld [vmem:[%s12 + $0x140] sm:$0xff]
  %v1503 = vld [vmem:[%s12 + $0x148] sm:$0xff]
  %v1504 = vld [vmem:[%s12 + $0x150] sm:$0xff]
  %v1505 = vld [vmem:[%s12 + $0x158] sm:$0xff]
  %v1506 = vld [vmem:[%s12 + $0x160] sm:$0xff]
  %v1507 = vld [vmem:[%s12 + $0x168] sm:$0xff]
  %v1508 = vld [vmem:[%s12 + $0x170] sm:$0xff]
  %v1509 = vld [vmem:[%s12 + $0x178] sm:$0xff]
  %1510 = vmatprep.subr.mxu0 %v1463
  %1511 = vmatpush1.msra.mxu0 %v1462
  %1512 = vmatprep.subr.mxu0 %v1466
  %1513 = vmatpush1.msra.mxu0 %v1465
  %1514 = vmatprep.subr.mxu0 %v1469
  %1515 = vmatpush1.msra.mxu0 %v1468
  %1516 = vmatprep.subr.mxu0 %v1472
  %1517 = vmatpush1.msra.mxu0 %v1471
  %1518 = vmatprep.subr.mxu0 %v1475
  %1519 = vmatpush1.msra.mxu0 %v1474
  %1520 = vmatprep.subr.mxu0 %v1478
  %1521 = vmatpush1.msra.mxu0 %v1477
  %1522 = vmatprep.subr.mxu0 %v1481
  %1523 = vmatpush1.msra.mxu0 %v1480
  %1524 = vmatprep.subr.mxu0 %v1484
  %1525 = vmatpush1.msra.mxu0 %v1483
  %1526 = vmatprep.subr.mxu0 %v1487
  %1527 = vmatpush1.msra.mxu0 %v1486
  %1528 = vmatprep.subr.mxu0 %v1490
  %1529 = vmatpush1.msra.mxu0 %v1489
  %1530 = vmatprep.subr.mxu0 %v1493
  %1531 = vmatpush1.msra.mxu0 %v1492
  %1532 = vmatprep.subr.mxu0 %v1496
  %1533 = vmatpush1.msra.mxu0 %v1495
  %1534 = vmatprep.subr.mxu0 %v1499
  %1535 = vmatpush1.msra.mxu0 %v1498
  %1536 = vmatprep.subr.mxu0 %v1502
  %1537 = vmatpush1.msra.mxu0 %v1501
  %1538 = vmatprep.subr.mxu0 %v1505
  %1539 = vmatpush1.msra.mxu0 %v1504
  %1540 = vmatprep.subr.mxu0 %v1508
  %1541 = vmatpush1.msra.mxu0 %v1507
  %1542 = vmatprep.subr.mxu0 0.0
  %1543 = vmatpush1.msra.mxu0 0.0
  %1544 = vmatprep.subr.mxu0 0.0
  %1545 = vmatpush1.msra.mxu0 0.0
  %1546 = vmatprep.subr.mxu0 0.0
  %1547 = vmatpush1.msra.mxu0 0.0
  %1548 = vmatprep.subr.mxu0 0.0
  %1549 = vmatpush1.msra.mxu0 0.0
  %1550 = vmatprep.subr.mxu0 0.0
  %1551 = vmatpush1.msra.mxu0 0.0
  %1552 = vmatprep.subr.mxu0 0.0
  %1553 = vmatpush1.msra.mxu0 0.0
  %1554 = vmatprep.subr.mxu0 0.0
  %1555 = vmatpush1.msra.mxu0 0.0
  %1556 = vmatprep.subr.mxu0 0.0
  %1557 = vmatpush1.msra.mxu0 0.0
  %1558 = vmatprep.subr.mxu0 0.0
  %1559 = vmatpush1.msra.mxu0 0.0
  %1560 = vmatprep.subr.mxu0 0.0
  %1561 = vmatpush1.msra.mxu0 0.0
  %1562 = vmatprep.subr.mxu0 0.0
  %1563 = vmatpush1.msra.mxu0 0.0
  %1564 = vmatprep.subr.mxu0 0.0
  %1565 = vmatpush1.msra.mxu0 0.0
  %1566 = vmatprep.subr.mxu0 0.0
  %1567 = vmatpush1.msra.mxu0 0.0
  %1568 = vmatprep.subr.mxu0 0.0
  %1569 = vmatpush1.msra.mxu0 0.0
  %1570 = vmatprep.subr.mxu0 0.0
  %1571 = vmatpush1.msra.mxu0 0.0
  %1572 = vmatprep.subr.mxu0 0.0
  %1573 = vmatpush1.msra.mxu0 0.0
  %1574 = vmatprep.mubr.f32.mxu0 0.0
  %1575 = vmatmul.mubr.f32.gmra.mrb[0].mxu0 %v1454
  %v1576 = vpop.f32.mrb[0].mxu0
  %v1577 = vadd.f32 0.0, %v1576
  %v1578 = vpop.f32.mrb[0].mxu0
  %v1579 = vadd.f32 0.0, %v1578
  %1580 = vmatprep.mubr.f32.mxu0 0.0
  %1581 = vmatmul.mubr.f32.gmra.mrb[0].mxu0 %v1455
  %v1582 = vpop.f32.mrb[0].mxu0
  %v1583 = vadd.f32 0.0, %v1582
  %v1584 = vpop.f32.mrb[0].mxu0
  %v1585 = vadd.f32 0.0, %v1584
  %1586 = vdwg.mxu0
  %1587 = vmatprep.subr.mxu0 0.0
  %1588 = vmatpush1.msra.mxu0 %v1464
  %1589 = vmatprep.subr.mxu0 0.0
  %1590 = vmatpush1.msra.mxu0 %v1467
  %1591 = vmatprep.subr.mxu0 0.0
  %1592 = vmatpush1.msra.mxu0 %v1470
  %1593 = vmatprep.subr.mxu0 0.0
  %1594 = vmatpush1.msra.mxu0 %v1473
  %1595 = vmatprep.subr.mxu0 0.0
  %1596 = vmatpush1.msra.mxu0 %v1476
  %1597 = vmatprep.subr.mxu0 0.0
  %1598 = vmatpush1.msra.mxu0 %v1479
  %1599 = vmatprep.subr.mxu0 0.0
  %1600 = vmatpush1.msra.mxu0 %v1482
  %1601 = vmatprep.subr.mxu0 0.0
  %1602 = vmatpush1.msra.mxu0 %v1485
  %1603 = vmatprep.subr.mxu0 0.0
  %1604 = vmatpush1.msra.mxu0 %v1488
  %1605 = vmatprep.subr.mxu0 0.0
  %1606 = vmatpush1.msra.mxu0 %v1491
  %1607 = vmatprep.subr.mxu0 0.0
  %1608 = vmatpush1.msra.mxu0 %v1494
  %1609 = vmatprep.subr.mxu0 0.0
  %1610 = vmatpush1.msra.mxu0 %v1497
  %1611 = vmatprep.subr.mxu0 0.0
  %1612 = vmatpush1.msra.mxu0 %v1500
  %1613 = vmatprep.subr.mxu0 0.0
  %1614 = vmatpush1.msra.mxu0 %v1503
  %1615 = vmatprep.subr.mxu0 0.0
  %1616 = vmatpush1.msra.mxu0 %v1506
  %1617 = vmatprep.subr.mxu0 0.0
  %1618 = vmatpush1.msra.mxu0 %v1509
  %1619 = vmatprep.subr.mxu0 0.0
  %1620 = vmatpush1.msra.mxu0 0.0
  %1621 = vmatprep.subr.mxu0 0.0
  %1622 = vmatpush1.msra.mxu0 0.0
  %1623 = vmatprep.subr.mxu0 0.0
  %1624 = vmatpush1.msra.mxu0 0.0
  %1625 = vmatprep.subr.mxu0 0.0
  %1626 = vmatpush1.msra.mxu0 0.0
  %1627 = vmatprep.subr.mxu0 0.0
  %1628 = vmatpush1.msra.mxu0 0.0
  %1629 = vmatprep.subr.mxu0 0.0
  %1630 = vmatpush1.msra.mxu0 0.0
  %1631 = vmatprep.subr.mxu0 0.0
  %1632 = vmatpush1.msra.mxu0 0.0
  %1633 = vmatprep.subr.mxu0 0.0
  %1634 = vmatpush1.msra.mxu0 0.0
  %1635 = vmatprep.subr.mxu0 0.0
  %1636 = vmatpush1.msra.mxu0 0.0
  %1637 = vmatprep.subr.mxu0 0.0
  %1638 = vmatpush1.msra.mxu0 0.0
  %1639 = vmatprep.subr.mxu0 0.0
  %1640 = vmatpush1.msra.mxu0 0.0
  %1641 = vmatprep.subr.mxu0 0.0
  %1642 = vmatpush1.msra.mxu0 0.0
  %1643 = vmatprep.subr.mxu0 0.0
  %1644 = vmatpush1.msra.mxu0 0.0
  %1645 = vmatprep.subr.mxu0 0.0
  %1646 = vmatpush1.msra.mxu0 0.0
  %1647 = vmatprep.subr.mxu0 0.0
  %1648 = vmatpush1.msra.mxu0 0.0
  %1649 = vmatprep.subr.mxu0 0.0
  %1650 = vmatpush1.msra.mxu0 0.0
  %1651 = vmatprep.mubr.f32.mxu0 0.0
  %1652 = vmatmul.mubr.f32.gmra.mrb[0].mxu0 %v1454
  %v1653 = vpop.f32.mrb[0].mxu0
  %v1654 = vadd.f32 0.0, %v1653
  %v1655 = vpop.f32.mrb[0].mxu0
  %1656 = vmatprep.mubr.f32.mxu0 0.0
  %1657 = vmatmul.mubr.f32.gmra.mrb[0].mxu0 %v1455
  %v1658 = vpop.f32.mrb[0].mxu0
  %v1659 = vadd.f32 0.0, %v1658
  %v1660 = vpop.f32.mrb[0].mxu0
  %1661 = vdwg.mxu0
  %v1662 = vld [vmem:[%s13] sm:$0xff]
  %v1663 = vld [vmem:[%s13 + $0x8] sm:$0xff]
  %v1664 = vld [vmem:[%s13 + $0x10] sm:$0xff]
  %v1665 = vld [vmem:[%s13 + $0x18] sm:$0xff]
  %v1666 = vld [vmem:[%s13 + $0x20] sm:$0xff]
  %v1667 = vld [vmem:[%s13 + $0x28] sm:$0xff]
  %v1668 = vld [vmem:[%s13 + $0x30] sm:$0xff]
  %v1669 = vld [vmem:[%s13 + $0x38] sm:$0xff]
  %v1670 = vld [vmem:[%s13 + $0x40] sm:$0xff]
  %v1671 = vld [vmem:[%s13 + $0x48] sm:$0xff]
  %v1672 = vld [vmem:[%s13 + $0x50] sm:$0xff]
  %v1673 = vld [vmem:[%s13 + $0x58] sm:$0xff]
  %v1674 = vld [vmem:[%s13 + $0x60] sm:$0xff]
  %v1675 = vld [vmem:[%s13 + $0x68] sm:$0xff]
  %v1676 = vld [vmem:[%s13 + $0x70] sm:$0xff]
  %v1677 = vld [vmem:[%s13 + $0x78] sm:$0xff]
  %v1678 = vld [vmem:[%s13 + $0x80] sm:$0xff]
  %v1679 = vld [vmem:[%s13 + $0x88] sm:$0xff]
  %v1680 = vld [vmem:[%s13 + $0x90] sm:$0xff]
  %v1681 = vld [vmem:[%s13 + $0x98] sm:$0xff]
  %v1682 = vld [vmem:[%s13 + $0xa0] sm:$0xff]
  %v1683 = vld [vmem:[%s13 + $0xa8] sm:$0xff]
  %v1684 = vld [vmem:[%s13 + $0xb0] sm:$0xff]
  %v1685 = vld [vmem:[%s13 + $0xb8] sm:$0xff]
  %v1686 = vld [vmem:[%s13 + $0xc0] sm:$0xff]
  %v1687 = vld [vmem:[%s13 + $0xc8] sm:$0xff]
  %v1688 = vld [vmem:[%s13 + $0xd0] sm:$0xff]
  %v1689 = vld [vmem:[%s13 + $0xd8] sm:$0xff]
  %v1690 = vld [vmem:[%s13 + $0xe0] sm:$0xff]
  %v1691 = vld [vmem:[%s13 + $0xe8] sm:$0xff]
  %v1692 = vld [vmem:[%s13 + $0xf0] sm:$0xff]
  %v1693 = vld [vmem:[%s13 + $0xf8] sm:$0xff]
  %v1694 = vld [vmem:[%s13 + $0x100] sm:$0xff]
  %v1695 = vld [vmem:[%s13 + $0x108] sm:$0xff]
  %v1696 = vld [vmem:[%s13 + $0x110] sm:$0xff]
  %v1697 = vld [vmem:[%s13 + $0x118] sm:$0xff]
  %v1698 = vld [vmem:[%s13 + $0x120] sm:$0xff]
  %v1699 = vld [vmem:[%s13 + $0x128] sm:$0xff]
  %v1700 = vld [vmem:[%s13 + $0x130] sm:$0xff]
  %v1701 = vld [vmem:[%s13 + $0x138] sm:$0xff]
  %v1702 = vld [vmem:[%s13 + $0x140] sm:$0xff]
  %v1703 = vld [vmem:[%s13 + $0x148] sm:$0xff]
  %v1704 = vld [vmem:[%s13 + $0x150] sm:$0xff]
  %v1705 = vld [vmem:[%s13 + $0x158] sm:$0xff]
  %v1706 = vld [vmem:[%s13 + $0x160] sm:$0xff]
  %v1707 = vld [vmem:[%s13 + $0x168] sm:$0xff]
  %v1708 = vld [vmem:[%s13 + $0x170] sm:$0xff]
  %v1709 = vld [vmem:[%s13 + $0x178] sm:$0xff]
  %1710 = vmatprep.subr.mxu0 %v1663
  %1711 = vmatpush1.msra.mxu0 %v1662
  %1712 = vmatprep.subr.mxu0 %v1666
  %1713 = vmatpush1.msra.mxu0 %v1665
  %1714 = vmatprep.subr.mxu0 %v1669
  %1715 = vmatpush1.msra.mxu0 %v1668
  %1716 = vmatprep.subr.mxu0 %v1672
  %1717 = vmatpush1.msra.mxu0 %v1671
  %1718 = vmatprep.subr.mxu0 %v1675
  %1719 = vmatpush1.msra.mxu0 %v1674
  %1720 = vmatprep.subr.mxu0 %v1678
  %1721 = vmatpush1.msra.mxu0 %v1677
  %1722 = vmatprep.subr.mxu0 %v1681
  %1723 = vmatpush1.msra.mxu0 %v1680
  %1724 = vmatprep.subr.mxu0 %v1684
  %1725 = vmatpush1.msra.mxu0 %v1683
  %1726 = vmatprep.subr.mxu0 %v1687
  %1727 = vmatpush1.msra.mxu0 %v1686
  %1728 = vmatprep.subr.mxu0 %v1690
  %1729 = vmatpush1.msra.mxu0 %v1689
  %1730 = vmatprep.subr.mxu0 %v1693
  %1731 = vmatpush1.msra.mxu0 %v1692
  %1732 = vmatprep.subr.mxu0 %v1696
  %1733 = vmatpush1.msra.mxu0 %v1695
  %1734 = vmatprep.subr.mxu0 %v1699
  %1735 = vmatpush1.msra.mxu0 %v1698
  %1736 = vmatprep.subr.mxu0 %v1702
  %1737 = vmatpush1.msra.mxu0 %v1701
  %1738 = vmatprep.subr.mxu0 %v1705
  %1739 = vmatpush1.msra.mxu0 %v1704
  %1740 = vmatprep.subr.mxu0 %v1708
  %1741 = vmatpush1.msra.mxu0 %v1707
  %1742 = vmatprep.subr.mxu0 0.0
  %1743 = vmatpush1.msra.mxu0 0.0
  %1744 = vmatprep.subr.mxu0 0.0
  %1745 = vmatpush1.msra.mxu0 0.0
  %1746 = vmatprep.subr.mxu0 0.0
  %1747 = vmatpush1.msra.mxu0 0.0
  %1748 = vmatprep.subr.mxu0 0.0
  %1749 = vmatpush1.msra.mxu0 0.0
  %1750 = vmatprep.subr.mxu0 0.0
  %1751 = vmatpush1.msra.mxu0 0.0
  %1752 = vmatprep.subr.mxu0 0.0
  %1753 = vmatpush1.msra.mxu0 0.0
  %1754 = vmatprep.subr.mxu0 0.0
  %1755 = vmatpush1.msra.mxu0 0.0
  %1756 = vmatprep.subr.mxu0 0.0
  %1757 = vmatpush1.msra.mxu0 0.0
  %1758 = vmatprep.subr.mxu0 0.0
  %1759 = vmatpush1.msra.mxu0 0.0
  %1760 = vmatprep.subr.mxu0 0.0
  %1761 = vmatpush1.msra.mxu0 0.0
  %1762 = vmatprep.subr.mxu0 0.0
  %1763 = vmatpush1.msra.mxu0 0.0
  %1764 = vmatprep.subr.mxu0 0.0
  %1765 = vmatpush1.msra.mxu0 0.0
  %1766 = vmatprep.subr.mxu0 0.0
  %1767 = vmatpush1.msra.mxu0 0.0
  %1768 = vmatprep.subr.mxu0 0.0
  %1769 = vmatpush1.msra.mxu0 0.0
  %1770 = vmatprep.subr.mxu0 0.0
  %1771 = vmatpush1.msra.mxu0 0.0
  %1772 = vmatprep.subr.mxu0 0.0
  %1773 = vmatpush1.msra.mxu0 0.0
  %1774 = vmatprep.mubr.f32.mxu0 0.0
  %1775 = vmatmul.mubr.f32.gmra.mrb[0].mxu0 %v1456
  %v1776 = vpop.f32.mrb[0].mxu0
  %v1777 = vadd.f32 0.0, %v1776
  %v1778 = vpop.f32.mrb[0].mxu0
  %v1779 = vadd.f32 0.0, %v1778
  %1780 = vmatprep.mubr.f32.mxu0 0.0
  %1781 = vmatmul.mubr.f32.gmra.mrb[0].mxu0 %v1457
  %v1782 = vpop.f32.mrb[0].mxu0
  %v1783 = vadd.f32 0.0, %v1782
  %v1784 = vpop.f32.mrb[0].mxu0
  %v1785 = vadd.f32 0.0, %v1784
  %1786 = vmatprep.mubr.f32.mxu0 0.0
  %1787 = vmatmul.mubr.f32.gmra.mrb[0].mxu0 %v1458
  %v1788 = vpop.f32.mrb[0].mxu0
  %v1789 = vadd.f32 0.0, %v1788
  %v1790 = vpop.f32.mrb[0].mxu0
  %v1791 = vadd.f32 0.0, %v1790
  %1792 = vdwg.mxu0
  %1793 = vmatprep.subr.mxu0 0.0
  %1794 = vmatpush1.msra.mxu0 %v1664
  %1795 = vmatprep.subr.mxu0 0.0
  %1796 = vmatpush1.msra.mxu0 %v1667
  %1797 = vmatprep.subr.mxu0 0.0
  %1798 = vmatpush1.msra.mxu0 %v1670
  %1799 = vmatprep.subr.mxu0 0.0
  %1800 = vmatpush1.msra.mxu0 %v1673
  %1801 = vmatprep.subr.mxu0 0.0
  %1802 = vmatpush1.msra.mxu0 %v1676
  %1803 = vmatprep.subr.mxu0 0.0
  %1804 = vmatpush1.msra.mxu0 %v1679
  %1805 = vmatprep.subr.mxu0 0.0
  %1806 = vmatpush1.msra.mxu0 %v1682
  %1807 = vmatprep.subr.mxu0 0.0
  %1808 = vmatpush1.msra.mxu0 %v1685
  %1809 = vmatprep.subr.mxu0 0.0
  %1810 = vmatpush1.msra.mxu0 %v1688
  %1811 = vmatprep.subr.mxu0 0.0
  %1812 = vmatpush1.msra.mxu0 %v1691
  %1813 = vmatprep.subr.mxu0 0.0
  %1814 = vmatpush1.msra.mxu0 %v1694
  %1815 = vmatprep.subr.mxu0 0.0
  %1816 = vmatpush1.msra.mxu0 %v1697
  %1817 = vmatprep.subr.mxu0 0.0
  %1818 = vmatpush1.msra.mxu0 %v1700
  %1819 = vmatprep.subr.mxu0 0.0
  %1820 = vmatpush1.msra.mxu0 %v1703
  %1821 = vmatprep.subr.mxu0 0.0
  %1822 = vmatpush1.msra.mxu0 %v1706
  %1823 = vmatprep.subr.mxu0 0.0
  %1824 = vmatpush1.msra.mxu0 %v1709
  %1825 = vmatprep.subr.mxu0 0.0
  %1826 = vmatpush1.msra.mxu0 0.0
  %1827 = vmatprep.subr.mxu0 0.0
  %1828 = vmatpush1.msra.mxu0 0.0
  %1829 = vmatprep.subr.mxu0 0.0
  %1830 = vmatpush1.msra.mxu0 0.0
  %1831 = vmatprep.subr.mxu0 0.0
  %1832 = vmatpush1.msra.mxu0 0.0
  %1833 = vmatprep.subr.mxu0 0.0
  %1834 = vmatpush1.msra.mxu0 0.0
  %1835 = vmatprep.subr.mxu0 0.0
  %1836 = vmatpush1.msra.mxu0 0.0
  %1837 = vmatprep.subr.mxu0 0.0
  %1838 = vmatpush1.msra.mxu0 0.0
  %1839 = vmatprep.subr.mxu0 0.0
  %1840 = vmatpush1.msra.mxu0 0.0
  %1841 = vmatprep.subr.mxu0 0.0
  %1842 = vmatpush1.msra.mxu0 0.0
  %1843 = vmatprep.subr.mxu0 0.0
  %1844 = vmatpush1.msra.mxu0 0.0
  %1845 = vmatprep.subr.mxu0 0.0
  %1846 = vmatpush1.msra.mxu0 0.0
  %1847 = vmatprep.subr.mxu0 0.0
  %1848 = vmatpush1.msra.mxu0 0.0
  %1849 = vmatprep.subr.mxu0 0.0
  %1850 = vmatpush1.msra.mxu0 0.0
  %1851 = vmatprep.subr.mxu0 0.0
  %1852 = vmatpush1.msra.mxu0 0.0
  %1853 = vmatprep.subr.mxu0 0.0
  %1854 = vmatpush1.msra.mxu0 0.0
  %1855 = vmatprep.subr.mxu0 0.0
  %1856 = vmatpush1.msra.mxu0 0.0
  %1857 = vmatprep.mubr.f32.mxu0 0.0
  %1858 = vmatmul.mubr.f32.gmra.mrb[0].mxu0 %v1456
  %v1859 = vpop.f32.mrb[0].mxu0
  %v1860 = vadd.f32 0.0, %v1859
  %v1861 = vpop.f32.mrb[0].mxu0
  %1862 = vmatprep.mubr.f32.mxu0 0.0
  %1863 = vmatmul.mubr.f32.gmra.mrb[0].mxu0 %v1457
  %v1864 = vpop.f32.mrb[0].mxu0
  %v1865 = vadd.f32 0.0, %v1864
  %v1866 = vpop.f32.mrb[0].mxu0
  %1867 = vmatprep.mubr.f32.mxu0 0.0
  %1868 = vmatmul.mubr.f32.gmra.mrb[0].mxu0 %v1458
  %v1869 = vpop.f32.mrb[0].mxu0
  %v1870 = vadd.f32 0.0, %v1869
  %v1871 = vpop.f32.mrb[0].mxu0
  %1872 = vdwg.mxu0
  %v1873 = vld [vmem:[%s14] sm:$0xff]
  %v1874 = vld [vmem:[%s14 + $0x8] sm:$0xff]
  %v1875 = vld [vmem:[%s14 + $0x10] sm:$0xff]
  %v1876 = vld [vmem:[%s14 + $0x18] sm:$0xff]
  %v1877 = vld [vmem:[%s14 + $0x20] sm:$0xff]
  %v1878 = vld [vmem:[%s14 + $0x28] sm:$0xff]
  %v1879 = vld [vmem:[%s14 + $0x30] sm:$0xff]
  %v1880 = vld [vmem:[%s14 + $0x38] sm:$0xff]
  %v1881 = vld [vmem:[%s14 + $0x40] sm:$0xff]
  %v1882 = vld [vmem:[%s14 + $0x48] sm:$0xff]
  %v1883 = vld [vmem:[%s14 + $0x50] sm:$0xff]
  %v1884 = vld [vmem:[%s14 + $0x58] sm:$0xff]
  %v1885 = vld [vmem:[%s14 + $0x60] sm:$0xff]
  %v1886 = vld [vmem:[%s14 + $0x68] sm:$0xff]
  %v1887 = vld [vmem:[%s14 + $0x70] sm:$0xff]
  %v1888 = vld [vmem:[%s14 + $0x78] sm:$0xff]
  %v1889 = vld [vmem:[%s14 + $0x80] sm:$0xff]
  %v1890 = vld [vmem:[%s14 + $0x88] sm:$0xff]
  %v1891 = vld [vmem:[%s14 + $0x90] sm:$0xff]
  %v1892 = vld [vmem:[%s14 + $0x98] sm:$0xff]
  %v1893 = vld [vmem:[%s14 + $0xa0] sm:$0xff]
  %v1894 = vld [vmem:[%s14 + $0xa8] sm:$0xff]
  %v1895 = vld [vmem:[%s14 + $0xb0] sm:$0xff]
  %v1896 = vld [vmem:[%s14 + $0xb8] sm:$0xff]
  %v1897 = vld [vmem:[%s14 + $0xc0] sm:$0xff]
  %v1898 = vld [vmem:[%s14 + $0xc8] sm:$0xff]
  %v1899 = vld [vmem:[%s14 + $0xd0] sm:$0xff]
  %v1900 = vld [vmem:[%s14 + $0xd8] sm:$0xff]
  %v1901 = vld [vmem:[%s14 + $0xe0] sm:$0xff]
  %v1902 = vld [vmem:[%s14 + $0xe8] sm:$0xff]
  %v1903 = vld [vmem:[%s14 + $0xf0] sm:$0xff]
  %v1904 = vld [vmem:[%s14 + $0xf8] sm:$0xff]
  %v1905 = vld [vmem:[%s14 + $0x100] sm:$0xff]
  %v1906 = vld [vmem:[%s14 + $0x108] sm:$0xff]
  %v1907 = vld [vmem:[%s14 + $0x110] sm:$0xff]
  %v1908 = vld [vmem:[%s14 + $0x118] sm:$0xff]
  %v1909 = vld [vmem:[%s14 + $0x120] sm:$0xff]
  %v1910 = vld [vmem:[%s14 + $0x128] sm:$0xff]
  %v1911 = vld [vmem:[%s14 + $0x130] sm:$0xff]
  %v1912 = vld [vmem:[%s14 + $0x138] sm:$0xff]
  %v1913 = vld [vmem:[%s14 + $0x140] sm:$0xff]
  %v1914 = vld [vmem:[%s14 + $0x148] sm:$0xff]
  %v1915 = vld [vmem:[%s14 + $0x150] sm:$0xff]
  %v1916 = vld [vmem:[%s14 + $0x158] sm:$0xff]
  %v1917 = vld [vmem:[%s14 + $0x160] sm:$0xff]
  %v1918 = vld [vmem:[%s14 + $0x168] sm:$0xff]
  %v1919 = vld [vmem:[%s14 + $0x170] sm:$0xff]
  %v1920 = vld [vmem:[%s14 + $0x178] sm:$0xff]
  %1921 = vmatprep.subr.mxu0 %v1874
  %1922 = vmatpush1.msra.mxu0 %v1873
  %1923 = vmatprep.subr.mxu0 %v1877
  %1924 = vmatpush1.msra.mxu0 %v1876
  %1925 = vmatprep.subr.mxu0 %v1880
  %1926 = vmatpush1.msra.mxu0 %v1879
  %1927 = vmatprep.subr.mxu0 %v1883
  %1928 = vmatpush1.msra.mxu0 %v1882
  %1929 = vmatprep.subr.mxu0 %v1886
  %1930 = vmatpush1.msra.mxu0 %v1885
  %1931 = vmatprep.subr.mxu0 %v1889
  %1932 = vmatpush1.msra.mxu0 %v1888
  %1933 = vmatprep.subr.mxu0 %v1892
  %1934 = vmatpush1.msra.mxu0 %v1891
  %1935 = vmatprep.subr.mxu0 %v1895
  %1936 = vmatpush1.msra.mxu0 %v1894
  %1937 = vmatprep.subr.mxu0 %v1898
  %1938 = vmatpush1.msra.mxu0 %v1897
  %1939 = vmatprep.subr.mxu0 %v1901
  %1940 = vmatpush1.msra.mxu0 %v1900
  %1941 = vmatprep.subr.mxu0 %v1904
  %1942 = vmatpush1.msra.mxu0 %v1903
  %1943 = vmatprep.subr.mxu0 %v1907
  %1944 = vmatpush1.msra.mxu0 %v1906
  %1945 = vmatprep.subr.mxu0 %v1910
  %1946 = vmatpush1.msra.mxu0 %v1909
  %1947 = vmatprep.subr.mxu0 %v1913
  %1948 = vmatpush1.msra.mxu0 %v1912
  %1949 = vmatprep.subr.mxu0 %v1916
  %1950 = vmatpush1.msra.mxu0 %v1915
  %1951 = vmatprep.subr.mxu0 %v1919
  %1952 = vmatpush1.msra.mxu0 %v1918
  %1953 = vmatprep.subr.mxu0 0.0
  %1954 = vmatpush1.msra.mxu0 0.0
  %1955 = vmatprep.subr.mxu0 0.0
  %1956 = vmatpush1.msra.mxu0 0.0
  %1957 = vmatprep.subr.mxu0 0.0
  %1958 = vmatpush1.msra.mxu0 0.0
  %1959 = vmatprep.subr.mxu0 0.0
  %1960 = vmatpush1.msra.mxu0 0.0
  %1961 = vmatprep.subr.mxu0 0.0
  %1962 = vmatpush1.msra.mxu0 0.0
  %1963 = vmatprep.subr.mxu0 0.0
  %1964 = vmatpush1.msra.mxu0 0.0
  %1965 = vmatprep.subr.mxu0 0.0
  %1966 = vmatpush1.msra.mxu0 0.0
  %1967 = vmatprep.subr.mxu0 0.0
  %1968 = vmatpush1.msra.mxu0 0.0
  %1969 = vmatprep.subr.mxu0 0.0
  %1970 = vmatpush1.msra.mxu0 0.0
  %1971 = vmatprep.subr.mxu0 0.0
  %1972 = vmatpush1.msra.mxu0 0.0
  %1973 = vmatprep.subr.mxu0 0.0
  %1974 = vmatpush1.msra.mxu0 0.0
  %1975 = vmatprep.subr.mxu0 0.0
  %1976 = vmatpush1.msra.mxu0 0.0
  %1977 = vmatprep.subr.mxu0 0.0
  %1978 = vmatpush1.msra.mxu0 0.0
  %1979 = vmatprep.subr.mxu0 0.0
  %1980 = vmatpush1.msra.mxu0 0.0
  %1981 = vmatprep.subr.mxu0 0.0
  %1982 = vmatpush1.msra.mxu0 0.0
  %1983 = vmatprep.subr.mxu0 0.0
  %1984 = vmatpush1.msra.mxu0 0.0
  %1985 = vmatprep.mubr.f32.mxu0 0.0
  %1986 = vmatmul.mubr.f32.gmra.mrb[0].mxu0 %v1459
  %v1987 = vpop.f32.mrb[0].mxu0
  %v1988 = vadd.f32 0.0, %v1987
  %v1989 = vpop.f32.mrb[0].mxu0
  %v1990 = vadd.f32 0.0, %v1989
  %1991 = vmatprep.mubr.f32.mxu0 0.0
  %1992 = vmatmul.mubr.f32.gmra.mrb[0].mxu0 %v1460
  %v1993 = vpop.f32.mrb[0].mxu0
  %v1994 = vadd.f32 0.0, %v1993
  %v1995 = vpop.f32.mrb[0].mxu0
  %v1996 = vadd.f32 0.0, %v1995
  %1997 = vmatprep.mubr.f32.mxu0 0.0
  %1998 = vmatmul.mubr.f32.gmra.mrb[0].mxu0 %v1461
  %v1999 = vpop.f32.mrb[0].mxu0
  %v2000 = vadd.f32 0.0, %v1999
  %v2001 = vpop.f32.mrb[0].mxu0
  %v2002 = vadd.f32 0.0, %v2001
  %2003 = vdwg.mxu0
  %2004 = vmatprep.subr.mxu0 0.0
  %2005 = vmatpush1.msra.mxu0 %v1875
  %2006 = vmatprep.subr.mxu0 0.0
  %2007 = vmatpush1.msra.mxu0 %v1878
  %2008 = vmatprep.subr.mxu0 0.0
  %2009 = vmatpush1.msra.mxu0 %v1881
  %2010 = vmatprep.subr.mxu0 0.0
  %2011 = vmatpush1.msra.mxu0 %v1884
  %2012 = vmatprep.subr.mxu0 0.0
  %2013 = vmatpush1.msra.mxu0 %v1887
  %2014 = vmatprep.subr.mxu0 0.0
  %2015 = vmatpush1.msra.mxu0 %v1890
  %2016 = vmatprep.subr.mxu0 0.0
  %2017 = vmatpush1.msra.mxu0 %v1893
  %2018 = vmatprep.subr.mxu0 0.0
  %2019 = vmatpush1.msra.mxu0 %v1896
  %2020 = vmatprep.subr.mxu0 0.0
  %2021 = vmatpush1.msra.mxu0 %v1899
  %2022 = vmatprep.subr.mxu0 0.0
  %2023 = vmatpush1.msra.mxu0 %v1902
  %2024 = vmatprep.subr.mxu0 0.0
  %2025 = vmatpush1.msra.mxu0 %v1905
  %2026 = vmatprep.subr.mxu0 0.0
  %2027 = vmatpush1.msra.mxu0 %v1908
  %2028 = vmatprep.subr.mxu0 0.0
  %2029 = vmatpush1.msra.mxu0 %v1911
  %2030 = vmatprep.subr.mxu0 0.0
  %2031 = vmatpush1.msra.mxu0 %v1914
  %2032 = vmatprep.subr.mxu0 0.0
  %2033 = vmatpush1.msra.mxu0 %v1917
  %2034 = vmatprep.subr.mxu0 0.0
  %2035 = vmatpush1.msra.mxu0 %v1920
  %2036 = vmatprep.subr.mxu0 0.0
  %2037 = vmatpush1.msra.mxu0 0.0
  %2038 = vmatprep.subr.mxu0 0.0
  %2039 = vmatpush1.msra.mxu0 0.0
  %2040 = vmatprep.subr.mxu0 0.0
  %2041 = vmatpush1.msra.mxu0 0.0
  %2042 = vmatprep.subr.mxu0 0.0
  %2043 = vmatpush1.msra.mxu0 0.0
  %2044 = vmatprep.subr.mxu0 0.0
  %2045 = vmatpush1.msra.mxu0 0.0
  %2046 = vmatprep.subr.mxu0 0.0
  %2047 = vmatpush1.msra.mxu0 0.0
  %2048 = vmatprep.subr.mxu0 0.0
  %2049 = vmatpush1.msra.mxu0 0.0
  %2050 = vmatprep.subr.mxu0 0.0
  %2051 = vmatpush1.msra.mxu0 0.0
  %2052 = vmatprep.subr.mxu0 0.0
  %2053 = vmatpush1.msra.mxu0 0.0
  %2054 = vmatprep.subr.mxu0 0.0
  %2055 = vmatpush1.msra.mxu0 0.0
  %2056 = vmatprep.subr.mxu0 0.0
  %2057 = vmatpush1.msra.mxu0 0.0
  %2058 = vmatprep.subr.mxu0 0.0
  %2059 = vmatpush1.msra.mxu0 0.0
  %2060 = vmatprep.subr.mxu0 0.0
  %2061 = vmatpush1.msra.mxu0 0.0
  %2062 = vmatprep.subr.mxu0 0.0
  %2063 = vmatpush1.msra.mxu0 0.0
  %2064 = vmatprep.subr.mxu0 0.0
  %2065 = vmatpush1.msra.mxu0 0.0
  %2066 = vmatprep.subr.mxu0 0.0
  %2067 = vmatpush1.msra.mxu0 0.0
  %2068 = vmatprep.mubr.f32.mxu0 0.0
  %2069 = vmatmul.mubr.f32.gmra.mrb[0].mxu0 %v1459
  %v2070 = vpop.f32.mrb[0].mxu0
  %v2071 = vadd.f32 0.0, %v2070
  %v2072 = vpop.f32.mrb[0].mxu0
  %2073 = vmatprep.mubr.f32.mxu0 0.0
  %2074 = vmatmul.mubr.f32.gmra.mrb[0].mxu0 %v1460
  %v2075 = vpop.f32.mrb[0].mxu0
  %v2076 = vadd.f32 0.0, %v2075
  %v2077 = vpop.f32.mrb[0].mxu0
  %2078 = vmatprep.mubr.f32.mxu0 0.0
  %2079 = vmatmul.mubr.f32.gmra.mrb[0].mxu0 %v1461
  %v2080 = vpop.f32.mrb[0].mxu0
  %v2081 = vadd.f32 0.0, %v2080
  %v2082 = vpop.f32.mrb[0].mxu0
  %2083 = vdwg.mxu0
  %v2084 = vadd.f32 %v1454, %v123
  %v2085 = vadd.f32 %v1454, %v130
  %v2086 = vadd.f32 %v1454, %v137
  %v2087 = vadd.f32 %v1454, %v144
  %v2088 = vadd.f32 %v1454, %v151
  %v2089 = vadd.f32 %v1454, %v158
  %v2090 = vadd.f32 %v1454, %v165
  %v2091 = vadd.f32 %v1454, %v172
  %v2092 = vadd.f32 %v1454, %v179
  %v2093 = vadd.f32 %v1454, %v186
  %v2094 = vadd.f32 %v1454, %v193
  %v2095 = vadd.f32 %v1454, %v200
  %v2096 = vadd.f32 %v1454, %v207
  %v2097 = vadd.f32 %v1454, %v214
  %v2098 = vadd.f32 %v1454, %v221
  %v2099 = vadd.f32 %v1454, %v228
  %v2100 = vrot.slane %v2084, 4
  %v2101 = vmax.f32 %v2084, %v2100
  %v2102 = vrot.slane %v2101, 2
  %v2103 = vmax.f32 %v2101, %v2102
  %v2104 = vrot.slane %v2103, 1
  %v2105 = vmax.f32 %v2103, %v2104
  %v2106 = vrot.slane %v2085, 4
  %v2107 = vmax.f32 %v2085, %v2106
  %v2108 = vrot.slane %v2107, 2
  %v2109 = vmax.f32 %v2107, %v2108
  %v2110 = vrot.slane %v2109, 1
  %v2111 = vmax.f32 %v2109, %v2110
  %v2112 = vrot.slane %v2086, 4
  %v2113 = vmax.f32 %v2086, %v2112
  %v2114 = vrot.slane %v2113, 2
  %v2115 = vmax.f32 %v2113, %v2114
  %v2116 = vrot.slane %v2115, 1
  %v2117 = vmax.f32 %v2115, %v2116
  %v2118 = vrot.slane %v2087, 4
  %v2119 = vmax.f32 %v2087, %v2118
  %v2120 = vrot.slane %v2119, 2
  %v2121 = vmax.f32 %v2119, %v2120
  %v2122 = vrot.slane %v2121, 1
  %v2123 = vmax.f32 %v2121, %v2122
  %v2124 = vrot.slane %v2088, 4
  %v2125 = vmax.f32 %v2088, %v2124
  %v2126 = vrot.slane %v2125, 2
  %v2127 = vmax.f32 %v2125, %v2126
  %v2128 = vrot.slane %v2127, 1
  %v2129 = vmax.f32 %v2127, %v2128
  %v2130 = vrot.slane %v2089, 4
  %v2131 = vmax.f32 %v2089, %v2130
  %v2132 = vrot.slane %v2131, 2
  %v2133 = vmax.f32 %v2131, %v2132
  %v2134 = vrot.slane %v2133, 1
  %v2135 = vmax.f32 %v2133, %v2134
  %v2136 = vrot.slane %v2090, 4
  %v2137 = vmax.f32 %v2090, %v2136
  %v2138 = vrot.slane %v2137, 2
  %v2139 = vmax.f32 %v2137, %v2138
  %v2140 = vrot.slane %v2139, 1
  %v2141 = vmax.f32 %v2139, %v2140
  %v2142 = vrot.slane %v2091, 4
  %v2143 = vmax.f32 %v2091, %v2142
  %v2144 = vrot.slane %v2143, 2
  %v2145 = vmax.f32 %v2143, %v2144
  %v2146 = vrot.slane %v2145, 1
  %v2147 = vmax.f32 %v2145, %v2146
  %v2148 = vrot.slane %v2092, 4
  %v2149 = vmax.f32 %v2092, %v2148
  %v2150 = vrot.slane %v2149, 2
  %v2151 = vmax.f32 %v2149, %v2150
  %v2152 = vrot.slane %v2151, 1
  %v2153 = vmax.f32 %v2151, %v2152
  %v2154 = vrot.slane %v2093, 4
  %v2155 = vmax.f32 %v2093, %v2154
  %v2156 = vrot.slane %v2155, 2
  %v2157 = vmax.f32 %v2155, %v2156
  %v2158 = vrot.slane %v2157, 1
  %v2159 = vmax.f32 %v2157, %v2158
  %v2160 = vrot.slane %v2094, 4
  %v2161 = vmax.f32 %v2094, %v2160
  %v2162 = vrot.slane %v2161, 2
  %v2163 = vmax.f32 %v2161, %v2162
  %v2164 = vrot.slane %v2163, 1
  %v2165 = vmax.f32 %v2163, %v2164
  %v2166 = vrot.slane %v2095, 4
  %v2167 = vmax.f32 %v2095, %v2166
  %v2168 = vrot.slane %v2167, 2
  %v2169 = vmax.f32 %v2167, %v2168
  %v2170 = vrot.slane %v2169, 1
  %v2171 = vmax.f32 %v2169, %v2170
  %v2172 = vrot.slane %v2096, 4
  %v2173 = vmax.f32 %v2096, %v2172
  %v2174 = vrot.slane %v2173, 2
  %v2175 = vmax.f32 %v2173, %v2174
  %v2176 = vrot.slane %v2175, 1
  %v2177 = vmax.f32 %v2175, %v2176
  %v2178 = vrot.slane %v2097, 4
  %v2179 = vmax.f32 %v2097, %v2178
  %v2180 = vrot.slane %v2179, 2
  %v2181 = vmax.f32 %v2179, %v2180
  %v2182 = vrot.slane %v2181, 1
  %v2183 = vmax.f32 %v2181, %v2182
  %v2184 = vrot.slane %v2098, 4
  %v2185 = vmax.f32 %v2098, %v2184
  %v2186 = vrot.slane %v2185, 2
  %v2187 = vmax.f32 %v2185, %v2186
  %v2188 = vrot.slane %v2187, 1
  %v2189 = vmax.f32 %v2187, %v2188
  %v2190 = vrot.slane %v2099, 4
  %v2191 = vmax.f32 %v2099, %v2190
  %v2192 = vrot.slane %v2191, 2
  %v2193 = vmax.f32 %v2191, %v2192
  %v2194 = vrot.slane %v2193, 1
  %v2195 = vmax.f32 %v2193, %v2194
  %v2196 = vmax.f32 %v2105, -1e+30
  %v2197 = vmax.f32 %v2111, -1e+30
  %v2198 = vmax.f32 %v2117, -1e+30
  %v2199 = vmax.f32 %v2123, -1e+30
  %v2200 = vmax.f32 %v2129, -1e+30
  %v2201 = vmax.f32 %v2135, -1e+30
  %v2202 = vmax.f32 %v2141, -1e+30
  %v2203 = vmax.f32 %v2147, -1e+30
  %v2204 = vmax.f32 %v2153, -1e+30
  %v2205 = vmax.f32 %v2159, -1e+30
  %v2206 = vmax.f32 %v2165, -1e+30
  %v2207 = vmax.f32 %v2171, -1e+30
  %v2208 = vmax.f32 %v2177, -1e+30
  %v2209 = vmax.f32 %v2183, -1e+30
  %v2210 = vmax.f32 %v2189, -1e+30
  %v2211 = vmax.f32 %v2195, -1e+30
  %v2212 = vadd.f32 %v1455, %v232
  %v2213 = vadd.f32 %v1455, %v236
  %v2214 = vadd.f32 %v1455, %v240
  %v2215 = vadd.f32 %v1455, %v244
  %v2216 = vadd.f32 %v1455, %v248
  %v2217 = vadd.f32 %v1455, %v252
  %v2218 = vadd.f32 %v1455, %v256
  %v2219 = vadd.f32 %v1455, %v260
  %v2220 = vadd.f32 %v1455, %v264
  %v2221 = vadd.f32 %v1455, %v268
  %v2222 = vadd.f32 %v1455, %v272
  %v2223 = vadd.f32 %v1455, %v276
  %v2224 = vadd.f32 %v1455, %v280
  %v2225 = vadd.f32 %v1455, %v284
  %v2226 = vadd.f32 %v1455, %v288
  %v2227 = vadd.f32 %v1455, %v292
  %v2228 = vrot.slane %v2212, 4
  %v2229 = vmax.f32 %v2212, %v2228
  %v2230 = vrot.slane %v2229, 2
  %v2231 = vmax.f32 %v2229, %v2230
  %v2232 = vrot.slane %v2231, 1
  %v2233 = vmax.f32 %v2231, %v2232
  %v2234 = vrot.slane %v2213, 4
  %v2235 = vmax.f32 %v2213, %v2234
  %v2236 = vrot.slane %v2235, 2
  %v2237 = vmax.f32 %v2235, %v2236
  %v2238 = vrot.slane %v2237, 1
  %v2239 = vmax.f32 %v2237, %v2238
  %v2240 = vrot.slane %v2214, 4
  %v2241 = vmax.f32 %v2214, %v2240
  %v2242 = vrot.slane %v2241, 2
  %v2243 = vmax.f32 %v2241, %v2242
  %v2244 = vrot.slane %v2243, 1
  %v2245 = vmax.f32 %v2243, %v2244
  %v2246 = vrot.slane %v2215, 4
  %v2247 = vmax.f32 %v2215, %v2246
  %v2248 = vrot.slane %v2247, 2
  %v2249 = vmax.f32 %v2247, %v2248
  %v2250 = vrot.slane %v2249, 1
  %v2251 = vmax.f32 %v2249, %v2250
  %v2252 = vrot.slane %v2216, 4
  %v2253 = vmax.f32 %v2216, %v2252
  %v2254 = vrot.slane %v2253, 2
  %v2255 = vmax.f32 %v2253, %v2254
  %v2256 = vrot.slane %v2255, 1
  %v2257 = vmax.f32 %v2255, %v2256
  %v2258 = vrot.slane %v2217, 4
  %v2259 = vmax.f32 %v2217, %v2258
  %v2260 = vrot.slane %v2259, 2
  %v2261 = vmax.f32 %v2259, %v2260
  %v2262 = vrot.slane %v2261, 1
  %v2263 = vmax.f32 %v2261, %v2262
  %v2264 = vrot.slane %v2218, 4
  %v2265 = vmax.f32 %v2218, %v2264
  %v2266 = vrot.slane %v2265, 2
  %v2267 = vmax.f32 %v2265, %v2266
  %v2268 = vrot.slane %v2267, 1
  %v2269 = vmax.f32 %v2267, %v2268
  %v2270 = vrot.slane %v2219, 4
  %v2271 = vmax.f32 %v2219, %v2270
  %v2272 = vrot.slane %v2271, 2
  %v2273 = vmax.f32 %v2271, %v2272
  %v2274 = vrot.slane %v2273, 1
  %v2275 = vmax.f32 %v2273, %v2274
  %v2276 = vrot.slane %v2220, 4
  %v2277 = vmax.f32 %v2220, %v2276
  %v2278 = vrot.slane %v2277, 2
  %v2279 = vmax.f32 %v2277, %v2278
  %v2280 = vrot.slane %v2279, 1
  %v2281 = vmax.f32 %v2279, %v2280
  %v2282 = vrot.slane %v2221, 4
  %v2283 = vmax.f32 %v2221, %v2282
  %v2284 = vrot.slane %v2283, 2
  %v2285 = vmax.f32 %v2283, %v2284
  %v2286 = vrot.slane %v2285, 1
  %v2287 = vmax.f32 %v2285, %v2286
  %v2288 = vrot.slane %v2222, 4
  %v2289 = vmax.f32 %v2222, %v2288
  %v2290 = vrot.slane %v2289, 2
  %v2291 = vmax.f32 %v2289, %v2290
  %v2292 = vrot.slane %v2291, 1
  %v2293 = vmax.f32 %v2291, %v2292
  %v2294 = vrot.slane %v2223, 4
  %v2295 = vmax.f32 %v2223, %v2294
  %v2296 = vrot.slane %v2295, 2
  %v2297 = vmax.f32 %v2295, %v2296
  %v2298 = vrot.slane %v2297, 1
  %v2299 = vmax.f32 %v2297, %v2298
  %v2300 = vrot.slane %v2224, 4
  %v2301 = vmax.f32 %v2224, %v2300
  %v2302 = vrot.slane %v2301, 2
  %v2303 = vmax.f32 %v2301, %v2302
  %v2304 = vrot.slane %v2303, 1
  %v2305 = vmax.f32 %v2303, %v2304
  %v2306 = vrot.slane %v2225, 4
  %v2307 = vmax.f32 %v2225, %v2306
  %v2308 = vrot.slane %v2307, 2
  %v2309 = vmax.f32 %v2307, %v2308
  %v2310 = vrot.slane %v2309, 1
  %v2311 = vmax.f32 %v2309, %v2310
  %v2312 = vrot.slane %v2226, 4
  %v2313 = vmax.f32 %v2226, %v2312
  %v2314 = vrot.slane %v2313, 2
  %v2315 = vmax.f32 %v2313, %v2314
  %v2316 = vrot.slane %v2315, 1
  %v2317 = vmax.f32 %v2315, %v2316
  %v2318 = vrot.slane %v2227, 4
  %v2319 = vmax.f32 %v2227, %v2318
  %v2320 = vrot.slane %v2319, 2
  %v2321 = vmax.f32 %v2319, %v2320
  %v2322 = vrot.slane %v2321, 1
  %v2323 = vmax.f32 %v2321, %v2322
  %v2324 = vmax.f32 %v2196, %v2233
  %v2325 = vmax.f32 %v2197, %v2239
  %v2326 = vmax.f32 %v2198, %v2245
  %v2327 = vmax.f32 %v2199, %v2251
  %v2328 = vmax.f32 %v2200, %v2257
  %v2329 = vmax.f32 %v2201, %v2263
  %v2330 = vmax.f32 %v2202, %v2269
  %v2331 = vmax.f32 %v2203, %v2275
  %v2332 = vmax.f32 %v2204, %v2281
  %v2333 = vmax.f32 %v2205, %v2287
  %v2334 = vmax.f32 %v2206, %v2293
  %v2335 = vmax.f32 %v2207, %v2299
  %v2336 = vmax.f32 %v2208, %v2305
  %v2337 = vmax.f32 %v2209, %v2311
  %v2338 = vmax.f32 %v2210, %v2317
  %v2339 = vmax.f32 %v2211, %v2323
  %v2356 = vsel %vm1168, %v2325, %v2324
  %v2357 = vsel %vm1170, %v2326, %v2356
  %v2358 = vsel %vm1172, %v2327, %v2357
  %v2359 = vsel %vm1174, %v2328, %v2358
  %v2360 = vsel %vm1176, %v2329, %v2359
  %v2361 = vsel %vm1178, %v2330, %v2360
  %v2362 = vsel %vm1180, %v2331, %v2361
  %v2363 = vsel %vm1168, %v2333, %v2332
  %v2364 = vsel %vm1170, %v2334, %v2363
  %v2365 = vsel %vm1172, %v2335, %v2364
  %v2366 = vsel %vm1174, %v2336, %v2365
  %v2367 = vsel %vm1176, %v2337, %v2366
  %v2368 = vsel %vm1178, %v2338, %v2367
  %v2369 = vsel %vm1180, %v2339, %v2368
  %v2372 = vsel %vm1150, %v2362, 0.0
  %v2373 = vsel %vm1151, %v2369, 0.0
  %v2374 = vld [vmem:[%s15] sm:$0xff]
  %v2375 = vld [vmem:[%s15 + $0x8] sm:$0xff]
  %v2376 = vld [vmem:[%s15 + $0x10] sm:$0xff]
  %v2377 = vld [vmem:[%s15 + $0x18] sm:$0xff]
  %v2378 = vld [vmem:[%s15 + $0x20] sm:$0xff]
  %v2379 = vld [vmem:[%s15 + $0x28] sm:$0xff]
  %v2380 = vld [vmem:[%s15 + $0x30] sm:$0xff]
  %v2381 = vld [vmem:[%s15 + $0x38] sm:$0xff]
  %v2382 = vld [vmem:[%s15 + $0x40] sm:$0xff]
  %v2383 = vld [vmem:[%s15 + $0x48] sm:$0xff]
  %v2384 = vld [vmem:[%s15 + $0x50] sm:$0xff]
  %v2385 = vld [vmem:[%s15 + $0x58] sm:$0xff]
  %v2386 = vld [vmem:[%s15 + $0x60] sm:$0xff]
  %v2387 = vld [vmem:[%s15 + $0x68] sm:$0xff]
  %v2388 = vld [vmem:[%s15 + $0x70] sm:$0xff]
  %v2389 = vld [vmem:[%s15 + $0x78] sm:$0xff]
  %2390 = vmatprep.subr.mxu0 0.0
  %2391 = vmatpush1.msra.mxu0 %v2374
  %2392 = vmatprep.subr.mxu0 0.0
  %2393 = vmatpush1.msra.mxu0 %v2375
  %2394 = vmatprep.subr.mxu0 0.0
  %2395 = vmatpush1.msra.mxu0 %v2376
  %2396 = vmatprep.subr.mxu0 0.0
  %2397 = vmatpush1.msra.mxu0 %v2377
  %2398 = vmatprep.subr.mxu0 0.0
  %2399 = vmatpush1.msra.mxu0 %v2378
  %2400 = vmatprep.subr.mxu0 0.0
  %2401 = vmatpush1.msra.mxu0 %v2379
  %2402 = vmatprep.subr.mxu0 0.0
  %2403 = vmatpush1.msra.mxu0 %v2380
  %2404 = vmatprep.subr.mxu0 0.0
  %2405 = vmatpush1.msra.mxu0 %v2381
  %2406 = vmatprep.subr.mxu0 0.0
  %2407 = vmatpush1.msra.mxu0 %v2382
  %2408 = vmatprep.subr.mxu0 0.0
  %2409 = vmatpush1.msra.mxu0 %v2383
  %2410 = vmatprep.subr.mxu0 0.0
  %2411 = vmatpush1.msra.mxu0 %v2384
  %2412 = vmatprep.subr.mxu0 0.0
  %2413 = vmatpush1.msra.mxu0 %v2385
  %2414 = vmatprep.subr.mxu0 0.0
  %2415 = vmatpush1.msra.mxu0 %v2386
  %2416 = vmatprep.subr.mxu0 0.0
  %2417 = vmatpush1.msra.mxu0 %v2387
  %2418 = vmatprep.subr.mxu0 0.0
  %2419 = vmatpush1.msra.mxu0 %v2388
  %2420 = vmatprep.subr.mxu0 0.0
  %2421 = vmatpush1.msra.mxu0 %v2389
  %2422 = vmatprep.subr.mxu0 0.0
  %2423 = vmatpush1.msra.mxu0 0.0
  %2424 = vmatprep.subr.mxu0 0.0
  %2425 = vmatpush1.msra.mxu0 0.0
  %2426 = vmatprep.subr.mxu0 0.0
  %2427 = vmatpush1.msra.mxu0 0.0
  %2428 = vmatprep.subr.mxu0 0.0
  %2429 = vmatpush1.msra.mxu0 0.0
  %2430 = vmatprep.subr.mxu0 0.0
  %2431 = vmatpush1.msra.mxu0 0.0
  %2432 = vmatprep.subr.mxu0 0.0
  %2433 = vmatpush1.msra.mxu0 0.0
  %2434 = vmatprep.subr.mxu0 0.0
  %2435 = vmatpush1.msra.mxu0 0.0
  %2436 = vmatprep.subr.mxu0 0.0
  %2437 = vmatpush1.msra.mxu0 0.0
  %2438 = vmatprep.subr.mxu0 0.0
  %2439 = vmatpush1.msra.mxu0 0.0
  %2440 = vmatprep.subr.mxu0 0.0
  %2441 = vmatpush1.msra.mxu0 0.0
  %2442 = vmatprep.subr.mxu0 0.0
  %2443 = vmatpush1.msra.mxu0 0.0
  %2444 = vmatprep.subr.mxu0 0.0
  %2445 = vmatpush1.msra.mxu0 0.0
  %2446 = vmatprep.subr.mxu0 0.0
  %2447 = vmatpush1.msra.mxu0 0.0
  %2448 = vmatprep.subr.mxu0 0.0
  %2449 = vmatpush1.msra.mxu0 0.0
  %2450 = vmatprep.subr.mxu0 0.0
  %2451 = vmatpush1.msra.mxu0 0.0
  %2452 = vmatprep.subr.mxu0 0.0
  %2453 = vmatpush1.msra.mxu0 0.0
  %2454 = vmatprep.mubr.f32.mxu0 0.0
  %2455 = vmatmul.mubr.f32.gmra.mrb[0].mxu0 %v2372
  %v2456 = vpop.f32.mrb[0].mxu0
  %v2457 = vadd.f32 0.0, %v2456
  %v2458 = vpop.f32.mrb[0].mxu0
  %2459 = vmatprep.mubr.f32.mxu0 0.0
  %2460 = vmatmul.mubr.f32.gmra.mrb[0].mxu0 %v2373
  %v2461 = vpop.f32.mrb[0].mxu0
  %v2462 = vadd.f32 0.0, %v2461
  %v2463 = vpop.f32.mrb[0].mxu0
  %2464 = vdwg.mxu0
  %2465 = vst [vmem:[#allocation2] sm:$0xff] %v1577
  %2466 = vst [vmem:[#allocation2 + $0x8] sm:$0xff] %v1583
  %2467 = vst [vmem:[#allocation2 + $0x10] sm:$0xff] %v1777
  %2468 = vst [vmem:[#allocation2 + $0x18] sm:$0xff] %v1783
  %2469 = vst [vmem:[#allocation2 + $0x20] sm:$0x3] %v1789
  %2470 = vst [vmem:[#allocation2 + $0x28] sm:$0xff] %v1579
  %2471 = vst [vmem:[#allocation2 + $0x30] sm:$0xff] %v1585
  %2472 = vst [vmem:[#allocation2 + $0x38] sm:$0xff] %v1988
  %2473 = vst [vmem:[#allocation2 + $0x40] sm:$0xff] %v1994
  %2474 = vst [vmem:[#allocation2 + $0x48] sm:$0x3] %v2000
  %2475 = vst [vmem:[#allocation2 + $0x50] sm:$0xff] %v1990
  %2476 = vst [vmem:[#allocation2 + $0x58] sm:$0xff] %v1996
  %2477 = vst [vmem:[#allocation2 + $0x60] sm:$0x3] %v2002
  %2478 = vst [vmem:[#allocation2 + $0x68] sm:$0xff] %v1779
  %2479 = vst [vmem:[#allocation2 + $0x70] sm:$0xff] %v1785
  %2480 = vst [vmem:[#allocation2 + $0x78] sm:$0x3] %v1791
  %v2481 = vld [vmem:[#allocation2] sm:$0xff]
  %v2482 = vld [vmem:[#allocation2 + $0x8] sm:$0xff]
  %v2483 = vld [vmem:[#allocation2 + $0x10] sm:$0xff]
  %v2484 = vld [vmem:[#allocation2 + $0x18] sm:$0xff]
  %v2485 = vld [vmem:[#allocation2 + $0x20] sm:$0xff]
  %v2486 = vld [vmem:[#allocation2 + $0x28] sm:$0xff]
  %v2487 = vld [vmem:[#allocation2 + $0x30] sm:$0xff]
  %v2488 = vld [vmem:[#allocation2 + $0x38] sm:$0xff]
  %v2489 = vld [vmem:[#allocation2 + $0x40] sm:$0xff]
  %v2490 = vld [vmem:[#allocation2 + $0x48] sm:$0xff]
  %v2491 = vld [vmem:[#allocation2 + $0x50] sm:$0xff]
  %v2492 = vld [vmem:[#allocation2 + $0x58] sm:$0xff]
  %v2493 = vld [vmem:[#allocation2 + $0x60] sm:$0xff]
  %v2494 = vld [vmem:[#allocation2 + $0x68] sm:$0xff]
  %v2495 = vld [vmem:[#allocation2 + $0x70] sm:$0xff]
  %v2496 = vld [vmem:[#allocation2 + $0x78] sm:$0xff]
  %2497 = vmatprep.subr.mxu0 0.0
  %2498 = vmatpush1.msra.mxu0 %v2481
  %2499 = vmatprep.subr.mxu0 0.0
  %2500 = vmatpush1.msra.mxu0 %v2482
  %2501 = vmatprep.subr.mxu0 0.0
  %2502 = vmatpush1.msra.mxu0 %v2483
  %2503 = vmatprep.subr.mxu0 0.0
  %2504 = vmatpush1.msra.mxu0 %v2484
  %2505 = vmatprep.subr.mxu0 0.0
  %2506 = vmatpush1.msra.mxu0 %v2485
  %2507 = vmatprep.subr.mxu0 0.0
  %2508 = vmatpush1.msra.mxu0 %v2486
  %2509 = vmatprep.subr.mxu0 0.0
  %2510 = vmatpush1.msra.mxu0 %v2487
  %2511 = vmatprep.subr.mxu0 0.0
  %2512 = vmatpush1.msra.mxu0 %v2488
  %2513 = vmatprep.subr.mxu0 0.0
  %2514 = vmatpush1.msra.mxu0 %v2489
  %2515 = vmatprep.subr.mxu0 0.0
  %2516 = vmatpush1.msra.mxu0 %v2490
  %2517 = vmatprep.subr.mxu0 0.0
  %2518 = vmatpush1.msra.mxu0 %v2491
  %2519 = vmatprep.subr.mxu0 0.0
  %2520 = vmatpush1.msra.mxu0 %v2492
  %2521 = vmatprep.subr.mxu0 0.0
  %2522 = vmatpush1.msra.mxu0 %v2493
  %2523 = vmatprep.subr.mxu0 0.0
  %2524 = vmatpush1.msra.mxu0 %v2494
  %2525 = vmatprep.subr.mxu0 0.0
  %2526 = vmatpush1.msra.mxu0 %v2495
  %2527 = vmatprep.subr.mxu0 0.0
  %2528 = vmatpush1.msra.mxu0 %v2496
  %2529 = vmatprep.subr.mxu0 0.0
  %2530 = vmatpush1.msra.mxu0 0.0
  %2531 = vmatprep.subr.mxu0 0.0
  %2532 = vmatpush1.msra.mxu0 0.0
  %2533 = vmatprep.subr.mxu0 0.0
  %2534 = vmatpush1.msra.mxu0 0.0
  %2535 = vmatprep.subr.mxu0 0.0
  %2536 = vmatpush1.msra.mxu0 0.0
  %2537 = vmatprep.subr.mxu0 0.0
  %2538 = vmatpush1.msra.mxu0 0.0
  %2539 = vmatprep.subr.mxu0 0.0
  %2540 = vmatpush1.msra.mxu0 0.0
  %2541 = vmatprep.subr.mxu0 0.0
  %2542 = vmatpush1.msra.mxu0 0.0
  %2543 = vmatprep.subr.mxu0 0.0
  %2544 = vmatpush1.msra.mxu0 0.0
  %2545 = vmatprep.subr.mxu0 0.0
  %2546 = vmatpush1.msra.mxu0 0.0
  %2547 = vmatprep.subr.mxu0 0.0
  %2548 = vmatpush1.msra.mxu0 0.0
  %2549 = vmatprep.subr.mxu0 0.0
  %2550 = vmatpush1.msra.mxu0 0.0
  %2551 = vmatprep.subr.mxu0 0.0
  %2552 = vmatpush1.msra.mxu0 0.0
  %2553 = vmatprep.subr.mxu0 0.0
  %2554 = vmatpush1.msra.mxu0 0.0
  %2555 = vmatprep.subr.mxu0 0.0
  %2556 = vmatpush1.msra.mxu0 0.0
  %2557 = vmatprep.subr.mxu0 0.0
  %2558 = vmatpush1.msra.mxu0 0.0
  %2559 = vmatprep.subr.mxu0 0.0
  %2560 = vmatpush1.msra.mxu0 0.0
  %2561 = vmatprep.mubr.f32.mxu0 0.0
  %2562 = vmatmul.mubr.f32.gmra.mrb[0].mxu0 %v301
  %v2563 = vpop.f32.mrb[0].mxu0
  %v2564 = vadd.f32 0.0, %v2563
  %v2565 = vpop.f32.mrb[0].mxu0
  %2566 = vmatprep.mubr.f32.mxu0 0.0
  %2567 = vmatmul.mubr.f32.gmra.mrb[0].mxu0 %v302
  %v2568 = vpop.f32.mrb[0].mxu0
  %v2569 = vadd.f32 0.0, %v2568
  %v2570 = vpop.f32.mrb[0].mxu0
  %2571 = vmatprep.mubr.f32.mxu0 0.0
  %2572 = vmatmul.mubr.f32.gmra.mrb[0].mxu0 %v303
  %v2573 = vpop.f32.mrb[0].mxu0
  %v2574 = vadd.f32 0.0, %v2573
  %v2575 = vpop.f32.mrb[0].mxu0
  %2576 = vmatprep.mubr.f32.mxu0 0.0
  %2577 = vmatmul.mubr.f32.gmra.mrb[0].mxu0 %v304
  %v2578 = vpop.f32.mrb[0].mxu0
  %v2579 = vadd.f32 0.0, %v2578
  %v2580 = vpop.f32.mrb[0].mxu0
  %2581 = vmatprep.mubr.f32.mxu0 0.0
  %2582 = vmatmul.mubr.f32.gmra.mrb[0].mxu0 %v305
  %v2583 = vpop.f32.mrb[0].mxu0
  %v2584 = vadd.f32 0.0, %v2583
  %v2585 = vpop.f32.mrb[0].mxu0
  %2586 = vmatprep.mubr.f32.mxu0 0.0
  %2587 = vmatmul.mubr.f32.gmra.mrb[0].mxu0 %v306
  %v2588 = vpop.f32.mrb[0].mxu0
  %v2589 = vadd.f32 0.0, %v2588
  %v2590 = vpop.f32.mrb[0].mxu0
  %2591 = vmatprep.mubr.f32.mxu0 0.0
  %2592 = vmatmul.mubr.f32.gmra.mrb[0].mxu0 %v307
  %v2593 = vpop.f32.mrb[0].mxu0
  %v2594 = vadd.f32 0.0, %v2593
  %v2595 = vpop.f32.mrb[0].mxu0
  %2596 = vmatprep.mubr.f32.mxu0 0.0
  %2597 = vmatmul.mubr.f32.gmra.mrb[0].mxu0 %v308
  %v2598 = vpop.f32.mrb[0].mxu0
  %v2599 = vadd.f32 0.0, %v2598
  %v2600 = vpop.f32.mrb[0].mxu0
  %2601 = vdwg.mxu0
  %v2602 = vadd.f32 %v2564, %v2457
  %v2603 = vadd.f32 %v2569, %v2462
  %v2604 = vadd.f32 %v2602, %v1654
  %v2605 = vadd.f32 %v2603, %v1659
  %v2606 = vld [vmem:[%s16] sm:$0x1]
  %v2608 = vlaneseq
  %v2609 = vshrl.u32 %v2608, 7
  %v2610 = vsub.s32 0, %v2609
  %v2611 = vrot.slane %v2606, %v2610
  %v2613 = vadd.f32 %v2604, %v2611
  %v2614 = vadd.f32 %v2605, %v2611
  %v2615 = vadd.f32 %v2574, %v1860
  %v2616 = vadd.f32 %v2579, %v1865
  %v2617 = vadd.f32 %v2584, %v1870
  %v2618 = vld [vmem:[%s17] sm:$0x1]
  %v2620 = vlaneseq
  %v2621 = vshrl.u32 %v2620, 7
  %v2622 = vsub.s32 0, %v2621
  %v2623 = vrot.slane %v2618, %v2622
  %v2625 = vadd.f32 %v2615, %v2623
  %v2626 = vadd.f32 %v2616, %v2623
  %v2627 = vadd.f32 %v2617, %v2623
  %v2628 = vadd.f32 %v2589, %v2071
  %v2629 = vadd.f32 %v2594, %v2076
  %v2630 = vadd.f32 %v2599, %v2081
  %v2631 = vld [vmem:[%s18] sm:$0x1]
  %v2633 = vlaneseq
  %v2634 = vshrl.u32 %v2633, 7
  %v2635 = vsub.s32 0, %v2634
  %v2636 = vrot.slane %v2631, %v2635
  %v2638 = vadd.f32 %v2628, %v2636
  %v2639 = vadd.f32 %v2629, %v2636
  %v2640 = vadd.f32 %v2630, %v2636
  %v2641 = vmax.f32 %v2613, 0.0
  %v2642 = vmax.f32 %v2614, 0.0
  %v2643 = vmax.f32 %v2625, 0.0
  %v2644 = vmax.f32 %v2626, 0.0
  %v2645 = vmax.f32 %v2627, 0.0
  %v2646 = vmax.f32 %v2638, 0.0
  %v2647 = vmax.f32 %v2639, 0.0
  %v2648 = vmax.f32 %v2640, 0.0
  %v2649 = vld [vmem:[%s19] sm:$0xff]
  %v2650 = vld [vmem:[%s19 + $0x8] sm:$0xff]
  %v2651 = vld [vmem:[%s19 + $0x10] sm:$0xff]
  %v2652 = vld [vmem:[%s19 + $0x18] sm:$0xff]
  %v2653 = vld [vmem:[%s19 + $0x20] sm:$0xff]
  %v2654 = vld [vmem:[%s19 + $0x28] sm:$0xff]
  %v2655 = vld [vmem:[%s19 + $0x30] sm:$0xff]
  %v2656 = vld [vmem:[%s19 + $0x38] sm:$0xff]
  %v2657 = vld [vmem:[%s19 + $0x40] sm:$0xff]
  %v2658 = vld [vmem:[%s19 + $0x48] sm:$0xff]
  %v2659 = vld [vmem:[%s19 + $0x50] sm:$0xff]
  %v2660 = vld [vmem:[%s19 + $0x58] sm:$0xff]
  %v2661 = vld [vmem:[%s19 + $0x60] sm:$0xff]
  %v2662 = vld [vmem:[%s19 + $0x68] sm:$0xff]
  %v2663 = vld [vmem:[%s19 + $0x70] sm:$0xff]
  %v2664 = vld [vmem:[%s19 + $0x78] sm:$0xff]
  %v2665 = vld [vmem:[%s19 + $0x80] sm:$0xff]
  %v2666 = vld [vmem:[%s19 + $0x88] sm:$0xff]
  %v2667 = vld [vmem:[%s19 + $0x90] sm:$0xff]
  %v2668 = vld [vmem:[%s19 + $0x98] sm:$0xff]
  %v2669 = vld [vmem:[%s19 + $0xa0] sm:$0xff]
  %v2670 = vld [vmem:[%s19 + $0xa8] sm:$0xff]
  %v2671 = vld [vmem:[%s19 + $0xb0] sm:$0xff]
  %v2672 = vld [vmem:[%s19 + $0xb8] sm:$0xff]
  %v2673 = vld [vmem:[%s19 + $0xc0] sm:$0xff]
  %v2674 = vld [vmem:[%s19 + $0xc8] sm:$0xff]
  %v2675 = vld [vmem:[%s19 + $0xd0] sm:$0xff]
  %v2676 = vld [vmem:[%s19 + $0xd8] sm:$0xff]
  %v2677 = vld [vmem:[%s19 + $0xe0] sm:$0xff]
  %v2678 = vld [vmem:[%s19 + $0xe8] sm:$0xff]
  %v2679 = vld [vmem:[%s19 + $0xf0] sm:$0xff]
  %v2680 = vld [vmem:[%s19 + $0xf8] sm:$0xff]
  %v2681 = vld [vmem:[%s19 + $0x100] sm:$0xff]
  %v2682 = vld [vmem:[%s19 + $0x108] sm:$0xff]
  %v2683 = vld [vmem:[%s19 + $0x110] sm:$0xff]
  %v2684 = vld [vmem:[%s19 + $0x118] sm:$0xff]
  %v2685 = vld [vmem:[%s19 + $0x120] sm:$0xff]
  %v2686 = vld [vmem:[%s19 + $0x128] sm:$0xff]
  %v2687 = vld [vmem:[%s19 + $0x130] sm:$0xff]
  %v2688 = vld [vmem:[%s19 + $0x138] sm:$0xff]
  %v2689 = vld [vmem:[%s19 + $0x140] sm:$0xff]
  %v2690 = vld [vmem:[%s19 + $0x148] sm:$0xff]
  %v2691 = vld [vmem:[%s19 + $0x150] sm:$0xff]
  %v2692 = vld [vmem:[%s19 + $0x158] sm:$0xff]
  %v2693 = vld [vmem:[%s19 + $0x160] sm:$0xff]
  %v2694 = vld [vmem:[%s19 + $0x168] sm:$0xff]
  %v2695 = vld [vmem:[%s19 + $0x170] sm:$0xff]
  %v2696 = vld [vmem:[%s19 + $0x178] sm:$0xff]
  %2697 = vmatprep.subr.mxu0 %v2650
  %2698 = vmatpush1.msra.mxu0 %v2649
  %2699 = vmatprep.subr.mxu0 %v2653
  %2700 = vmatpush1.msra.mxu0 %v2652
  %2701 = vmatprep.subr.mxu0 %v2656
  %2702 = vmatpush1.msra.mxu0 %v2655
  %2703 = vmatprep.subr.mxu0 %v2659
  %2704 = vmatpush1.msra.mxu0 %v2658
  %2705 = vmatprep.subr.mxu0 %v2662
  %2706 = vmatpush1.msra.mxu0 %v2661
  %2707 = vmatprep.subr.mxu0 %v2665
  %2708 = vmatpush1.msra.mxu0 %v2664
  %2709 = vmatprep.subr.mxu0 %v2668
  %2710 = vmatpush1.msra.mxu0 %v2667
  %2711 = vmatprep.subr.mxu0 %v2671
  %2712 = vmatpush1.msra.mxu0 %v2670
  %2713 = vmatprep.subr.mxu0 %v2674
  %2714 = vmatpush1.msra.mxu0 %v2673
  %2715 = vmatprep.subr.mxu0 %v2677
  %2716 = vmatpush1.msra.mxu0 %v2676
  %2717 = vmatprep.subr.mxu0 %v2680
  %2718 = vmatpush1.msra.mxu0 %v2679
  %2719 = vmatprep.subr.mxu0 %v2683
  %2720 = vmatpush1.msra.mxu0 %v2682
  %2721 = vmatprep.subr.mxu0 %v2686
  %2722 = vmatpush1.msra.mxu0 %v2685
  %2723 = vmatprep.subr.mxu0 %v2689
  %2724 = vmatpush1.msra.mxu0 %v2688
  %2725 = vmatprep.subr.mxu0 %v2692
  %2726 = vmatpush1.msra.mxu0 %v2691
  %2727 = vmatprep.subr.mxu0 %v2695
  %2728 = vmatpush1.msra.mxu0 %v2694
  %2729 = vmatprep.subr.mxu0 0.0
  %2730 = vmatpush1.msra.mxu0 0.0
  %2731 = vmatprep.subr.mxu0 0.0
  %2732 = vmatpush1.msra.mxu0 0.0
  %2733 = vmatprep.subr.mxu0 0.0
  %2734 = vmatpush1.msra.mxu0 0.0
  %2735 = vmatprep.subr.mxu0 0.0
  %2736 = vmatpush1.msra.mxu0 0.0
  %2737 = vmatprep.subr.mxu0 0.0
  %2738 = vmatpush1.msra.mxu0 0.0
  %2739 = vmatprep.subr.mxu0 0.0
  %2740 = vmatpush1.msra.mxu0 0.0
  %2741 = vmatprep.subr.mxu0 0.0
  %2742 = vmatpush1.msra.mxu0 0.0
  %2743 = vmatprep.subr.mxu0 0.0
  %2744 = vmatpush1.msra.mxu0 0.0
  %2745 = vmatprep.subr.mxu0 0.0
  %2746 = vmatpush1.msra.mxu0 0.0
  %2747 = vmatprep.subr.mxu0 0.0
  %2748 = vmatpush1.msra.mxu0 0.0
  %2749 = vmatprep.subr.mxu0 0.0
  %2750 = vmatpush1.msra.mxu0 0.0
  %2751 = vmatprep.subr.mxu0 0.0
  %2752 = vmatpush1.msra.mxu0 0.0
  %2753 = vmatprep.subr.mxu0 0.0
  %2754 = vmatpush1.msra.mxu0 0.0
  %2755 = vmatprep.subr.mxu0 0.0
  %2756 = vmatpush1.msra.mxu0 0.0
  %2757 = vmatprep.subr.mxu0 0.0
  %2758 = vmatpush1.msra.mxu0 0.0
  %2759 = vmatprep.subr.mxu0 0.0
  %2760 = vmatpush1.msra.mxu0 0.0
  %2761 = vmatprep.mubr.f32.mxu0 0.0
  %2762 = vmatmul.mubr.f32.gmra.mrb[0].mxu0 %v2641
  %v2763 = vpop.f32.mrb[0].mxu0
  %v2764 = vadd.f32 0.0, %v2763
  %v2765 = vpop.f32.mrb[0].mxu0
  %v2766 = vadd.f32 0.0, %v2765
  %2767 = vmatprep.mubr.f32.mxu0 0.0
  %2768 = vmatmul.mubr.f32.gmra.mrb[0].mxu0 %v2642
  %v2769 = vpop.f32.mrb[0].mxu0
  %v2770 = vadd.f32 0.0, %v2769
  %v2771 = vpop.f32.mrb[0].mxu0
  %v2772 = vadd.f32 0.0, %v2771
  %2773 = vdwg.mxu0
  %2774 = vmatprep.subr.mxu0 0.0
  %2775 = vmatpush1.msra.mxu0 %v2651
  %2776 = vmatprep.subr.mxu0 0.0
  %2777 = vmatpush1.msra.mxu0 %v2654
  %2778 = vmatprep.subr.mxu0 0.0
  %2779 = vmatpush1.msra.mxu0 %v2657
  %2780 = vmatprep.subr.mxu0 0.0
  %2781 = vmatpush1.msra.mxu0 %v2660
  %2782 = vmatprep.subr.mxu0 0.0
  %2783 = vmatpush1.msra.mxu0 %v2663
  %2784 = vmatprep.subr.mxu0 0.0
  %2785 = vmatpush1.msra.mxu0 %v2666
  %2786 = vmatprep.subr.mxu0 0.0
  %2787 = vmatpush1.msra.mxu0 %v2669
  %2788 = vmatprep.subr.mxu0 0.0
  %2789 = vmatpush1.msra.mxu0 %v2672
  %2790 = vmatprep.subr.mxu0 0.0
  %2791 = vmatpush1.msra.mxu0 %v2675
  %2792 = vmatprep.subr.mxu0 0.0
  %2793 = vmatpush1.msra.mxu0 %v2678
  %2794 = vmatprep.subr.mxu0 0.0
  %2795 = vmatpush1.msra.mxu0 %v2681
  %2796 = vmatprep.subr.mxu0 0.0
  %2797 = vmatpush1.msra.mxu0 %v2684
  %2798 = vmatprep.subr.mxu0 0.0
  %2799 = vmatpush1.msra.mxu0 %v2687
  %2800 = vmatprep.subr.mxu0 0.0
  %2801 = vmatpush1.msra.mxu0 %v2690
  %2802 = vmatprep.subr.mxu0 0.0
  %2803 = vmatpush1.msra.mxu0 %v2693
  %2804 = vmatprep.subr.mxu0 0.0
  %2805 = vmatpush1.msra.mxu0 %v2696
  %2806 = vmatprep.subr.mxu0 0.0
  %2807 = vmatpush1.msra.mxu0 0.0
  %2808 = vmatprep.subr.mxu0 0.0
  %2809 = vmatpush1.msra.mxu0 0.0
  %2810 = vmatprep.subr.mxu0 0.0
  %2811 = vmatpush1.msra.mxu0 0.0
  %2812 = vmatprep.subr.mxu0 0.0
  %2813 = vmatpush1.msra.mxu0 0.0
  %2814 = vmatprep.subr.mxu0 0.0
  %2815 = vmatpush1.msra.mxu0 0.0
  %2816 = vmatprep.subr.mxu0 0.0
  %2817 = vmatpush1.msra.mxu0 0.0
  %2818 = vmatprep.subr.mxu0 0.0
  %2819 = vmatpush1.msra.mxu0 0.0
  %2820 = vmatprep.subr.mxu0 0.0
  %2821 = vmatpush1.msra.mxu0 0.0
  %2822 = vmatprep.subr.mxu0 0.0
  %2823 = vmatpush1.msra.mxu0 0.0
  %2824 = vmatprep.subr.mxu0 0.0
  %2825 = vmatpush1.msra.mxu0 0.0
  %2826 = vmatprep.subr.mxu0 0.0
  %2827 = vmatpush1.msra.mxu0 0.0
  %2828 = vmatprep.subr.mxu0 0.0
  %2829 = vmatpush1.msra.mxu0 0.0
  %2830 = vmatprep.subr.mxu0 0.0
  %2831 = vmatpush1.msra.mxu0 0.0
  %2832 = vmatprep.subr.mxu0 0.0
  %2833 = vmatpush1.msra.mxu0 0.0
  %2834 = vmatprep.subr.mxu0 0.0
  %2835 = vmatpush1.msra.mxu0 0.0
  %2836 = vmatprep.subr.mxu0 0.0
  %2837 = vmatpush1.msra.mxu0 0.0
  %2838 = vmatprep.mubr.f32.mxu0 0.0
  %2839 = vmatmul.mubr.f32.gmra.mrb[0].mxu0 %v2641
  %v2840 = vpop.f32.mrb[0].mxu0
  %v2841 = vadd.f32 0.0, %v2840
  %v2842 = vpop.f32.mrb[0].mxu0
  %2843 = vmatprep.mubr.f32.mxu0 0.0
  %2844 = vmatmul.mubr.f32.gmra.mrb[0].mxu0 %v2642
  %v2845 = vpop.f32.mrb[0].mxu0
  %v2846 = vadd.f32 0.0, %v2845
  %v2847 = vpop.f32.mrb[0].mxu0
  %2848 = vdwg.mxu0
  %v2849 = vld [vmem:[%s20] sm:$0xff]
  %v2850 = vld [vmem:[%s20 + $0x8] sm:$0xff]
  %v2851 = vld [vmem:[%s20 + $0x10] sm:$0xff]
  %v2852 = vld [vmem:[%s20 + $0x18] sm:$0xff]
  %v2853 = vld [vmem:[%s20 + $0x20] sm:$0xff]
  %v2854 = vld [vmem:[%s20 + $0x28] sm:$0xff]
  %v2855 = vld [vmem:[%s20 + $0x30] sm:$0xff]
  %v2856 = vld [vmem:[%s20 + $0x38] sm:$0xff]
  %v2857 = vld [vmem:[%s20 + $0x40] sm:$0xff]
  %v2858 = vld [vmem:[%s20 + $0x48] sm:$0xff]
  %v2859 = vld [vmem:[%s20 + $0x50] sm:$0xff]
  %v2860 = vld [vmem:[%s20 + $0x58] sm:$0xff]
  %v2861 = vld [vmem:[%s20 + $0x60] sm:$0xff]
  %v2862 = vld [vmem:[%s20 + $0x68] sm:$0xff]
  %v2863 = vld [vmem:[%s20 + $0x70] sm:$0xff]
  %v2864 = vld [vmem:[%s20 + $0x78] sm:$0xff]
  %v2865 = vld [vmem:[%s20 + $0x80] sm:$0xff]
  %v2866 = vld [vmem:[%s20 + $0x88] sm:$0xff]
  %v2867 = vld [vmem:[%s20 + $0x90] sm:$0xff]
  %v2868 = vld [vmem:[%s20 + $0x98] sm:$0xff]
  %v2869 = vld [vmem:[%s20 + $0xa0] sm:$0xff]
  %v2870 = vld [vmem:[%s20 + $0xa8] sm:$0xff]
  %v2871 = vld [vmem:[%s20 + $0xb0] sm:$0xff]
  %v2872 = vld [vmem:[%s20 + $0xb8] sm:$0xff]
  %v2873 = vld [vmem:[%s20 + $0xc0] sm:$0xff]
  %v2874 = vld [vmem:[%s20 + $0xc8] sm:$0xff]
  %v2875 = vld [vmem:[%s20 + $0xd0] sm:$0xff]
  %v2876 = vld [vmem:[%s20 + $0xd8] sm:$0xff]
  %v2877 = vld [vmem:[%s20 + $0xe0] sm:$0xff]
  %v2878 = vld [vmem:[%s20 + $0xe8] sm:$0xff]
  %v2879 = vld [vmem:[%s20 + $0xf0] sm:$0xff]
  %v2880 = vld [vmem:[%s20 + $0xf8] sm:$0xff]
  %v2881 = vld [vmem:[%s20 + $0x100] sm:$0xff]
  %v2882 = vld [vmem:[%s20 + $0x108] sm:$0xff]
  %v2883 = vld [vmem:[%s20 + $0x110] sm:$0xff]
  %v2884 = vld [vmem:[%s20 + $0x118] sm:$0xff]
  %v2885 = vld [vmem:[%s20 + $0x120] sm:$0xff]
  %v2886 = vld [vmem:[%s20 + $0x128] sm:$0xff]
  %v2887 = vld [vmem:[%s20 + $0x130] sm:$0xff]
  %v2888 = vld [vmem:[%s20 + $0x138] sm:$0xff]
  %v2889 = vld [vmem:[%s20 + $0x140] sm:$0xff]
  %v2890 = vld [vmem:[%s20 + $0x148] sm:$0xff]
  %v2891 = vld [vmem:[%s20 + $0x150] sm:$0xff]
  %v2892 = vld [vmem:[%s20 + $0x158] sm:$0xff]
  %v2893 = vld [vmem:[%s20 + $0x160] sm:$0xff]
  %v2894 = vld [vmem:[%s20 + $0x168] sm:$0xff]
  %v2895 = vld [vmem:[%s20 + $0x170] sm:$0xff]
  %v2896 = vld [vmem:[%s20 + $0x178] sm:$0xff]
  %2897 = vmatprep.subr.mxu0 %v2850
  %2898 = vmatpush1.msra.mxu0 %v2849
  %2899 = vmatprep.subr.mxu0 %v2853
  %2900 = vmatpush1.msra.mxu0 %v2852
  %2901 = vmatprep.subr.mxu0 %v2856
  %2902 = vmatpush1.msra.mxu0 %v2855
  %2903 = vmatprep.subr.mxu0 %v2859
  %2904 = vmatpush1.msra.mxu0 %v2858
  %2905 = vmatprep.subr.mxu0 %v2862
  %2906 = vmatpush1.msra.mxu0 %v2861
  %2907 = vmatprep.subr.mxu0 %v2865
  %2908 = vmatpush1.msra.mxu0 %v2864
  %2909 = vmatprep.subr.mxu0 %v2868
  %2910 = vmatpush1.msra.mxu0 %v2867
  %2911 = vmatprep.subr.mxu0 %v2871
  %2912 = vmatpush1.msra.mxu0 %v2870
  %2913 = vmatprep.subr.mxu0 %v2874
  %2914 = vmatpush1.msra.mxu0 %v2873
  %2915 = vmatprep.subr.mxu0 %v2877
  %2916 = vmatpush1.msra.mxu0 %v2876
  %2917 = vmatprep.subr.mxu0 %v2880
  %2918 = vmatpush1.msra.mxu0 %v2879
  %2919 = vmatprep.subr.mxu0 %v2883
  %2920 = vmatpush1.msra.mxu0 %v2882
  %2921 = vmatprep.subr.mxu0 %v2886
  %2922 = vmatpush1.msra.mxu0 %v2885
  %2923 = vmatprep.subr.mxu0 %v2889
  %2924 = vmatpush1.msra.mxu0 %v2888
  %2925 = vmatprep.subr.mxu0 %v2892
  %2926 = vmatpush1.msra.mxu0 %v2891
  %2927 = vmatprep.subr.mxu0 %v2895
  %2928 = vmatpush1.msra.mxu0 %v2894
  %2929 = vmatprep.subr.mxu0 0.0
  %2930 = vmatpush1.msra.mxu0 0.0
  %2931 = vmatprep.subr.mxu0 0.0
  %2932 = vmatpush1.msra.mxu0 0.0
  %2933 = vmatprep.subr.mxu0 0.0
  %2934 = vmatpush1.msra.mxu0 0.0
  %2935 = vmatprep.subr.mxu0 0.0
  %2936 = vmatpush1.msra.mxu0 0.0
  %2937 = vmatprep.subr.mxu0 0.0
  %2938 = vmatpush1.msra.mxu0 0.0
  %2939 = vmatprep.subr.mxu0 0.0
  %2940 = vmatpush1.msra.mxu0 0.0
  %2941 = vmatprep.subr.mxu0 0.0
  %2942 = vmatpush1.msra.mxu0 0.0
  %2943 = vmatprep.subr.mxu0 0.0
  %2944 = vmatpush1.msra.mxu0 0.0
  %2945 = vmatprep.subr.mxu0 0.0
  %2946 = vmatpush1.msra.mxu0 0.0
  %2947 = vmatprep.subr.mxu0 0.0
  %2948 = vmatpush1.msra.mxu0 0.0
  %2949 = vmatprep.subr.mxu0 0.0
  %2950 = vmatpush1.msra.mxu0 0.0
  %2951 = vmatprep.subr.mxu0 0.0
  %2952 = vmatpush1.msra.mxu0 0.0
  %2953 = vmatprep.subr.mxu0 0.0
  %2954 = vmatpush1.msra.mxu0 0.0
  %2955 = vmatprep.subr.mxu0 0.0
  %2956 = vmatpush1.msra.mxu0 0.0
  %2957 = vmatprep.subr.mxu0 0.0
  %2958 = vmatpush1.msra.mxu0 0.0
  %2959 = vmatprep.subr.mxu0 0.0
  %2960 = vmatpush1.msra.mxu0 0.0
  %2961 = vmatprep.mubr.f32.mxu0 0.0
  %2962 = vmatmul.mubr.f32.gmra.mrb[0].mxu0 %v2643
  %v2963 = vpop.f32.mrb[0].mxu0
  %v2964 = vadd.f32 0.0, %v2963
  %v2965 = vpop.f32.mrb[0].mxu0
  %v2966 = vadd.f32 0.0, %v2965
  %2967 = vmatprep.mubr.f32.mxu0 0.0
  %2968 = vmatmul.mubr.f32.gmra.mrb[0].mxu0 %v2644
  %v2969 = vpop.f32.mrb[0].mxu0
  %v2970 = vadd.f32 0.0, %v2969
  %v2971 = vpop.f32.mrb[0].mxu0
  %v2972 = vadd.f32 0.0, %v2971
  %2973 = vmatprep.mubr.f32.mxu0 0.0
  %2974 = vmatmul.mubr.f32.gmra.mrb[0].mxu0 %v2645
  %v2975 = vpop.f32.mrb[0].mxu0
  %v2976 = vadd.f32 0.0, %v2975
  %v2977 = vpop.f32.mrb[0].mxu0
  %v2978 = vadd.f32 0.0, %v2977
  %2979 = vdwg.mxu0
  %2980 = vmatprep.subr.mxu0 0.0
  %2981 = vmatpush1.msra.mxu0 %v2851
  %2982 = vmatprep.subr.mxu0 0.0
  %2983 = vmatpush1.msra.mxu0 %v2854
  %2984 = vmatprep.subr.mxu0 0.0
  %2985 = vmatpush1.msra.mxu0 %v2857
  %2986 = vmatprep.subr.mxu0 0.0
  %2987 = vmatpush1.msra.mxu0 %v2860
  %2988 = vmatprep.subr.mxu0 0.0
  %2989 = vmatpush1.msra.mxu0 %v2863
  %2990 = vmatprep.subr.mxu0 0.0
  %2991 = vmatpush1.msra.mxu0 %v2866
  %2992 = vmatprep.subr.mxu0 0.0
  %2993 = vmatpush1.msra.mxu0 %v2869
  %2994 = vmatprep.subr.mxu0 0.0
  %2995 = vmatpush1.msra.mxu0 %v2872
  %2996 = vmatprep.subr.mxu0 0.0
  %2997 = vmatpush1.msra.mxu0 %v2875
  %2998 = vmatprep.subr.mxu0 0.0
  %2999 = vmatpush1.msra.mxu0 %v2878
  %3000 = vmatprep.subr.mxu0 0.0
  %3001 = vmatpush1.msra.mxu0 %v2881
  %3002 = vmatprep.subr.mxu0 0.0
  %3003 = vmatpush1.msra.mxu0 %v2884
  %3004 = vmatprep.subr.mxu0 0.0
  %3005 = vmatpush1.msra.mxu0 %v2887
  %3006 = vmatprep.subr.mxu0 0.0
  %3007 = vmatpush1.msra.mxu0 %v2890
  %3008 = vmatprep.subr.mxu0 0.0
  %3009 = vmatpush1.msra.mxu0 %v2893
  %3010 = vmatprep.subr.mxu0 0.0
  %3011 = vmatpush1.msra.mxu0 %v2896
  %3012 = vmatprep.subr.mxu0 0.0
  %3013 = vmatpush1.msra.mxu0 0.0
  %3014 = vmatprep.subr.mxu0 0.0
  %3015 = vmatpush1.msra.mxu0 0.0
  %3016 = vmatprep.subr.mxu0 0.0
  %3017 = vmatpush1.msra.mxu0 0.0
  %3018 = vmatprep.subr.mxu0 0.0
  %3019 = vmatpush1.msra.mxu0 0.0
  %3020 = vmatprep.subr.mxu0 0.0
  %3021 = vmatpush1.msra.mxu0 0.0
  %3022 = vmatprep.subr.mxu0 0.0
  %3023 = vmatpush1.msra.mxu0 0.0
  %3024 = vmatprep.subr.mxu0 0.0
  %3025 = vmatpush1.msra.mxu0 0.0
  %3026 = vmatprep.subr.mxu0 0.0
  %3027 = vmatpush1.msra.mxu0 0.0
  %3028 = vmatprep.subr.mxu0 0.0
  %3029 = vmatpush1.msra.mxu0 0.0
  %3030 = vmatprep.subr.mxu0 0.0
  %3031 = vmatpush1.msra.mxu0 0.0
  %3032 = vmatprep.subr.mxu0 0.0
  %3033 = vmatpush1.msra.mxu0 0.0
  %3034 = vmatprep.subr.mxu0 0.0
  %3035 = vmatpush1.msra.mxu0 0.0
  %3036 = vmatprep.subr.mxu0 0.0
  %3037 = vmatpush1.msra.mxu0 0.0
  %3038 = vmatprep.subr.mxu0 0.0
  %3039 = vmatpush1.msra.mxu0 0.0
  %3040 = vmatprep.subr.mxu0 0.0
  %3041 = vmatpush1.msra.mxu0 0.0
  %3042 = vmatprep.subr.mxu0 0.0
  %3043 = vmatpush1.msra.mxu0 0.0
  %3044 = vmatprep.mubr.f32.mxu0 0.0
  %3045 = vmatmul.mubr.f32.gmra.mrb[0].mxu0 %v2643
  %v3046 = vpop.f32.mrb[0].mxu0
  %v3047 = vadd.f32 0.0, %v3046
  %v3048 = vpop.f32.mrb[0].mxu0
  %3049 = vmatprep.mubr.f32.mxu0 0.0
  %3050 = vmatmul.mubr.f32.gmra.mrb[0].mxu0 %v2644
  %v3051 = vpop.f32.mrb[0].mxu0
  %v3052 = vadd.f32 0.0, %v3051
  %v3053 = vpop.f32.mrb[0].mxu0
  %3054 = vmatprep.mubr.f32.mxu0 0.0
  %3055 = vmatmul.mubr.f32.gmra.mrb[0].mxu0 %v2645
  %v3056 = vpop.f32.mrb[0].mxu0
  %v3057 = vadd.f32 0.0, %v3056
  %v3058 = vpop.f32.mrb[0].mxu0
  %3059 = vdwg.mxu0
  %v3060 = vld [vmem:[%s21] sm:$0xff]
  %v3061 = vld [vmem:[%s21 + $0x8] sm:$0xff]
  %v3062 = vld [vmem:[%s21 + $0x10] sm:$0xff]
  %v3063 = vld [vmem:[%s21 + $0x18] sm:$0xff]
  %v3064 = vld [vmem:[%s21 + $0x20] sm:$0xff]
  %v3065 = vld [vmem:[%s21 + $0x28] sm:$0xff]
  %v3066 = vld [vmem:[%s21 + $0x30] sm:$0xff]
  %v3067 = vld [vmem:[%s21 + $0x38] sm:$0xff]
  %v3068 = vld [vmem:[%s21 + $0x40] sm:$0xff]
  %v3069 = vld [vmem:[%s21 + $0x48] sm:$0xff]
  %v3070 = vld [vmem:[%s21 + $0x50] sm:$0xff]
  %v3071 = vld [vmem:[%s21 + $0x58] sm:$0xff]
  %v3072 = vld [vmem:[%s21 + $0x60] sm:$0xff]
  %v3073 = vld [vmem:[%s21 + $0x68] sm:$0xff]
  %v3074 = vld [vmem:[%s21 + $0x70] sm:$0xff]
  %v3075 = vld [vmem:[%s21 + $0x78] sm:$0xff]
  %v3076 = vld [vmem:[%s21 + $0x80] sm:$0xff]
  %v3077 = vld [vmem:[%s21 + $0x88] sm:$0xff]
  %v3078 = vld [vmem:[%s21 + $0x90] sm:$0xff]
  %v3079 = vld [vmem:[%s21 + $0x98] sm:$0xff]
  %v3080 = vld [vmem:[%s21 + $0xa0] sm:$0xff]
  %v3081 = vld [vmem:[%s21 + $0xa8] sm:$0xff]
  %v3082 = vld [vmem:[%s21 + $0xb0] sm:$0xff]
  %v3083 = vld [vmem:[%s21 + $0xb8] sm:$0xff]
  %v3084 = vld [vmem:[%s21 + $0xc0] sm:$0xff]
  %v3085 = vld [vmem:[%s21 + $0xc8] sm:$0xff]
  %v3086 = vld [vmem:[%s21 + $0xd0] sm:$0xff]
  %v3087 = vld [vmem:[%s21 + $0xd8] sm:$0xff]
  %v3088 = vld [vmem:[%s21 + $0xe0] sm:$0xff]
  %v3089 = vld [vmem:[%s21 + $0xe8] sm:$0xff]
  %v3090 = vld [vmem:[%s21 + $0xf0] sm:$0xff]
  %v3091 = vld [vmem:[%s21 + $0xf8] sm:$0xff]
  %v3092 = vld [vmem:[%s21 + $0x100] sm:$0xff]
  %v3093 = vld [vmem:[%s21 + $0x108] sm:$0xff]
  %v3094 = vld [vmem:[%s21 + $0x110] sm:$0xff]
  %v3095 = vld [vmem:[%s21 + $0x118] sm:$0xff]
  %v3096 = vld [vmem:[%s21 + $0x120] sm:$0xff]
  %v3097 = vld [vmem:[%s21 + $0x128] sm:$0xff]
  %v3098 = vld [vmem:[%s21 + $0x130] sm:$0xff]
  %v3099 = vld [vmem:[%s21 + $0x138] sm:$0xff]
  %v3100 = vld [vmem:[%s21 + $0x140] sm:$0xff]
  %v3101 = vld [vmem:[%s21 + $0x148] sm:$0xff]
  %v3102 = vld [vmem:[%s21 + $0x150] sm:$0xff]
  %v3103 = vld [vmem:[%s21 + $0x158] sm:$0xff]
  %v3104 = vld [vmem:[%s21 + $0x160] sm:$0xff]
  %v3105 = vld [vmem:[%s21 + $0x168] sm:$0xff]
  %v3106 = vld [vmem:[%s21 + $0x170] sm:$0xff]
  %v3107 = vld [vmem:[%s21 + $0x178] sm:$0xff]
  %3108 = vmatprep.subr.mxu0 %v3061
  %3109 = vmatpush1.msra.mxu0 %v3060
  %3110 = vmatprep.subr.mxu0 %v3064
  %3111 = vmatpush1.msra.mxu0 %v3063
  %3112 = vmatprep.subr.mxu0 %v3067
  %3113 = vmatpush1.msra.mxu0 %v3066
  %3114 = vmatprep.subr.mxu0 %v3070
  %3115 = vmatpush1.msra.mxu0 %v3069
  %3116 = vmatprep.subr.mxu0 %v3073
  %3117 = vmatpush1.msra.mxu0 %v3072
  %3118 = vmatprep.subr.mxu0 %v3076
  %3119 = vmatpush1.msra.mxu0 %v3075
  %3120 = vmatprep.subr.mxu0 %v3079
  %3121 = vmatpush1.msra.mxu0 %v3078
  %3122 = vmatprep.subr.mxu0 %v3082
  %3123 = vmatpush1.msra.mxu0 %v3081
  %3124 = vmatprep.subr.mxu0 %v3085
  %3125 = vmatpush1.msra.mxu0 %v3084
  %3126 = vmatprep.subr.mxu0 %v3088
  %3127 = vmatpush1.msra.mxu0 %v3087
  %3128 = vmatprep.subr.mxu0 %v3091
  %3129 = vmatpush1.msra.mxu0 %v3090
  %3130 = vmatprep.subr.mxu0 %v3094
  %3131 = vmatpush1.msra.mxu0 %v3093
  %3132 = vmatprep.subr.mxu0 %v3097
  %3133 = vmatpush1.msra.mxu0 %v3096
  %3134 = vmatprep.subr.mxu0 %v3100
  %3135 = vmatpush1.msra.mxu0 %v3099
  %3136 = vmatprep.subr.mxu0 %v3103
  %3137 = vmatpush1.msra.mxu0 %v3102
  %3138 = vmatprep.subr.mxu0 %v3106
  %3139 = vmatpush1.msra.mxu0 %v3105
  %3140 = vmatprep.subr.mxu0 0.0
  %3141 = vmatpush1.msra.mxu0 0.0
  %3142 = vmatprep.subr.mxu0 0.0
  %3143 = vmatpush1.msra.mxu0 0.0
  %3144 = vmatprep.subr.mxu0 0.0
  %3145 = vmatpush1.msra.mxu0 0.0
  %3146 = vmatprep.subr.mxu0 0.0
  %3147 = vmatpush1.msra.mxu0 0.0
  %3148 = vmatprep.subr.mxu0 0.0
  %3149 = vmatpush1.msra.mxu0 0.0
  %3150 = vmatprep.subr.mxu0 0.0
  %3151 = vmatpush1.msra.mxu0 0.0
  %3152 = vmatprep.subr.mxu0 0.0
  %3153 = vmatpush1.msra.mxu0 0.0
  %3154 = vmatprep.subr.mxu0 0.0
  %3155 = vmatpush1.msra.mxu0 0.0
  %3156 = vmatprep.subr.mxu0 0.0
  %3157 = vmatpush1.msra.mxu0 0.0
  %3158 = vmatprep.subr.mxu0 0.0
  %3159 = vmatpush1.msra.mxu0 0.0
  %3160 = vmatprep.subr.mxu0 0.0
  %3161 = vmatpush1.msra.mxu0 0.0
  %3162 = vmatprep.subr.mxu0 0.0
  %3163 = vmatpush1.msra.mxu0 0.0
  %3164 = vmatprep.subr.mxu0 0.0
  %3165 = vmatpush1.msra.mxu0 0.0
  %3166 = vmatprep.subr.mxu0 0.0
  %3167 = vmatpush1.msra.mxu0 0.0
  %3168 = vmatprep.subr.mxu0 0.0
  %3169 = vmatpush1.msra.mxu0 0.0
  %3170 = vmatprep.subr.mxu0 0.0
  %3171 = vmatpush1.msra.mxu0 0.0
  %3172 = vmatprep.mubr.f32.mxu0 0.0
  %3173 = vmatmul.mubr.f32.gmra.mrb[0].mxu0 %v2646
  %v3174 = vpop.f32.mrb[0].mxu0
  %v3175 = vadd.f32 0.0, %v3174
  %v3176 = vpop.f32.mrb[0].mxu0
  %v3177 = vadd.f32 0.0, %v3176
  %3178 = vmatprep.mubr.f32.mxu0 0.0
  %3179 = vmatmul.mubr.f32.gmra.mrb[0].mxu0 %v2647
  %v3180 = vpop.f32.mrb[0].mxu0
  %v3181 = vadd.f32 0.0, %v3180
  %v3182 = vpop.f32.mrb[0].mxu0
  %v3183 = vadd.f32 0.0, %v3182
  %3184 = vmatprep.mubr.f32.mxu0 0.0
  %3185 = vmatmul.mubr.f32.gmra.mrb[0].mxu0 %v2648
  %v3186 = vpop.f32.mrb[0].mxu0
  %v3187 = vadd.f32 0.0, %v3186
  %v3188 = vpop.f32.mrb[0].mxu0
  %v3189 = vadd.f32 0.0, %v3188
  %3190 = vdwg.mxu0
  %3191 = vmatprep.subr.mxu0 0.0
  %3192 = vmatpush1.msra.mxu0 %v3062
  %3193 = vmatprep.subr.mxu0 0.0
  %3194 = vmatpush1.msra.mxu0 %v3065
  %3195 = vmatprep.subr.mxu0 0.0
  %3196 = vmatpush1.msra.mxu0 %v3068
  %3197 = vmatprep.subr.mxu0 0.0
  %3198 = vmatpush1.msra.mxu0 %v3071
  %3199 = vmatprep.subr.mxu0 0.0
  %3200 = vmatpush1.msra.mxu0 %v3074
  %3201 = vmatprep.subr.mxu0 0.0
  %3202 = vmatpush1.msra.mxu0 %v3077
  %3203 = vmatprep.subr.mxu0 0.0
  %3204 = vmatpush1.msra.mxu0 %v3080
  %3205 = vmatprep.subr.mxu0 0.0
  %3206 = vmatpush1.msra.mxu0 %v3083
  %3207 = vmatprep.subr.mxu0 0.0
  %3208 = vmatpush1.msra.mxu0 %v3086
  %3209 = vmatprep.subr.mxu0 0.0
  %3210 = vmatpush1.msra.mxu0 %v3089
  %3211 = vmatprep.subr.mxu0 0.0
  %3212 = vmatpush1.msra.mxu0 %v3092
  %3213 = vmatprep.subr.mxu0 0.0
  %3214 = vmatpush1.msra.mxu0 %v3095
  %3215 = vmatprep.subr.mxu0 0.0
  %3216 = vmatpush1.msra.mxu0 %v3098
  %3217 = vmatprep.subr.mxu0 0.0
  %3218 = vmatpush1.msra.mxu0 %v3101
  %3219 = vmatprep.subr.mxu0 0.0
  %3220 = vmatpush1.msra.mxu0 %v3104
  %3221 = vmatprep.subr.mxu0 0.0
  %3222 = vmatpush1.msra.mxu0 %v3107
  %3223 = vmatprep.subr.mxu0 0.0
  %3224 = vmatpush1.msra.mxu0 0.0
  %3225 = vmatprep.subr.mxu0 0.0
  %3226 = vmatpush1.msra.mxu0 0.0
  %3227 = vmatprep.subr.mxu0 0.0
  %3228 = vmatpush1.msra.mxu0 0.0
  %3229 = vmatprep.subr.mxu0 0.0
  %3230 = vmatpush1.msra.mxu0 0.0
  %3231 = vmatprep.subr.mxu0 0.0
  %3232 = vmatpush1.msra.mxu0 0.0
  %3233 = vmatprep.subr.mxu0 0.0
  %3234 = vmatpush1.msra.mxu0 0.0
  %3235 = vmatprep.subr.mxu0 0.0
  %3236 = vmatpush1.msra.mxu0 0.0
  %3237 = vmatprep.subr.mxu0 0.0
  %3238 = vmatpush1.msra.mxu0 0.0
  %3239 = vmatprep.subr.mxu0 0.0
  %3240 = vmatpush1.msra.mxu0 0.0
  %3241 = vmatprep.subr.mxu0 0.0
  %3242 = vmatpush1.msra.mxu0 0.0
  %3243 = vmatprep.subr.mxu0 0.0
  %3244 = vmatpush1.msra.mxu0 0.0
  %3245 = vmatprep.subr.mxu0 0.0
  %3246 = vmatpush1.msra.mxu0 0.0
  %3247 = vmatprep.subr.mxu0 0.0
  %3248 = vmatpush1.msra.mxu0 0.0
  %3249 = vmatprep.subr.mxu0 0.0
  %3250 = vmatpush1.msra.mxu0 0.0
  %3251 = vmatprep.subr.mxu0 0.0
  %3252 = vmatpush1.msra.mxu0 0.0
  %3253 = vmatprep.subr.mxu0 0.0
  %3254 = vmatpush1.msra.mxu0 0.0
  %3255 = vmatprep.mubr.f32.mxu0 0.0
  %3256 = vmatmul.mubr.f32.gmra.mrb[0].mxu0 %v2646
  %v3257 = vpop.f32.mrb[0].mxu0
  %v3258 = vadd.f32 0.0, %v3257
  %v3259 = vpop.f32.mrb[0].mxu0
  %3260 = vmatprep.mubr.f32.mxu0 0.0
  %3261 = vmatmul.mubr.f32.gmra.mrb[0].mxu0 %v2647
  %v3262 = vpop.f32.mrb[0].mxu0
  %v3263 = vadd.f32 0.0, %v3262
  %v3264 = vpop.f32.mrb[0].mxu0
  %3265 = vmatprep.mubr.f32.mxu0 0.0
  %3266 = vmatmul.mubr.f32.gmra.mrb[0].mxu0 %v2648
  %v3267 = vpop.f32.mrb[0].mxu0
  %v3268 = vadd.f32 0.0, %v3267
  %v3269 = vpop.f32.mrb[0].mxu0
  %3270 = vdwg.mxu0
  %v3271 = vadd.f32 %v2641, %v123
  %v3272 = vadd.f32 %v2641, %v130
  %v3273 = vadd.f32 %v2641, %v137
  %v3274 = vadd.f32 %v2641, %v144
  %v3275 = vadd.f32 %v2641, %v151
  %v3276 = vadd.f32 %v2641, %v158
  %v3277 = vadd.f32 %v2641, %v165
  %v3278 = vadd.f32 %v2641, %v172
  %v3279 = vadd.f32 %v2641, %v179
  %v3280 = vadd.f32 %v2641, %v186
  %v3281 = vadd.f32 %v2641, %v193
  %v3282 = vadd.f32 %v2641, %v200
  %v3283 = vadd.f32 %v2641, %v207
  %v3284 = vadd.f32 %v2641, %v214
  %v3285 = vadd.f32 %v2641, %v221
  %v3286 = vadd.f32 %v2641, %v228
  %v3287 = vrot.slane %v3271, 4
  %v3288 = vmax.f32 %v3271, %v3287
  %v3289 = vrot.slane %v3288, 2
  %v3290 = vmax.f32 %v3288, %v3289
  %v3291 = vrot.slane %v3290, 1
  %v3292 = vmax.f32 %v3290, %v3291
  %v3293 = vrot.slane %v3272, 4
  %v3294 = vmax.f32 %v3272, %v3293
  %v3295 = vrot.slane %v3294, 2
  %v3296 = vmax.f32 %v3294, %v3295
  %v3297 = vrot.slane %v3296, 1
  %v3298 = vmax.f32 %v3296, %v3297
  %v3299 = vrot.slane %v3273, 4
  %v3300 = vmax.f32 %v3273, %v3299
  %v3301 = vrot.slane %v3300, 2
  %v3302 = vmax.f32 %v3300, %v3301
  %v3303 = vrot.slane %v3302, 1
  %v3304 = vmax.f32 %v3302, %v3303
  %v3305 = vrot.slane %v3274, 4
  %v3306 = vmax.f32 %v3274, %v3305
  %v3307 = vrot.slane %v3306, 2
  %v3308 = vmax.f32 %v3306, %v3307
  %v3309 = vrot.slane %v3308, 1
  %v3310 = vmax.f32 %v3308, %v3309
  %v3311 = vrot.slane %v3275, 4
  %v3312 = vmax.f32 %v3275, %v3311
  %v3313 = vrot.slane %v3312, 2
  %v3314 = vmax.f32 %v3312, %v3313
  %v3315 = vrot.slane %v3314, 1
  %v3316 = vmax.f32 %v3314, %v3315
  %v3317 = vrot.slane %v3276, 4
  %v3318 = vmax.f32 %v3276, %v3317
  %v3319 = vrot.slane %v3318, 2
  %v3320 = vmax.f32 %v3318, %v3319
  %v3321 = vrot.slane %v3320, 1
  %v3322 = vmax.f32 %v3320, %v3321
  %v3323 = vrot.slane %v3277, 4
  %v3324 = vmax.f32 %v3277, %v3323
  %v3325 = vrot.slane %v3324, 2
  %v3326 = vmax.f32 %v3324, %v3325
  %v3327 = vrot.slane %v3326, 1
  %v3328 = vmax.f32 %v3326, %v3327
  %v3329 = vrot.slane %v3278, 4
  %v3330 = vmax.f32 %v3278, %v3329
  %v3331 = vrot.slane %v3330, 2
  %v3332 = vmax.f32 %v3330, %v3331
  %v3333 = vrot.slane %v3332, 1
  %v3334 = vmax.f32 %v3332, %v3333
  %v3335 = vrot.slane %v3279, 4
  %v3336 = vmax.f32 %v3279, %v3335
  %v3337 = vrot.slane %v3336, 2
  %v3338 = vmax.f32 %v3336, %v3337
  %v3339 = vrot.slane %v3338, 1
  %v3340 = vmax.f32 %v3338, %v3339
  %v3341 = vrot.slane %v3280, 4
  %v3342 = vmax.f32 %v3280, %v3341
  %v3343 = vrot.slane %v3342, 2
  %v3344 = vmax.f32 %v3342, %v3343
  %v3345 = vrot.slane %v3344, 1
  %v3346 = vmax.f32 %v3344, %v3345
  %v3347 = vrot.slane %v3281, 4
  %v3348 = vmax.f32 %v3281, %v3347
  %v3349 = vrot.slane %v3348, 2
  %v3350 = vmax.f32 %v3348, %v3349
  %v3351 = vrot.slane %v3350, 1
  %v3352 = vmax.f32 %v3350, %v3351
  %v3353 = vrot.slane %v3282, 4
  %v3354 = vmax.f32 %v3282, %v3353
  %v3355 = vrot.slane %v3354, 2
  %v3356 = vmax.f32 %v3354, %v3355
  %v3357 = vrot.slane %v3356, 1
  %v3358 = vmax.f32 %v3356, %v3357
  %v3359 = vrot.slane %v3283, 4
  %v3360 = vmax.f32 %v3283, %v3359
  %v3361 = vrot.slane %v3360, 2
  %v3362 = vmax.f32 %v3360, %v3361
  %v3363 = vrot.slane %v3362, 1
  %v3364 = vmax.f32 %v3362, %v3363
  %v3365 = vrot.slane %v3284, 4
  %v3366 = vmax.f32 %v3284, %v3365
  %v3367 = vrot.slane %v3366, 2
  %v3368 = vmax.f32 %v3366, %v3367
  %v3369 = vrot.slane %v3368, 1
  %v3370 = vmax.f32 %v3368, %v3369
  %v3371 = vrot.slane %v3285, 4
  %v3372 = vmax.f32 %v3285, %v3371
  %v3373 = vrot.slane %v3372, 2
  %v3374 = vmax.f32 %v3372, %v3373
  %v3375 = vrot.slane %v3374, 1
  %v3376 = vmax.f32 %v3374, %v3375
  %v3377 = vrot.slane %v3286, 4
  %v3378 = vmax.f32 %v3286, %v3377
  %v3379 = vrot.slane %v3378, 2
  %v3380 = vmax.f32 %v3378, %v3379
  %v3381 = vrot.slane %v3380, 1
  %v3382 = vmax.f32 %v3380, %v3381
  %v3383 = vmax.f32 %v3292, -1e+30
  %v3384 = vmax.f32 %v3298, -1e+30
  %v3385 = vmax.f32 %v3304, -1e+30
  %v3386 = vmax.f32 %v3310, -1e+30
  %v3387 = vmax.f32 %v3316, -1e+30
  %v3388 = vmax.f32 %v3322, -1e+30
  %v3389 = vmax.f32 %v3328, -1e+30
  %v3390 = vmax.f32 %v3334, -1e+30
  %v3391 = vmax.f32 %v3340, -1e+30
  %v3392 = vmax.f32 %v3346, -1e+30
  %v3393 = vmax.f32 %v3352, -1e+30
  %v3394 = vmax.f32 %v3358, -1e+30
  %v3395 = vmax.f32 %v3364, -1e+30
  %v3396 = vmax.f32 %v3370, -1e+30
  %v3397 = vmax.f32 %v3376, -1e+30
  %v3398 = vmax.f32 %v3382, -1e+30
  %v3399 = vadd.f32 %v2642, %v232
  %v3400 = vadd.f32 %v2642, %v236
  %v3401 = vadd.f32 %v2642, %v240
  %v3402 = vadd.f32 %v2642, %v244
  %v3403 = vadd.f32 %v2642, %v248
  %v3404 = vadd.f32 %v2642, %v252
  %v3405 = vadd.f32 %v2642, %v256
  %v3406 = vadd.f32 %v2642, %v260
  %v3407 = vadd.f32 %v2642, %v264
  %v3408 = vadd.f32 %v2642, %v268
  %v3409 = vadd.f32 %v2642, %v272
  %v3410 = vadd.f32 %v2642, %v276
  %v3411 = vadd.f32 %v2642, %v280
  %v3412 = vadd.f32 %v2642, %v284
  %v3413 = vadd.f32 %v2642, %v288
  %v3414 = vadd.f32 %v2642, %v292
  %v3415 = vrot.slane %v3399, 4
  %v3416 = vmax.f32 %v3399, %v3415
  %v3417 = vrot.slane %v3416, 2
  %v3418 = vmax.f32 %v3416, %v3417
  %v3419 = vrot.slane %v3418, 1
  %v3420 = vmax.f32 %v3418, %v3419
  %v3421 = vrot.slane %v3400, 4
  %v3422 = vmax.f32 %v3400, %v3421
  %v3423 = vrot.slane %v3422, 2
  %v3424 = vmax.f32 %v3422, %v3423
  %v3425 = vrot.slane %v3424, 1
  %v3426 = vmax.f32 %v3424, %v3425
  %v3427 = vrot.slane %v3401, 4
  %v3428 = vmax.f32 %v3401, %v3427
  %v3429 = vrot.slane %v3428, 2
  %v3430 = vmax.f32 %v3428, %v3429
  %v3431 = vrot.slane %v3430, 1
  %v3432 = vmax.f32 %v3430, %v3431
  %v3433 = vrot.slane %v3402, 4
  %v3434 = vmax.f32 %v3402, %v3433
  %v3435 = vrot.slane %v3434, 2
  %v3436 = vmax.f32 %v3434, %v3435
  %v3437 = vrot.slane %v3436, 1
  %v3438 = vmax.f32 %v3436, %v3437
  %v3439 = vrot.slane %v3403, 4
  %v3440 = vmax.f32 %v3403, %v3439
  %v3441 = vrot.slane %v3440, 2
  %v3442 = vmax.f32 %v3440, %v3441
  %v3443 = vrot.slane %v3442, 1
  %v3444 = vmax.f32 %v3442, %v3443
  %v3445 = vrot.slane %v3404, 4
  %v3446 = vmax.f32 %v3404, %v3445
  %v3447 = vrot.slane %v3446, 2
  %v3448 = vmax.f32 %v3446, %v3447
  %v3449 = vrot.slane %v3448, 1
  %v3450 = vmax.f32 %v3448, %v3449
  %v3451 = vrot.slane %v3405, 4
  %v3452 = vmax.f32 %v3405, %v3451
  %v3453 = vrot.slane %v3452, 2
  %v3454 = vmax.f32 %v3452, %v3453
  %v3455 = vrot.slane %v3454, 1
  %v3456 = vmax.f32 %v3454, %v3455
  %v3457 = vrot.slane %v3406, 4
  %v3458 = vmax.f32 %v3406, %v3457
  %v3459 = vrot.slane %v3458, 2
  %v3460 = vmax.f32 %v3458, %v3459
  %v3461 = vrot.slane %v3460, 1
  %v3462 = vmax.f32 %v3460, %v3461
  %v3463 = vrot.slane %v3407, 4
  %v3464 = vmax.f32 %v3407, %v3463
  %v3465 = vrot.slane %v3464, 2
  %v3466 = vmax.f32 %v3464, %v3465
  %v3467 = vrot.slane %v3466, 1
  %v3468 = vmax.f32 %v3466, %v3467
  %v3469 = vrot.slane %v3408, 4
  %v3470 = vmax.f32 %v3408, %v3469
  %v3471 = vrot.slane %v3470, 2
  %v3472 = vmax.f32 %v3470, %v3471
  %v3473 = vrot.slane %v3472, 1
  %v3474 = vmax.f32 %v3472, %v3473
  %v3475 = vrot.slane %v3409, 4
  %v3476 = vmax.f32 %v3409, %v3475
  %v3477 = vrot.slane %v3476, 2
  %v3478 = vmax.f32 %v3476, %v3477
  %v3479 = vrot.slane %v3478, 1
  %v3480 = vmax.f32 %v3478, %v3479
  %v3481 = vrot.slane %v3410, 4
  %v3482 = vmax.f32 %v3410, %v3481
  %v3483 = vrot.slane %v3482, 2
  %v3484 = vmax.f32 %v3482, %v3483
  %v3485 = vrot.slane %v3484, 1
  %v3486 = vmax.f32 %v3484, %v3485
  %v3487 = vrot.slane %v3411, 4
  %v3488 = vmax.f32 %v3411, %v3487
  %v3489 = vrot.slane %v3488, 2
  %v3490 = vmax.f32 %v3488, %v3489
  %v3491 = vrot.slane %v3490, 1
  %v3492 = vmax.f32 %v3490, %v3491
  %v3493 = vrot.slane %v3412, 4
  %v3494 = vmax.f32 %v3412, %v3493
  %v3495 = vrot.slane %v3494, 2
  %v3496 = vmax.f32 %v3494, %v3495
  %v3497 = vrot.slane %v3496, 1
  %v3498 = vmax.f32 %v3496, %v3497
  %v3499 = vrot.slane %v3413, 4
  %v3500 = vmax.f32 %v3413, %v3499
  %v3501 = vrot.slane %v3500, 2
  %v3502 = vmax.f32 %v3500, %v3501
  %v3503 = vrot.slane %v3502, 1
  %v3504 = vmax.f32 %v3502, %v3503
  %v3505 = vrot.slane %v3414, 4
  %v3506 = vmax.f32 %v3414, %v3505
  %v3507 = vrot.slane %v3506, 2
  %v3508 = vmax.f32 %v3506, %v3507
  %v3509 = vrot.slane %v3508, 1
  %v3510 = vmax.f32 %v3508, %v3509
  %v3511 = vmax.f32 %v3383, %v3420
  %v3512 = vmax.f32 %v3384, %v3426
  %v3513 = vmax.f32 %v3385, %v3432
  %v3514 = vmax.f32 %v3386, %v3438
  %v3515 = vmax.f32 %v3387, %v3444
  %v3516 = vmax.f32 %v3388, %v3450
  %v3517 = vmax.f32 %v3389, %v3456
  %v3518 = vmax.f32 %v3390, %v3462
  %v3519 = vmax.f32 %v3391, %v3468
  %v3520 = vmax.f32 %v3392, %v3474
  %v3521 = vmax.f32 %v3393, %v3480
  %v3522 = vmax.f32 %v3394, %v3486
  %v3523 = vmax.f32 %v3395, %v3492
  %v3524 = vmax.f32 %v3396, %v3498
  %v3525 = vmax.f32 %v3397, %v3504
  %v3526 = vmax.f32 %v3398, %v3510
  %v3543 = vsel %vm1168, %v3512, %v3511
  %v3544 = vsel %vm1170, %v3513, %v3543
  %v3545 = vsel %vm1172, %v3514, %v3544
  %v3546 = vsel %vm1174, %v3515, %v3545
  %v3547 = vsel %vm1176, %v3516, %v3546
  %v3548 = vsel %vm1178, %v3517, %v3547
  %v3549 = vsel %vm1180, %v3518, %v3548
  %v3550 = vsel %vm1168, %v3520, %v3519
  %v3551 = vsel %vm1170, %v3521, %v3550
  %v3552 = vsel %vm1172, %v3522, %v3551
  %v3553 = vsel %vm1174, %v3523, %v3552
  %v3554 = vsel %vm1176, %v3524, %v3553
  %v3555 = vsel %vm1178, %v3525, %v3554
  %v3556 = vsel %vm1180, %v3526, %v3555
  %v3559 = vsel %vm1150, %v3549, 0.0
  %v3560 = vsel %vm1151, %v3556, 0.0
  %v3561 = vld [vmem:[%s22] sm:$0xff]
  %v3562 = vld [vmem:[%s22 + $0x8] sm:$0xff]
  %v3563 = vld [vmem:[%s22 + $0x10] sm:$0xff]
  %v3564 = vld [vmem:[%s22 + $0x18] sm:$0xff]
  %v3565 = vld [vmem:[%s22 + $0x20] sm:$0xff]
  %v3566 = vld [vmem:[%s22 + $0x28] sm:$0xff]
  %v3567 = vld [vmem:[%s22 + $0x30] sm:$0xff]
  %v3568 = vld [vmem:[%s22 + $0x38] sm:$0xff]
  %v3569 = vld [vmem:[%s22 + $0x40] sm:$0xff]
  %v3570 = vld [vmem:[%s22 + $0x48] sm:$0xff]
  %v3571 = vld [vmem:[%s22 + $0x50] sm:$0xff]
  %v3572 = vld [vmem:[%s22 + $0x58] sm:$0xff]
  %v3573 = vld [vmem:[%s22 + $0x60] sm:$0xff]
  %v3574 = vld [vmem:[%s22 + $0x68] sm:$0xff]
  %v3575 = vld [vmem:[%s22 + $0x70] sm:$0xff]
  %v3576 = vld [vmem:[%s22 + $0x78] sm:$0xff]
  %3577 = vmatprep.subr.mxu0 0.0
  %3578 = vmatpush1.msra.mxu0 %v3561
  %3579 = vmatprep.subr.mxu0 0.0
  %3580 = vmatpush1.msra.mxu0 %v3562
  %3581 = vmatprep.subr.mxu0 0.0
  %3582 = vmatpush1.msra.mxu0 %v3563
  %3583 = vmatprep.subr.mxu0 0.0
  %3584 = vmatpush1.msra.mxu0 %v3564
  %3585 = vmatprep.subr.mxu0 0.0
  %3586 = vmatpush1.msra.mxu0 %v3565
  %3587 = vmatprep.subr.mxu0 0.0
  %3588 = vmatpush1.msra.mxu0 %v3566
  %3589 = vmatprep.subr.mxu0 0.0
  %3590 = vmatpush1.msra.mxu0 %v3567
  %3591 = vmatprep.subr.mxu0 0.0
  %3592 = vmatpush1.msra.mxu0 %v3568
  %3593 = vmatprep.subr.mxu0 0.0
  %3594 = vmatpush1.msra.mxu0 %v3569
  %3595 = vmatprep.subr.mxu0 0.0
  %3596 = vmatpush1.msra.mxu0 %v3570
  %3597 = vmatprep.subr.mxu0 0.0
  %3598 = vmatpush1.msra.mxu0 %v3571
  %3599 = vmatprep.subr.mxu0 0.0
  %3600 = vmatpush1.msra.mxu0 %v3572
  %3601 = vmatprep.subr.mxu0 0.0
  %3602 = vmatpush1.msra.mxu0 %v3573
  %3603 = vmatprep.subr.mxu0 0.0
  %3604 = vmatpush1.msra.mxu0 %v3574
  %3605 = vmatprep.subr.mxu0 0.0
  %3606 = vmatpush1.msra.mxu0 %v3575
  %3607 = vmatprep.subr.mxu0 0.0
  %3608 = vmatpush1.msra.mxu0 %v3576
  %3609 = vmatprep.subr.mxu0 0.0
  %3610 = vmatpush1.msra.mxu0 0.0
  %3611 = vmatprep.subr.mxu0 0.0
  %3612 = vmatpush1.msra.mxu0 0.0
  %3613 = vmatprep.subr.mxu0 0.0
  %3614 = vmatpush1.msra.mxu0 0.0
  %3615 = vmatprep.subr.mxu0 0.0
  %3616 = vmatpush1.msra.mxu0 0.0
  %3617 = vmatprep.subr.mxu0 0.0
  %3618 = vmatpush1.msra.mxu0 0.0
  %3619 = vmatprep.subr.mxu0 0.0
  %3620 = vmatpush1.msra.mxu0 0.0
  %3621 = vmatprep.subr.mxu0 0.0
  %3622 = vmatpush1.msra.mxu0 0.0
  %3623 = vmatprep.subr.mxu0 0.0
  %3624 = vmatpush1.msra.mxu0 0.0
  %3625 = vmatprep.subr.mxu0 0.0
  %3626 = vmatpush1.msra.mxu0 0.0
  %3627 = vmatprep.subr.mxu0 0.0
  %3628 = vmatpush1.msra.mxu0 0.0
  %3629 = vmatprep.subr.mxu0 0.0
  %3630 = vmatpush1.msra.mxu0 0.0
  %3631 = vmatprep.subr.mxu0 0.0
  %3632 = vmatpush1.msra.mxu0 0.0
  %3633 = vmatprep.subr.mxu0 0.0
  %3634 = vmatpush1.msra.mxu0 0.0
  %3635 = vmatprep.subr.mxu0 0.0
  %3636 = vmatpush1.msra.mxu0 0.0
  %3637 = vmatprep.subr.mxu0 0.0
  %3638 = vmatpush1.msra.mxu0 0.0
  %3639 = vmatprep.subr.mxu0 0.0
  %3640 = vmatpush1.msra.mxu0 0.0
  %3641 = vmatprep.mubr.f32.mxu0 0.0
  %3642 = vmatmul.mubr.f32.gmra.mrb[0].mxu0 %v3559
  %v3643 = vpop.f32.mrb[0].mxu0
  %v3644 = vadd.f32 0.0, %v3643
  %v3645 = vpop.f32.mrb[0].mxu0
  %3646 = vmatprep.mubr.f32.mxu0 0.0
  %3647 = vmatmul.mubr.f32.gmra.mrb[0].mxu0 %v3560
  %v3648 = vpop.f32.mrb[0].mxu0
  %v3649 = vadd.f32 0.0, %v3648
  %v3650 = vpop.f32.mrb[0].mxu0
  %3651 = vdwg.mxu0
  %3652 = vst [vmem:[#allocation2] sm:$0xff] %v2764
  %3653 = vst [vmem:[#allocation2 + $0x8] sm:$0xff] %v2770
  %3654 = vst [vmem:[#allocation2 + $0x10] sm:$0xff] %v2964
  %3655 = vst [vmem:[#allocation2 + $0x18] sm:$0xff] %v2970
  %3656 = vst [vmem:[#allocation2 + $0x20] sm:$0x3] %v2976
  %3657 = vst [vmem:[#allocation2 + $0x28] sm:$0xff] %v2766
  %3658 = vst [vmem:[#allocation2 + $0x30] sm:$0xff] %v2772
  %3659 = vst [vmem:[#allocation2 + $0x38] sm:$0xff] %v3175
  %3660 = vst [vmem:[#allocation2 + $0x40] sm:$0xff] %v3181
  %3661 = vst [vmem:[#allocation2 + $0x48] sm:$0x3] %v3187
  %3662 = vst [vmem:[#allocation2 + $0x50] sm:$0xff] %v3177
  %3663 = vst [vmem:[#allocation2 + $0x58] sm:$0xff] %v3183
  %3664 = vst [vmem:[#allocation2 + $0x60] sm:$0x3] %v3189
  %3665 = vst [vmem:[#allocation2 + $0x68] sm:$0xff] %v2966
  %3666 = vst [vmem:[#allocation2 + $0x70] sm:$0xff] %v2972
  %3667 = vst [vmem:[#allocation2 + $0x78] sm:$0x3] %v2978
  %v3668 = vld [vmem:[#allocation2] sm:$0xff]
  %v3669 = vld [vmem:[#allocation2 + $0x8] sm:$0xff]
  %v3670 = vld [vmem:[#allocation2 + $0x10] sm:$0xff]
  %v3671 = vld [vmem:[#allocation2 + $0x18] sm:$0xff]
  %v3672 = vld [vmem:[#allocation2 + $0x20] sm:$0xff]
  %v3673 = vld [vmem:[#allocation2 + $0x28] sm:$0xff]
  %v3674 = vld [vmem:[#allocation2 + $0x30] sm:$0xff]
  %v3675 = vld [vmem:[#allocation2 + $0x38] sm:$0xff]
  %v3676 = vld [vmem:[#allocation2 + $0x40] sm:$0xff]
  %v3677 = vld [vmem:[#allocation2 + $0x48] sm:$0xff]
  %v3678 = vld [vmem:[#allocation2 + $0x50] sm:$0xff]
  %v3679 = vld [vmem:[#allocation2 + $0x58] sm:$0xff]
  %v3680 = vld [vmem:[#allocation2 + $0x60] sm:$0xff]
  %v3681 = vld [vmem:[#allocation2 + $0x68] sm:$0xff]
  %v3682 = vld [vmem:[#allocation2 + $0x70] sm:$0xff]
  %v3683 = vld [vmem:[#allocation2 + $0x78] sm:$0xff]
  %3684 = vmatprep.subr.mxu0 0.0
  %3685 = vmatpush1.msra.mxu0 %v3668
  %3686 = vmatprep.subr.mxu0 0.0
  %3687 = vmatpush1.msra.mxu0 %v3669
  %3688 = vmatprep.subr.mxu0 0.0
  %3689 = vmatpush1.msra.mxu0 %v3670
  %3690 = vmatprep.subr.mxu0 0.0
  %3691 = vmatpush1.msra.mxu0 %v3671
  %3692 = vmatprep.subr.mxu0 0.0
  %3693 = vmatpush1.msra.mxu0 %v3672
  %3694 = vmatprep.subr.mxu0 0.0
  %3695 = vmatpush1.msra.mxu0 %v3673
  %3696 = vmatprep.subr.mxu0 0.0
  %3697 = vmatpush1.msra.mxu0 %v3674
  %3698 = vmatprep.subr.mxu0 0.0
  %3699 = vmatpush1.msra.mxu0 %v3675
  %3700 = vmatprep.subr.mxu0 0.0
  %3701 = vmatpush1.msra.mxu0 %v3676
  %3702 = vmatprep.subr.mxu0 0.0
  %3703 = vmatpush1.msra.mxu0 %v3677
  %3704 = vmatprep.subr.mxu0 0.0
  %3705 = vmatpush1.msra.mxu0 %v3678
  %3706 = vmatprep.subr.mxu0 0.0
  %3707 = vmatpush1.msra.mxu0 %v3679
  %3708 = vmatprep.subr.mxu0 0.0
  %3709 = vmatpush1.msra.mxu0 %v3680
  %3710 = vmatprep.subr.mxu0 0.0
  %3711 = vmatpush1.msra.mxu0 %v3681
  %3712 = vmatprep.subr.mxu0 0.0
  %3713 = vmatpush1.msra.mxu0 %v3682
  %3714 = vmatprep.subr.mxu0 0.0
  %3715 = vmatpush1.msra.mxu0 %v3683
  %3716 = vmatprep.subr.mxu0 0.0
  %3717 = vmatpush1.msra.mxu0 0.0
  %3718 = vmatprep.subr.mxu0 0.0
  %3719 = vmatpush1.msra.mxu0 0.0
  %3720 = vmatprep.subr.mxu0 0.0
  %3721 = vmatpush1.msra.mxu0 0.0
  %3722 = vmatprep.subr.mxu0 0.0
  %3723 = vmatpush1.msra.mxu0 0.0
  %3724 = vmatprep.subr.mxu0 0.0
  %3725 = vmatpush1.msra.mxu0 0.0
  %3726 = vmatprep.subr.mxu0 0.0
  %3727 = vmatpush1.msra.mxu0 0.0
  %3728 = vmatprep.subr.mxu0 0.0
  %3729 = vmatpush1.msra.mxu0 0.0
  %3730 = vmatprep.subr.mxu0 0.0
  %3731 = vmatpush1.msra.mxu0 0.0
  %3732 = vmatprep.subr.mxu0 0.0
  %3733 = vmatpush1.msra.mxu0 0.0
  %3734 = vmatprep.subr.mxu0 0.0
  %3735 = vmatpush1.msra.mxu0 0.0
  %3736 = vmatprep.subr.mxu0 0.0
  %3737 = vmatpush1.msra.mxu0 0.0
  %3738 = vmatprep.subr.mxu0 0.0
  %3739 = vmatpush1.msra.mxu0 0.0
  %3740 = vmatprep.subr.mxu0 0.0
  %3741 = vmatpush1.msra.mxu0 0.0
  %3742 = vmatprep.subr.mxu0 0.0
  %3743 = vmatpush1.msra.mxu0 0.0
  %3744 = vmatprep.subr.mxu0 0.0
  %3745 = vmatpush1.msra.mxu0 0.0
  %3746 = vmatprep.subr.mxu0 0.0
  %3747 = vmatpush1.msra.mxu0 0.0
  %3748 = vmatprep.mubr.f32.mxu0 0.0
  %3749 = vmatmul.mubr.f32.gmra.mrb[0].mxu0 %v301
  %v3750 = vpop.f32.mrb[0].mxu0
  %v3751 = vadd.f32 0.0, %v3750
  %v3752 = vpop.f32.mrb[0].mxu0
  %3753 = vmatprep.mubr.f32.mxu0 0.0
  %3754 = vmatmul.mubr.f32.gmra.mrb[0].mxu0 %v302
  %v3755 = vpop.f32.mrb[0].mxu0
  %v3756 = vadd.f32 0.0, %v3755
  %v3757 = vpop.f32.mrb[0].mxu0
  %3758 = vmatprep.mubr.f32.mxu0 0.0
  %3759 = vmatmul.mubr.f32.gmra.mrb[0].mxu0 %v303
  %v3760 = vpop.f32.mrb[0].mxu0
  %v3761 = vadd.f32 0.0, %v3760
  %v3762 = vpop.f32.mrb[0].mxu0
  %3763 = vmatprep.mubr.f32.mxu0 0.0
  %3764 = vmatmul.mubr.f32.gmra.mrb[0].mxu0 %v304
  %v3765 = vpop.f32.mrb[0].mxu0
  %v3766 = vadd.f32 0.0, %v3765
  %v3767 = vpop.f32.mrb[0].mxu0
  %3768 = vmatprep.mubr.f32.mxu0 0.0
  %3769 = vmatmul.mubr.f32.gmra.mrb[0].mxu0 %v305
  %v3770 = vpop.f32.mrb[0].mxu0
  %v3771 = vadd.f32 0.0, %v3770
  %v3772 = vpop.f32.mrb[0].mxu0
  %3773 = vmatprep.mubr.f32.mxu0 0.0
  %3774 = vmatmul.mubr.f32.gmra.mrb[0].mxu0 %v306
  %v3775 = vpop.f32.mrb[0].mxu0
  %v3776 = vadd.f32 0.0, %v3775
  %v3777 = vpop.f32.mrb[0].mxu0
  %3778 = vmatprep.mubr.f32.mxu0 0.0
  %3779 = vmatmul.mubr.f32.gmra.mrb[0].mxu0 %v307
  %v3780 = vpop.f32.mrb[0].mxu0
  %v3781 = vadd.f32 0.0, %v3780
  %v3782 = vpop.f32.mrb[0].mxu0
  %3783 = vmatprep.mubr.f32.mxu0 0.0
  %3784 = vmatmul.mubr.f32.gmra.mrb[0].mxu0 %v308
  %v3785 = vpop.f32.mrb[0].mxu0
  %v3786 = vadd.f32 0.0, %v3785
  %v3787 = vpop.f32.mrb[0].mxu0
  %3788 = vdwg.mxu0
  %v3789 = vadd.f32 %v3751, %v3644
  %v3790 = vadd.f32 %v3756, %v3649
  %v3791 = vadd.f32 %v3789, %v2841
  %v3792 = vadd.f32 %v3790, %v2846
  %v3793 = vld [vmem:[%s23] sm:$0x1]
  %v3795 = vlaneseq
  %v3796 = vshrl.u32 %v3795, 7
  %v3797 = vsub.s32 0, %v3796
  %v3798 = vrot.slane %v3793, %v3797
  %v3800 = vadd.f32 %v3791, %v3798
  %v3801 = vadd.f32 %v3792, %v3798
  %v3802 = vadd.f32 %v3761, %v3047
  %v3803 = vadd.f32 %v3766, %v3052
  %v3804 = vadd.f32 %v3771, %v3057
  %v3805 = vld [vmem:[%s24] sm:$0x1]
  %v3807 = vlaneseq
  %v3808 = vshrl.u32 %v3807, 7
  %v3809 = vsub.s32 0, %v3808
  %v3810 = vrot.slane %v3805, %v3809
  %v3812 = vadd.f32 %v3802, %v3810
  %v3813 = vadd.f32 %v3803, %v3810
  %v3814 = vadd.f32 %v3804, %v3810
  %v3815 = vadd.f32 %v3776, %v3258
  %v3816 = vadd.f32 %v3781, %v3263
  %v3817 = vadd.f32 %v3786, %v3268
  %v3818 = vld [vmem:[%s25] sm:$0x1]
  %v3820 = vlaneseq
  %v3821 = vshrl.u32 %v3820, 7
  %v3822 = vsub.s32 0, %v3821
  %v3823 = vrot.slane %v3818, %v3822
  %v3825 = vadd.f32 %v3815, %v3823
  %v3826 = vadd.f32 %v3816, %v3823
  %v3827 = vadd.f32 %v3817, %v3823
  %3828 = vst [vmem:[%s26] sm:$0xff] %v3800
  %3829 = vst [vmem:[%s26 + $0x8] sm:$0xff] %v3801
  %3830 = vst [vmem:[%s27] sm:$0xff] %v3812
  %3831 = vst [vmem:[%s27 + $0x8] sm:$0xff] %v3813
  %3832 = vst [vmem:[%s27 + $0x10] sm:$0x3] %v3814
  %3833 = vst [vmem:[%s28] sm:$0xff] %v3825
  %3834 = vst [vmem:[%s28 + $0x8] sm:$0xff] %v3826
  %3835 = vst [vmem:[%s28 + $0x10] sm:$0x3] %v3827
  // Predicated region
  $region106: #{_lambda_.1} parent=0 // pred_check
    _
  $region107: #{_lambda_.1} parent=0 // pred_check_branch
    %3837 = sbr.rel (0) target = $region109
  $region108: #{_lambda_.1} parent=0 // pred_region
    _
  $region109: #{_lambda_.1} parent=0 // pred_fallthru
    _
  // Predicated region
  $region110: #{_lambda_.1} parent=0 // pred_check
    _
  $region111: #{_lambda_.1} parent=0 // pred_check_branch
    %3839 = sbr.rel (0) target = $region113
  $region112: #{_lambda_.1} parent=0 // pred_region
    _
  $region113: #{_lambda_.1} parent=0 // pred_fallthru
    _
  // Predicated region
  $region114: #{_lambda_.1} parent=0 // pred_check
    _
  $region115: #{_lambda_.1} parent=0 // pred_check_branch
    %3841 = sbr.rel (0) target = $region117
  $region116: #{_lambda_.1} parent=0 // pred_region
    _
  $region117: #{_lambda_.1} parent=0 // pred_fallthru
    _
  // Predicated region
  $region118: #{_lambda_.1} parent=0 // pred_check
    _
  $region119: #{_lambda_.1} parent=0 // pred_check_branch
    %3843 = sbr.rel (0) target = $region121
  $region120: #{_lambda_.1} parent=0 // pred_region
    _
  $region121: #{_lambda_.1} parent=0 // pred_fallthru
    _
  // Predicated region
  $region122: #{_lambda_.1} parent=0 // pred_check
    _
  $region123: #{_lambda_.1} parent=0 // pred_check_branch
    %3845 = sbr.rel (0) target = $region125
  $region124: #{_lambda_.1} parent=0 // pred_region
    _
  $region125: #{_lambda_.1} parent=0 // pred_fallthru
    _
  // Predicated region
  $region126: #{_lambda_.1} parent=0 // pred_check
    _
  $region127: #{_lambda_.1} parent=0 // pred_check_branch
    %3847 = sbr.rel (0) target = $region129
  $region128: #{_lambda_.1} parent=0 // pred_region
    _
  $region129: #{_lambda_.1} parent=0 // pred_fallthru
    _

</llo_original>
